<compile_context>
chip_gen: v5e
topology: v5e:2x2
jax: 0.10.0
libtpu: 0.0.40
codegen_flags: <defaults>
</compile_context>

<pallas_src>
import functools

import jax
import jax.numpy as jnp
from jax import lax
from jax.experimental import pallas as pl
from jax.experimental.pallas import tpu as pltpu


# ----------------------------- Pallas kernel -----------------------------

def _layer_norm(x, g, b, eps=1e-6):
    mean = jnp.mean(x, axis=-1, keepdims=True)
    var = jnp.mean((x - mean) ** 2, axis=-1, keepdims=True)
    return (x - mean) * lax.rsqrt(var + eps) * g + b


# dot_general contracting the LAST dim of both operands (q @ k^T without materializing k^T)
_CONTRACT_LAST = (((1,), (1,)), ((), ()))


def _decoder_stack_kernel(n_head, d_k, d_v, B, L, Le,
                          x_ref, enc_ref, tbias_ref, sbias_ref,
                          wq_ref, wk_ref, wv_ref, wo_ref, g1_ref, bn1_ref,
                          wq2_ref, wk2_ref, wv2_ref, wo2_ref, g2_ref, bn2_ref,
                          w1_ref, fb1_ref, w2_ref, fb2_ref, g3_ref, bn3_ref,
                          y_ref):
    layer = pl.program_id(0)

    # Layer 0: load the activations into the resident output/accumulator buffer.
    @pl.when(layer == 0)
    def _():
        y_ref[...] = x_ref[...]          # (B*L, D)

    def mha(kv, kv_len, bias_ref, wq, wk, wv, wo, g, b):
        x = y_ref[...]                   # (B*L, D)  residual + queries (read once, before writes)
        kv_in = x if kv is None else kv  # (B*kv_len, D)
        # 1/sqrt(d_k) is folded into wq in the wrapper; projections run over the whole batch.
        q = jnp.dot(x, wq, preferred_element_type=jnp.float32)       # (B*L, H*dk)
        k = jnp.dot(kv_in, wk, preferred_element_type=jnp.float32)   # (B*kv_len, H*dk)
        v = jnp.dot(kv_in, wv, preferred_element_type=jnp.float32)   # (B*kv_len, H*dv)
        for bi in range(B):                                           # static loop, B small
            qb = q[bi * L:(bi + 1) * L]
            kb = k[bi * kv_len:(bi + 1) * kv_len]
            vb = v[bi * kv_len:(bi + 1) * kv_len]
            bias = bias_ref[bi]                                       # (L or 1, kv_len) additive
            acc = x[bi * L:(bi + 1) * L]                              # start from the residual
            for h in range(n_head):                                   # static loop over heads
                qh = qb[:, h * d_k:(h + 1) * d_k]
                kh = kb[:, h * d_k:(h + 1) * d_k]
                vh = vb[:, h * d_v:(h + 1) * d_v]
                s = lax.dot_general(qh, kh, _CONTRACT_LAST,
                                    preferred_element_type=jnp.float32)   # (L, kv_len)
                s = s + bias
                m = jnp.max(s, axis=-1, keepdims=True)
                e = jnp.exp(s - m)
                p = e * pl.reciprocal(jnp.sum(e, axis=-1, keepdims=True), approx=True)
                oh = jnp.dot(p, vh, preferred_element_type=jnp.float32)   # (L, dv)
                # accumulate this head's contribution through its slice of wo (no concat)
                acc = acc + jnp.dot(oh, wo[h * d_v:(h + 1) * d_v, :],
                                    preferred_element_type=jnp.float32)
            y_ref[bi * L:(bi + 1) * L, :] = _layer_norm(acc, g, b)

    # self attention (trg mask)
    mha(None, L, tbias_ref,
        wq_ref[0], wk_ref[0], wv_ref[0], wo_ref[0], g1_ref[0], bn1_ref[0])
    # encoder-decoder attention (src mask)
    mha(enc_ref[...], Le, sbias_ref,
        wq2_ref[0], wk2_ref[0], wv2_ref[0], wo2_ref[0], g2_ref[0], bn2_ref[0])
    # position-wise feed forward (whole batch as one matmul)
    y = y_ref[...]
    h = jnp.maximum(jnp.dot(y, w1_ref[0], preferred_element_type=jnp.float32) + fb1_ref[0], 0.0)
    f = jnp.dot(h, w2_ref[0], preferred_element_type=jnp.float32) + fb2_ref[0]
    y_ref[...] = _layer_norm(f + y, g3_ref[0], bn3_ref[0])
    # The output buffer (constant block index across the layer axis) is written back to HBM once,
    # after the last layer.


_PARAM_ORDER = ('wq', 'wk', 'wv', 'wo', 'ln1_g', 'ln1_b',
                'wq2', 'wk2', 'wv2', 'wo2', 'ln2_g', 'ln2_b',
                'w1', 'b1', 'w2', 'b2', 'ln3_g', 'ln3_b')


def decoder_forward(trg_seq, trg_mask, enc_output, src_mask, layer_params, *,
                    n_head, d_k, d_v, return_attns=False):
    """Mirrors Decoder.forward (return_attns=False path). Whole layer stack = one pallas_call."""
    B, L, D = trg_seq.shape
    Le = enc_output.shape[1]
    n_layers = len(layer_params)

    # Stack per-layer weights along a leading layer axis; fold 1/sqrt(d_k) into Q projections.
    scale = 1.0 / jnp.sqrt(jnp.float32(d_k))
    stacked = []
    for name in _PARAM_ORDER:
        w = jnp.stack([p[name] for p in layer_params], axis=0)
        if name in ('wq', 'wq2'):
            w = w * scale
        stacked.append(w)

    # Additive attention biases: 0 where visible, -1e9 where masked ({0,1} float masks).
    tbias = (trg_mask.astype(jnp.float32) - 1.0) * 1e9      # (B, L, L)
    sbias = (src_mask.astype(jnp.float32) - 1.0) * 1e9      # (B, 1, Le)

    # Activations presented flat (rows = B*L) so all dense matmuls run over the whole batch.
    x_flat = trg_seq.astype(jnp.float32).reshape(B * L, D)
    enc_flat = enc_output.astype(jnp.float32).reshape(B * Le, D)

    def resident(shape):
        nd = len(shape)
        return pl.BlockSpec(shape, lambda l, _n=nd: (0,) * _n)

    def per_layer(shape):
        nd = len(shape)
        return pl.BlockSpec((1,) + tuple(shape[1:]), lambda l, _n=nd: (l,) + (0,) * (_n - 1))

    in_specs = ([resident((B * L, D)), resident((B * Le, D)),
                 resident((B, L, L)), resident((B, 1, Le))]
                + [per_layer(w.shape) for w in stacked])

    kernel = functools.partial(_decoder_stack_kernel, n_head, d_k, d_v, B, L, Le)
    out_flat = pl.pallas_call(
        kernel,
        out_shape=jax.ShapeDtypeStruct((B * L, D), jnp.float32),
        grid_spec=pltpu.PrefetchScalarGridSpec(
            num_scalar_prefetch=0,
            grid=(n_layers,),
            in_specs=in_specs,
            out_specs=pl.BlockSpec((B * L, D), lambda l: (0, 0))),
        compiler_params=pltpu.CompilerParams(
            dimension_semantics=("arbitrary",)),   # layers are sequential
    )(x_flat, enc_flat, tbias, sbias, *stacked)

    dec_output = out_flat.reshape(B, L, D)
    # TODO(synk): attention maps are not returned from the fused kernel (empty list, matching the
    # PyTorch module's return_attns=False path).
    return dec_output, []


# ----------------------------- pure-JAX reference -----------------------------

def _ref_ln(x, g, b, eps=1e-6):
    mean = jnp.mean(x, axis=-1, keepdims=True)
    var = jnp.mean((x - mean) ** 2, axis=-1, keepdims=True)
    return (x - mean) / jnp.sqrt(var + eps) * g + b


def _ref_mha(q_in, kv_in, mask, wq, wk, wv, wo, g, b, n_head, d_k, d_v):
    B, Lq, D = q_in.shape
    Lk = kv_in.shape[1]
    residual = q_in
    q = (q_in @ wq).reshape(B, Lq, n_head, d_k).transpose(0, 2, 1, 3)
    k = (kv_in @ wk).reshape(B, Lk, n_head, d_k).transpose(0, 2, 1, 3)
    v = (kv_in @ wv).reshape(B, Lk, n_head, d_v).transpose(0, 2, 1, 3)
    attn = jnp.einsum('bhqd,bhkd->bhqk', q / jnp.sqrt(jnp.float32(d_k)), k)
    attn = jnp.where(mask[:, None, :, :] == 0, -1e9, attn)
    attn = jax.nn.softmax(attn, axis=-1)
    o = jnp.einsum('bhqk,bhkd->bhqd', attn, v)
    o = o.transpose(0, 2, 1, 3).reshape(B, Lq, n_head * d_v)
    o = o @ wo + residual
    return _ref_ln(o, g, b)


def _ref_decoder(trg_seq, trg_mask, enc_output, src_mask, layer_params, *, n_head, d_k, d_v):
    y = trg_seq
    for p in layer_params:
        y = _ref_mha(y, y, trg_mask, p['wq'], p['wk'], p['wv'], p['wo'],
                     p['ln1_g'], p['ln1_b'], n_head, d_k, d_v)
        y = _ref_mha(y, enc_output, src_mask, p['wq2'], p['wk2'], p['wv2'], p['wo2'],
                     p['ln2_g'], p['ln2_b'], n_head, d_k, d_v)
        residual = y
        h = jnp.maximum(y @ p['w1'] + p['b1'], 0.0)
        f = h @ p['w2'] + p['b2']
        y = _ref_ln(f + residual, p['ln3_g'], p['ln3_b'])
    return y


# ----------------------------- parameter init -----------------------------

def init_layer_params(key, d_model, d_inner, n_head, d_k, d_v):
    ks = jax.random.split(key, 12)
    s = 0.02
    f32 = jnp.float32
    return {
        'wq': s * jax.random.normal(ks[0], (d_model, n_head * d_k), f32),
        'wk': s * jax.random.normal(ks[1], (d_model, n_head * d_k), f32),
        'wv': s * jax.random.normal(ks[2], (d_model, n_head * d_v), f32),
        'wo': s * jax.random.normal(ks[3], (n_head * d_v, d_model), f32),
        'ln1_g': jnp.ones((1, d_model), f32),
        'ln1_b': jnp.zeros((1, d_model), f32),
        'wq2': s * jax.random.normal(ks[4], (d_model, n_head * d_k), f32),
        'wk2': s * jax.random.normal(ks[5], (d_model, n_head * d_k), f32),
        'wv2': s * jax.random.normal(ks[6], (d_model, n_head * d_v), f32),
        'wo2': s * jax.random.normal(ks[7], (n_head * d_v, d_model), f32),
        'ln2_g': jnp.ones((1, d_model), f32),
        'ln2_b': jnp.zeros((1, d_model), f32),
        'w1': s * jax.random.normal(ks[8], (d_model, d_inner), f32),
        'b1': 0.1 * jax.random.normal(ks[9], (1, d_inner), f32),
        'w2': s * jax.random.normal(ks[10], (d_inner, d_model), f32),
        'b2': 0.1 * jax.random.normal(ks[11], (1, d_model), f32),
        'ln3_g': jnp.ones((1, d_model), f32),
        'ln3_b': jnp.zeros((1, d_model), f32),
    }


# ----------------------------- main -----------------------------

if __name__ == "__main__":
    # Small shapes consistent with the module: d_word_vec = d_model = 32, n_layers = 2,
    # n_head = 2, d_k = d_v = 16, d_inner = 64.
    B, L, Le = 2, 8, 16
    d_model, d_inner, n_layers, n_head, d_k, d_v = 32, 64, 2, 2, 16, 16

    key = jax.random.PRNGKey(0)
    k_trg, k_enc, *k_layers = jax.random.split(key, 2 + n_layers)

    trg_seq = jax.random.normal(k_trg, (B, L, d_model), jnp.float32)
    enc_output = jax.random.normal(k_enc, (B, Le, d_model), jnp.float32)

    # causal self-attention mask (B, L, L); src padding mask (B, 1, Le)
    causal = jnp.tril(jnp.ones((L, L), jnp.float32))
    trg_mask = jnp.broadcast_to(causal, (B, L, L))
    src_mask = jnp.ones((B, 1, Le), jnp.float32)
    src_mask = src_mask.at[1, 0, Le - 4:].set(0.0)   # pad out last 4 enc positions of batch 1

    layer_params = [init_layer_params(k, d_model, d_inner, n_head, d_k, d_v) for k in k_layers]

    dec_out, dec_enc_attn_list = decoder_forward(
        trg_seq, trg_mask, enc_output, src_mask, layer_params,
        n_head=n_head, d_k=d_k, d_v=d_v)
    dec_out = jax.block_until_ready(dec_out)

    ref = _ref_decoder(trg_seq, trg_mask, enc_output, src_mask, layer_params,
                       n_head=n_head, d_k=d_k, d_v=d_v)
    assert dec_out.shape == (B, L, d_model)
    # tolerance slightly relaxed vs exact softmax because the kernel uses the EUP approximate
    # reciprocal for the softmax normalization.
    assert jnp.allclose(dec_out, ref, atol=2e-3, rtol=2e-3), "kernel/reference mismatch"

    print("KERNEL_OK")
</pallas_src>

<mosaic_0001>
module attributes {stable_mosaic.version = 11 : i64} {
  func.func @_decoder_stack_kernel(%arg0: i32, %arg1: memref<16x32xf32, #tpu.memory_space<vmem>>, %arg2: memref<32x32xf32, #tpu.memory_space<vmem>>, %arg3: memref<2x8x8xf32, #tpu.memory_space<vmem>>, %arg4: memref<2x1x16xf32, #tpu.memory_space<vmem>>, %arg5: memref<1x32x32xf32, #tpu.memory_space<vmem>>, %arg6: memref<1x32x32xf32, #tpu.memory_space<vmem>>, %arg7: memref<1x32x32xf32, #tpu.memory_space<vmem>>, %arg8: memref<1x32x32xf32, #tpu.memory_space<vmem>>, %arg9: memref<1x1x32xf32, #tpu.memory_space<vmem>>, %arg10: memref<1x1x32xf32, #tpu.memory_space<vmem>>, %arg11: memref<1x32x32xf32, #tpu.memory_space<vmem>>, %arg12: memref<1x32x32xf32, #tpu.memory_space<vmem>>, %arg13: memref<1x32x32xf32, #tpu.memory_space<vmem>>, %arg14: memref<1x32x32xf32, #tpu.memory_space<vmem>>, %arg15: memref<1x1x32xf32, #tpu.memory_space<vmem>>, %arg16: memref<1x1x32xf32, #tpu.memory_space<vmem>>, %arg17: memref<1x32x64xf32, #tpu.memory_space<vmem>>, %arg18: memref<1x1x64xf32, #tpu.memory_space<vmem>>, %arg19: memref<1x64x32xf32, #tpu.memory_space<vmem>>, %arg20: memref<1x1x32xf32, #tpu.memory_space<vmem>>, %arg21: memref<1x1x32xf32, #tpu.memory_space<vmem>>, %arg22: memref<1x1x32xf32, #tpu.memory_space<vmem>>, %arg23: memref<16x32xf32, #tpu.memory_space<vmem>>) attributes {dimension_semantics = [#tpu.dimension_semantics<arbitrary>], iteration_bounds = array<i64: 2>, scalar_prefetch = 0 : i64, scratch_operands = 0 : i64, tpu.core_type = #tpu.core_type<tc>, window_params = [{pipeline_mode = #tpu.pipeline_mode<synchronous>, transform_indices = @transform_0, window_bounds = array<i64: 16, 32>}, {pipeline_mode = #tpu.pipeline_mode<synchronous>, transform_indices = @transform_1, window_bounds = array<i64: 32, 32>}, {pipeline_mode = #tpu.pipeline_mode<synchronous>, transform_indices = @transform_2, window_bounds = array<i64: 2, 8, 8>}, {pipeline_mode = #tpu.pipeline_mode<synchronous>, transform_indices = @transform_3, window_bounds = array<i64: 2, 1, 16>}, {transform_indices = @transform_4, window_bounds = array<i64: 1, 32, 32>}, {transform_indices = @transform_5, window_bounds = array<i64: 1, 32, 32>}, {transform_indices = @transform_6, window_bounds = array<i64: 1, 32, 32>}, {transform_indices = @transform_7, window_bounds = array<i64: 1, 32, 32>}, {transform_indices = @transform_8, window_bounds = array<i64: 1, 1, 32>}, {transform_indices = @transform_9, window_bounds = array<i64: 1, 1, 32>}, {transform_indices = @transform_10, window_bounds = array<i64: 1, 32, 32>}, {transform_indices = @transform_11, window_bounds = array<i64: 1, 32, 32>}, {transform_indices = @transform_12, window_bounds = array<i64: 1, 32, 32>}, {transform_indices = @transform_13, window_bounds = array<i64: 1, 32, 32>}, {transform_indices = @transform_14, window_bounds = array<i64: 1, 1, 32>}, {transform_indices = @transform_15, window_bounds = array<i64: 1, 1, 32>}, {transform_indices = @transform_16, window_bounds = array<i64: 1, 32, 64>}, {transform_indices = @transform_17, window_bounds = array<i64: 1, 1, 64>}, {transform_indices = @transform_18, window_bounds = array<i64: 1, 64, 32>}, {transform_indices = @transform_19, window_bounds = array<i64: 1, 1, 32>}, {transform_indices = @transform_20, window_bounds = array<i64: 1, 1, 32>}, {transform_indices = @transform_21, window_bounds = array<i64: 1, 1, 32>}, {pipeline_mode = #tpu.pipeline_mode<synchronous>, transform_indices = @transform_22, window_bounds = array<i64: 16, 32>}]} {
    %c0_i32 = arith.constant 0 : i32
    %0 = arith.cmpi eq, %arg0, %c0_i32 : i32
    %1 = arith.extui %0 : i1 to i32
    %c0_i32_0 = arith.constant 0 : i32
    %2 = arith.cmpi ne, %1, %c0_i32_0 : i32
    scf.if %2 {
      %c0_155 = arith.constant 0 : index
      %c0_156 = arith.constant 0 : index
      %353 = vector.load %arg1[%c0_155, %c0_156] : memref<16x32xf32, #tpu.memory_space<vmem>>, vector<16x32xf32>
      %c0_157 = arith.constant 0 : index
      %c0_158 = arith.constant 0 : index
      %354 = vector.load %arg23[%c0_157, %c0_158] : memref<16x32xf32, #tpu.memory_space<vmem>>, vector<16x32xf32>
      tpu.vector_store %arg23[%c0_157, %c0_158], %353 {strides = array<i32>} : memref<16x32xf32, #tpu.memory_space<vmem>>, vector<16x32xf32>,
    } else {
    }
    %c0 = arith.constant 0 : index
    %c0_1 = arith.constant 0 : index
    %c0_2 = arith.constant 0 : index
    %3 = vector.load %arg5[%c0, %c0_1, %c0_2] : memref<1x32x32xf32, #tpu.memory_space<vmem>>, vector<1x32x32xf32>
    %4 = vector.shape_cast %3 : vector<1x32x32xf32> to vector<32x32xf32>
    %c0_3 = arith.constant 0 : index
    %c0_4 = arith.constant 0 : index
    %c0_5 = arith.constant 0 : index
    %5 = vector.load %arg6[%c0_3, %c0_4, %c0_5] : memref<1x32x32xf32, #tpu.memory_space<vmem>>, vector<1x32x32xf32>
    %6 = vector.shape_cast %5 : vector<1x32x32xf32> to vector<32x32xf32>
    %c0_6 = arith.constant 0 : index
    %c0_7 = arith.constant 0 : index
    %c0_8 = arith.constant 0 : index
    %7 = vector.load %arg7[%c0_6, %c0_7, %c0_8] : memref<1x32x32xf32, #tpu.memory_space<vmem>>, vector<1x32x32xf32>
    %8 = vector.shape_cast %7 : vector<1x32x32xf32> to vector<32x32xf32>
    %c0_9 = arith.constant 0 : index
    %c0_10 = arith.constant 0 : index
    %c0_11 = arith.constant 0 : index
    %9 = vector.load %arg8[%c0_9, %c0_10, %c0_11] : memref<1x32x32xf32, #tpu.memory_space<vmem>>, vector<1x32x32xf32>
    %10 = vector.shape_cast %9 : vector<1x32x32xf32> to vector<32x32xf32>
    %c0_12 = arith.constant 0 : index
    %c0_13 = arith.constant 0 : index
    %c0_14 = arith.constant 0 : index
    %11 = vector.load %arg9[%c0_12, %c0_13, %c0_14] : memref<1x1x32xf32, #tpu.memory_space<vmem>>, vector<1x1x32xf32>
    %12 = vector.shape_cast %11 : vector<1x1x32xf32> to vector<1x32xf32>
    %c0_15 = arith.constant 0 : index
    %c0_16 = arith.constant 0 : index
    %c0_17 = arith.constant 0 : index
    %13 = vector.load %arg10[%c0_15, %c0_16, %c0_17] : memref<1x1x32xf32, #tpu.memory_space<vmem>>, vector<1x1x32xf32>
    %14 = vector.shape_cast %13 : vector<1x1x32xf32> to vector<1x32xf32>
    %c0_18 = arith.constant 0 : index
    %c0_19 = arith.constant 0 : index
    %15 = vector.load %arg23[%c0_18, %c0_19] : memref<16x32xf32, #tpu.memory_space<vmem>>, vector<16x32xf32>
    %cst = arith.constant dense<0.000000e+00> : vector<16x32xf32>
    %16 = tpu.matmul %15, %4, %cst {dimension_numbers = #tpu.dot_dimension_numbers<[1], [0], [0], [1], [0, 0, 1, 1], [], []>} : vector<16x32xf32>, vector<32x32xf32>, vector<16x32xf32> -> vector<16x32xf32>
    %cst_20 = arith.constant dense<0.000000e+00> : vector<16x32xf32>
    %17 = tpu.matmul %15, %6, %cst_20 {dimension_numbers = #tpu.dot_dimension_numbers<[1], [0], [0], [1], [0, 0, 1, 1], [], []>} : vector<16x32xf32>, vector<32x32xf32>, vector<16x32xf32> -> vector<16x32xf32>
    %cst_21 = arith.constant dense<0.000000e+00> : vector<16x32xf32>
    %18 = tpu.matmul %15, %8, %cst_21 {dimension_numbers = #tpu.dot_dimension_numbers<[1], [0], [0], [1], [0, 0, 1, 1], [], []>} : vector<16x32xf32>, vector<32x32xf32>, vector<16x32xf32> -> vector<16x32xf32>
    %19 = vector.extract_strided_slice %16 {offsets = [0, 0], sizes = [8, 32], strides = [1, 1]} : vector<16x32xf32> to vector<8x32xf32>
    %20 = vector.extract_strided_slice %17 {offsets = [0, 0], sizes = [8, 32], strides = [1, 1]} : vector<16x32xf32> to vector<8x32xf32>
    %21 = vector.extract_strided_slice %18 {offsets = [0, 0], sizes = [8, 32], strides = [1, 1]} : vector<16x32xf32> to vector<8x32xf32>
    %c0_22 = arith.constant 0 : index
    %c0_23 = arith.constant 0 : index
    %c0_24 = arith.constant 0 : index
    %22 = vector.load %arg3[%c0_22, %c0_23, %c0_24] : memref<2x8x8xf32, #tpu.memory_space<vmem>>, vector<1x8x8xf32>
    %23 = vector.shape_cast %22 : vector<1x8x8xf32> to vector<8x8xf32>
    %24 = vector.extract_strided_slice %15 {offsets = [0, 0], sizes = [8, 32], strides = [1, 1]} : vector<16x32xf32> to vector<8x32xf32>
    %25 = vector.extract_strided_slice %19 {offsets = [0, 0], sizes = [8, 16], strides = [1, 1]} : vector<8x32xf32> to vector<8x16xf32>
    %26 = vector.extract_strided_slice %20 {offsets = [0, 0], sizes = [8, 16], strides = [1, 1]} : vector<8x32xf32> to vector<8x16xf32>
    %27 = vector.extract_strided_slice %21 {offsets = [0, 0], sizes = [8, 16], strides = [1, 1]} : vector<8x32xf32> to vector<8x16xf32>
    %cst_25 = arith.constant dense<0.000000e+00> : vector<8x8xf32>
    %28 = tpu.matmul %25, %26, %cst_25 {dimension_numbers = #tpu.dot_dimension_numbers<[1], [1], [0], [0], [0, 0, 1, 0], [], []>} : vector<8x16xf32>, vector<8x16xf32>, vector<8x8xf32> -> vector<8x8xf32>
    %29 = arith.addf %28, %23 : vector<8x8xf32>
    %cst_26 = arith.constant dense<0xFF800000> : vector<8xf32>
    %30 = vector.multi_reduction <maximumf>, %29, %cst_26 [1] : vector<8x8xf32> to vector<8xf32>
    %31 = vector.shape_cast %30 : vector<8xf32> to vector<8x1xf32>
    %32 = vector.broadcast %31 : vector<8x1xf32> to vector<8x8xf32>
    %33 = arith.subf %29, %32 : vector<8x8xf32>
    %34 = math.exp %33 : vector<8x8xf32>
    %cst_27 = arith.constant dense<0.000000e+00> : vector<8xf32>
    %35 = vector.multi_reduction <add>, %34, %cst_27 [1] : vector<8x8xf32> to vector<8xf32>
    %36 = vector.shape_cast %35 : vector<8xf32> to vector<8x1xf32>
    %37 = tpu.reciprocal %36 {approx = true} : vector<8x1xf32> -> vector<8x1xf32>
    %38 = vector.broadcast %37 : vector<8x1xf32> to vector<8x8xf32>
    %39 = arith.mulf %34, %38 : vector<8x8xf32>
    %cst_28 = arith.constant dense<0.000000e+00> : vector<8x16xf32>
    %40 = tpu.matmul %39, %27, %cst_28 {dimension_numbers = #tpu.dot_dimension_numbers<[1], [0], [0], [1], [0, 0, 1, 1], [], []>} : vector<8x8xf32>, vector<8x16xf32>, vector<8x16xf32> -> vector<8x16xf32>
    %41 = vector.extract_strided_slice %10 {offsets = [0, 0], sizes = [16, 32], strides = [1, 1]} : vector<32x32xf32> to vector<16x32xf32>
    %cst_29 = arith.constant dense<0.000000e+00> : vector<8x32xf32>
    %42 = tpu.matmul %40, %41, %cst_29 {dimension_numbers = #tpu.dot_dimension_numbers<[1], [0], [0], [1], [0, 0, 1, 1], [], []>} : vector<8x16xf32>, vector<16x32xf32>, vector<8x32xf32> -> vector<8x32xf32>
    %43 = arith.addf %24, %42 : vector<8x32xf32>
    %44 = vector.extract_strided_slice %19 {offsets = [0, 16], sizes = [8, 16], strides = [1, 1]} : vector<8x32xf32> to vector<8x16xf32>
    %45 = vector.extract_strided_slice %20 {offsets = [0, 16], sizes = [8, 16], strides = [1, 1]} : vector<8x32xf32> to vector<8x16xf32>
    %46 = vector.extract_strided_slice %21 {offsets = [0, 16], sizes = [8, 16], strides = [1, 1]} : vector<8x32xf32> to vector<8x16xf32>
    %cst_30 = arith.constant dense<0.000000e+00> : vector<8x8xf32>
    %47 = tpu.matmul %44, %45, %cst_30 {dimension_numbers = #tpu.dot_dimension_numbers<[1], [1], [0], [0], [0, 0, 1, 0], [], []>} : vector<8x16xf32>, vector<8x16xf32>, vector<8x8xf32> -> vector<8x8xf32>
    %48 = arith.addf %47, %23 : vector<8x8xf32>
    %cst_31 = arith.constant dense<0xFF800000> : vector<8xf32>
    %49 = vector.multi_reduction <maximumf>, %48, %cst_31 [1] : vector<8x8xf32> to vector<8xf32>
    %50 = vector.shape_cast %49 : vector<8xf32> to vector<8x1xf32>
    %51 = vector.broadcast %50 : vector<8x1xf32> to vector<8x8xf32>
    %52 = arith.subf %48, %51 : vector<8x8xf32>
    %53 = math.exp %52 : vector<8x8xf32>
    %cst_32 = arith.constant dense<0.000000e+00> : vector<8xf32>
    %54 = vector.multi_reduction <add>, %53, %cst_32 [1] : vector<8x8xf32> to vector<8xf32>
    %55 = vector.shape_cast %54 : vector<8xf32> to vector<8x1xf32>
    %56 = tpu.reciprocal %55 {approx = true} : vector<8x1xf32> -> vector<8x1xf32>
    %57 = vector.broadcast %56 : vector<8x1xf32> to vector<8x8xf32>
    %58 = arith.mulf %53, %57 : vector<8x8xf32>
    %cst_33 = arith.constant dense<0.000000e+00> : vector<8x16xf32>
    %59 = tpu.matmul %58, %46, %cst_33 {dimension_numbers = #tpu.dot_dimension_numbers<[1], [0], [0], [1], [0, 0, 1, 1], [], []>} : vector<8x8xf32>, vector<8x16xf32>, vector<8x16xf32> -> vector<8x16xf32>
    %60 = vector.extract_strided_slice %10 {offsets = [16, 0], sizes = [16, 32], strides = [1, 1]} : vector<32x32xf32> to vector<16x32xf32>
    %cst_34 = arith.constant dense<0.000000e+00> : vector<8x32xf32>
    %61 = tpu.matmul %59, %60, %cst_34 {dimension_numbers = #tpu.dot_dimension_numbers<[1], [0], [0], [1], [0, 0, 1, 1], [], []>} : vector<8x16xf32>, vector<16x32xf32>, vector<8x32xf32> -> vector<8x32xf32>
    %62 = arith.addf %43, %61 : vector<8x32xf32>
    %cst_35 = arith.constant dense<0.000000e+00> : vector<8xf32>
    %63 = vector.multi_reduction <add>, %62, %cst_35 [1] : vector<8x32xf32> to vector<8xf32>
    %64 = vector.shape_cast %63 : vector<8xf32> to vector<8x1xf32>
    %cst_36 = arith.constant 3.200000e+01 : f32
    %65 = vector.broadcast %cst_36 : f32 to vector<8x1xf32>
    %66 = arith.divf %64, %65 : vector<8x1xf32>
    %67 = vector.broadcast %66 : vector<8x1xf32> to vector<8x32xf32>
    %68 = arith.subf %62, %67 : vector<8x32xf32>
    %69 = arith.mulf %68, %68 : vector<8x32xf32>
    %cst_37 = arith.constant dense<0.000000e+00> : vector<8xf32>
    %70 = vector.multi_reduction <add>, %69, %cst_37 [1] : vector<8x32xf32> to vector<8xf32>
    %71 = vector.shape_cast %70 : vector<8xf32> to vector<8x1xf32>
    %cst_38 = arith.constant 3.200000e+01 : f32
    %72 = vector.broadcast %cst_38 : f32 to vector<8x1xf32>
    %73 = arith.divf %71, %72 : vector<8x1xf32>
    %74 = vector.broadcast %66 : vector<8x1xf32> to vector<8x32xf32>
    %75 = arith.subf %62, %74 : vector<8x32xf32>
    %cst_39 = arith.constant 9.99999997E-7 : f32
    %76 = vector.broadcast %cst_39 : f32 to vector<8x1xf32>
    %77 = arith.addf %73, %76 : vector<8x1xf32>
    %78 = math.rsqrt %77 : vector<8x1xf32>
    %79 = vector.broadcast %78 : vector<8x1xf32> to vector<8x32xf32>
    %80 = arith.mulf %75, %79 : vector<8x32xf32>
    %81 = vector.broadcast %12 : vector<1x32xf32> to vector<8x32xf32>
    %82 = arith.mulf %80, %81 : vector<8x32xf32>
    %83 = vector.broadcast %14 : vector<1x32xf32> to vector<8x32xf32>
    %84 = arith.addf %82, %83 : vector<8x32xf32>
    %c0_40 = arith.constant 0 : index
    %c0_41 = arith.constant 0 : index
    %85 = vector.load %arg23[%c0_40, %c0_41] : memref<16x32xf32, #tpu.memory_space<vmem>>, vector<8x32xf32>
    tpu.vector_store %arg23[%c0_40, %c0_41], %84 {strides = array<i32>} : memref<16x32xf32, #tpu.memory_space<vmem>>, vector<8x32xf32>,
    %86 = vector.extract_strided_slice %16 {offsets = [8, 0], sizes = [8, 32], strides = [1, 1]} : vector<16x32xf32> to vector<8x32xf32>
    %87 = vector.extract_strided_slice %17 {offsets = [8, 0], sizes = [8, 32], strides = [1, 1]} : vector<16x32xf32> to vector<8x32xf32>
    %88 = vector.extract_strided_slice %18 {offsets = [8, 0], sizes = [8, 32], strides = [1, 1]} : vector<16x32xf32> to vector<8x32xf32>
    %c1 = arith.constant 1 : index
    %c0_42 = arith.constant 0 : index
    %c0_43 = arith.constant 0 : index
    %89 = vector.load %arg3[%c1, %c0_42, %c0_43] : memref<2x8x8xf32, #tpu.memory_space<vmem>>, vector<1x8x8xf32>
    %90 = vector.shape_cast %89 : vector<1x8x8xf32> to vector<8x8xf32>
    %91 = vector.extract_strided_slice %15 {offsets = [8, 0], sizes = [8, 32], strides = [1, 1]} : vector<16x32xf32> to vector<8x32xf32>
    %92 = vector.extract_strided_slice %86 {offsets = [0, 0], sizes = [8, 16], strides = [1, 1]} : vector<8x32xf32> to vector<8x16xf32>
    %93 = vector.extract_strided_slice %87 {offsets = [0, 0], sizes = [8, 16], strides = [1, 1]} : vector<8x32xf32> to vector<8x16xf32>
    %94 = vector.extract_strided_slice %88 {offsets = [0, 0], sizes = [8, 16], strides = [1, 1]} : vector<8x32xf32> to vector<8x16xf32>
    %cst_44 = arith.constant dense<0.000000e+00> : vector<8x8xf32>
    %95 = tpu.matmul %92, %93, %cst_44 {dimension_numbers = #tpu.dot_dimension_numbers<[1], [1], [0], [0], [0, 0, 1, 0], [], []>} : vector<8x16xf32>, vector<8x16xf32>, vector<8x8xf32> -> vector<8x8xf32>
    %96 = arith.addf %95, %90 : vector<8x8xf32>
    %cst_45 = arith.constant dense<0xFF800000> : vector<8xf32>
    %97 = vector.multi_reduction <maximumf>, %96, %cst_45 [1] : vector<8x8xf32> to vector<8xf32>
    %98 = vector.shape_cast %97 : vector<8xf32> to vector<8x1xf32>
    %99 = vector.broadcast %98 : vector<8x1xf32> to vector<8x8xf32>
    %100 = arith.subf %96, %99 : vector<8x8xf32>
    %101 = math.exp %100 : vector<8x8xf32>
    %cst_46 = arith.constant dense<0.000000e+00> : vector<8xf32>
    %102 = vector.multi_reduction <add>, %101, %cst_46 [1] : vector<8x8xf32> to vector<8xf32>
    %103 = vector.shape_cast %102 : vector<8xf32> to vector<8x1xf32>
    %104 = tpu.reciprocal %103 {approx = true} : vector<8x1xf32> -> vector<8x1xf32>
    %105 = vector.broadcast %104 : vector<8x1xf32> to vector<8x8xf32>
    %106 = arith.mulf %101, %105 : vector<8x8xf32>
    %cst_47 = arith.constant dense<0.000000e+00> : vector<8x16xf32>
    %107 = tpu.matmul %106, %94, %cst_47 {dimension_numbers = #tpu.dot_dimension_numbers<[1], [0], [0], [1], [0, 0, 1, 1], [], []>} : vector<8x8xf32>, vector<8x16xf32>, vector<8x16xf32> -> vector<8x16xf32>
    %108 = vector.extract_strided_slice %10 {offsets = [0, 0], sizes = [16, 32], strides = [1, 1]} : vector<32x32xf32> to vector<16x32xf32>
    %cst_48 = arith.constant dense<0.000000e+00> : vector<8x32xf32>
    %109 = tpu.matmul %107, %108, %cst_48 {dimension_numbers = #tpu.dot_dimension_numbers<[1], [0], [0], [1], [0, 0, 1, 1], [], []>} : vector<8x16xf32>, vector<16x32xf32>, vector<8x32xf32> -> vector<8x32xf32>
    %110 = arith.addf %91, %109 : vector<8x32xf32>
    %111 = vector.extract_strided_slice %86 {offsets = [0, 16], sizes = [8, 16], strides = [1, 1]} : vector<8x32xf32> to vector<8x16xf32>
    %112 = vector.extract_strided_slice %87 {offsets = [0, 16], sizes = [8, 16], strides = [1, 1]} : vector<8x32xf32> to vector<8x16xf32>
    %113 = vector.extract_strided_slice %88 {offsets = [0, 16], sizes = [8, 16], strides = [1, 1]} : vector<8x32xf32> to vector<8x16xf32>
    %cst_49 = arith.constant dense<0.000000e+00> : vector<8x8xf32>
    %114 = tpu.matmul %111, %112, %cst_49 {dimension_numbers = #tpu.dot_dimension_numbers<[1], [1], [0], [0], [0, 0, 1, 0], [], []>} : vector<8x16xf32>, vector<8x16xf32>, vector<8x8xf32> -> vector<8x8xf32>
    %115 = arith.addf %114, %90 : vector<8x8xf32>
    %cst_50 = arith.constant dense<0xFF800000> : vector<8xf32>
    %116 = vector.multi_reduction <maximumf>, %115, %cst_50 [1] : vector<8x8xf32> to vector<8xf32>
    %117 = vector.shape_cast %116 : vector<8xf32> to vector<8x1xf32>
    %118 = vector.broadcast %117 : vector<8x1xf32> to vector<8x8xf32>
    %119 = arith.subf %115, %118 : vector<8x8xf32>
    %120 = math.exp %119 : vector<8x8xf32>
    %cst_51 = arith.constant dense<0.000000e+00> : vector<8xf32>
    %121 = vector.multi_reduction <add>, %120, %cst_51 [1] : vector<8x8xf32> to vector<8xf32>
    %122 = vector.shape_cast %121 : vector<8xf32> to vector<8x1xf32>
    %123 = tpu.reciprocal %122 {approx = true} : vector<8x1xf32> -> vector<8x1xf32>
    %124 = vector.broadcast %123 : vector<8x1xf32> to vector<8x8xf32>
    %125 = arith.mulf %120, %124 : vector<8x8xf32>
    %cst_52 = arith.constant dense<0.000000e+00> : vector<8x16xf32>
    %126 = tpu.matmul %125, %113, %cst_52 {dimension_numbers = #tpu.dot_dimension_numbers<[1], [0], [0], [1], [0, 0, 1, 1], [], []>} : vector<8x8xf32>, vector<8x16xf32>, vector<8x16xf32> -> vector<8x16xf32>
    %127 = vector.extract_strided_slice %10 {offsets = [16, 0], sizes = [16, 32], strides = [1, 1]} : vector<32x32xf32> to vector<16x32xf32>
    %cst_53 = arith.constant dense<0.000000e+00> : vector<8x32xf32>
    %128 = tpu.matmul %126, %127, %cst_53 {dimension_numbers = #tpu.dot_dimension_numbers<[1], [0], [0], [1], [0, 0, 1, 1], [], []>} : vector<8x16xf32>, vector<16x32xf32>, vector<8x32xf32> -> vector<8x32xf32>
    %129 = arith.addf %110, %128 : vector<8x32xf32>
    %cst_54 = arith.constant dense<0.000000e+00> : vector<8xf32>
    %130 = vector.multi_reduction <add>, %129, %cst_54 [1] : vector<8x32xf32> to vector<8xf32>
    %131 = vector.shape_cast %130 : vector<8xf32> to vector<8x1xf32>
    %cst_55 = arith.constant 3.200000e+01 : f32
    %132 = vector.broadcast %cst_55 : f32 to vector<8x1xf32>
    %133 = arith.divf %131, %132 : vector<8x1xf32>
    %134 = vector.broadcast %133 : vector<8x1xf32> to vector<8x32xf32>
    %135 = arith.subf %129, %134 : vector<8x32xf32>
    %136 = arith.mulf %135, %135 : vector<8x32xf32>
    %cst_56 = arith.constant dense<0.000000e+00> : vector<8xf32>
    %137 = vector.multi_reduction <add>, %136, %cst_56 [1] : vector<8x32xf32> to vector<8xf32>
    %138 = vector.shape_cast %137 : vector<8xf32> to vector<8x1xf32>
    %cst_57 = arith.constant 3.200000e+01 : f32
    %139 = vector.broadcast %cst_57 : f32 to vector<8x1xf32>
    %140 = arith.divf %138, %139 : vector<8x1xf32>
    %141 = vector.broadcast %133 : vector<8x1xf32> to vector<8x32xf32>
    %142 = arith.subf %129, %141 : vector<8x32xf32>
    %cst_58 = arith.constant 9.99999997E-7 : f32
    %143 = vector.broadcast %cst_58 : f32 to vector<8x1xf32>
    %144 = arith.addf %140, %143 : vector<8x1xf32>
    %145 = math.rsqrt %144 : vector<8x1xf32>
    %146 = vector.broadcast %145 : vector<8x1xf32> to vector<8x32xf32>
    %147 = arith.mulf %142, %146 : vector<8x32xf32>
    %148 = vector.broadcast %12 : vector<1x32xf32> to vector<8x32xf32>
    %149 = arith.mulf %147, %148 : vector<8x32xf32>
    %150 = vector.broadcast %14 : vector<1x32xf32> to vector<8x32xf32>
    %151 = arith.addf %149, %150 : vector<8x32xf32>
    %c8 = arith.constant 8 : index
    %c0_59 = arith.constant 0 : index
    %152 = vector.load %arg23[%c8, %c0_59] : memref<16x32xf32, #tpu.memory_space<vmem>>, vector<8x32xf32>
    tpu.vector_store %arg23[%c8, %c0_59], %151 {strides = array<i32>} : memref<16x32xf32, #tpu.memory_space<vmem>>, vector<8x32xf32>,
    %c0_60 = arith.constant 0 : index
    %c0_61 = arith.constant 0 : index
    %153 = vector.load %arg2[%c0_60, %c0_61] : memref<32x32xf32, #tpu.memory_space<vmem>>, vector<32x32xf32>
    %c0_62 = arith.constant 0 : index
    %c0_63 = arith.constant 0 : index
    %c0_64 = arith.constant 0 : index
    %154 = vector.load %arg11[%c0_62, %c0_63, %c0_64] : memref<1x32x32xf32, #tpu.memory_space<vmem>>, vector<1x32x32xf32>
    %155 = vector.shape_cast %154 : vector<1x32x32xf32> to vector<32x32xf32>
    %c0_65 = arith.constant 0 : index
    %c0_66 = arith.constant 0 : index
    %c0_67 = arith.constant 0 : index
    %156 = vector.load %arg12[%c0_65, %c0_66, %c0_67] : memref<1x32x32xf32, #tpu.memory_space<vmem>>, vector<1x32x32xf32>
    %157 = vector.shape_cast %156 : vector<1x32x32xf32> to vector<32x32xf32>
    %c0_68 = arith.constant 0 : index
    %c0_69 = arith.constant 0 : index
    %c0_70 = arith.constant 0 : index
    %158 = vector.load %arg13[%c0_68, %c0_69, %c0_70] : memref<1x32x32xf32, #tpu.memory_space<vmem>>, vector<1x32x32xf32>
    %159 = vector.shape_cast %158 : vector<1x32x32xf32> to vector<32x32xf32>
    %c0_71 = arith.constant 0 : index
    %c0_72 = arith.constant 0 : index
    %c0_73 = arith.constant 0 : index
    %160 = vector.load %arg14[%c0_71, %c0_72, %c0_73] : memref<1x32x32xf32, #tpu.memory_space<vmem>>, vector<1x32x32xf32>
    %161 = vector.shape_cast %160 : vector<1x32x32xf32> to vector<32x32xf32>
    %c0_74 = arith.constant 0 : index
    %c0_75 = arith.constant 0 : index
    %c0_76 = arith.constant 0 : index
    %162 = vector.load %arg15[%c0_74, %c0_75, %c0_76] : memref<1x1x32xf32, #tpu.memory_space<vmem>>, vector<1x1x32xf32>
    %163 = vector.shape_cast %162 : vector<1x1x32xf32> to vector<1x32xf32>
    %c0_77 = arith.constant 0 : index
    %c0_78 = arith.constant 0 : index
    %c0_79 = arith.constant 0 : index
    %164 = vector.load %arg16[%c0_77, %c0_78, %c0_79] : memref<1x1x32xf32, #tpu.memory_space<vmem>>, vector<1x1x32xf32>
    %165 = vector.shape_cast %164 : vector<1x1x32xf32> to vector<1x32xf32>
    %c0_80 = arith.constant 0 : index
    %c0_81 = arith.constant 0 : index
    %166 = vector.load %arg23[%c0_80, %c0_81] : memref<16x32xf32, #tpu.memory_space<vmem>>, vector<16x32xf32>
    %cst_82 = arith.constant dense<0.000000e+00> : vector<16x32xf32>
    %167 = tpu.matmul %166, %155, %cst_82 {dimension_numbers = #tpu.dot_dimension_numbers<[1], [0], [0], [1], [0, 0, 1, 1], [], []>} : vector<16x32xf32>, vector<32x32xf32>, vector<16x32xf32> -> vector<16x32xf32>
    %cst_83 = arith.constant dense<0.000000e+00> : vector<32x32xf32>
    %168 = tpu.matmul %153, %157, %cst_83 {dimension_numbers = #tpu.dot_dimension_numbers<[1], [0], [0], [1], [0, 0, 1, 1], [], []>} : vector<32x32xf32>, vector<32x32xf32>, vector<32x32xf32> -> vector<32x32xf32>
    %cst_84 = arith.constant dense<0.000000e+00> : vector<32x32xf32>
    %169 = tpu.matmul %153, %159, %cst_84 {dimension_numbers = #tpu.dot_dimension_numbers<[1], [0], [0], [1], [0, 0, 1, 1], [], []>} : vector<32x32xf32>, vector<32x32xf32>, vector<32x32xf32> -> vector<32x32xf32>
    %170 = vector.extract_strided_slice %167 {offsets = [0, 0], sizes = [8, 32], strides = [1, 1]} : vector<16x32xf32> to vector<8x32xf32>
    %171 = vector.extract_strided_slice %168 {offsets = [0, 0], sizes = [16, 32], strides = [1, 1]} : vector<32x32xf32> to vector<16x32xf32>
    %172 = vector.extract_strided_slice %169 {offsets = [0, 0], sizes = [16, 32], strides = [1, 1]} : vector<32x32xf32> to vector<16x32xf32>
    %c0_85 = arith.constant 0 : index
    %c0_86 = arith.constant 0 : index
    %c0_87 = arith.constant 0 : index
    %173 = vector.load %arg4[%c0_85, %c0_86, %c0_87] : memref<2x1x16xf32, #tpu.memory_space<vmem>>, vector<1x1x16xf32>
    %174 = vector.shape_cast %173 : vector<1x1x16xf32> to vector<1x16xf32>
    %175 = vector.extract_strided_slice %166 {offsets = [0, 0], sizes = [8, 32], strides = [1, 1]} : vector<16x32xf32> to vector<8x32xf32>
    %176 = vector.extract_strided_slice %170 {offsets = [0, 0], sizes = [8, 16], strides = [1, 1]} : vector<8x32xf32> to vector<8x16xf32>
    %177 = vector.extract_strided_slice %171 {offsets = [0, 0], sizes = [16, 16], strides = [1, 1]} : vector<16x32xf32> to vector<16x16xf32>
    %178 = vector.extract_strided_slice %172 {offsets = [0, 0], sizes = [16, 16], strides = [1, 1]} : vector<16x32xf32> to vector<16x16xf32>
    %cst_88 = arith.constant dense<0.000000e+00> : vector<8x16xf32>
    %179 = tpu.matmul %176, %177, %cst_88 {dimension_numbers = #tpu.dot_dimension_numbers<[1], [1], [0], [0], [0, 0, 1, 0], [], []>} : vector<8x16xf32>, vector<16x16xf32>, vector<8x16xf32> -> vector<8x16xf32>
    %180 = vector.broadcast %174 : vector<1x16xf32> to vector<8x16xf32>
    %181 = arith.addf %179, %180 : vector<8x16xf32>
    %cst_89 = arith.constant dense<0xFF800000> : vector<8xf32>
    %182 = vector.multi_reduction <maximumf>, %181, %cst_89 [1] : vector<8x16xf32> to vector<8xf32>
    %183 = vector.shape_cast %182 : vector<8xf32> to vector<8x1xf32>
    %184 = vector.broadcast %183 : vector<8x1xf32> to vector<8x16xf32>
    %185 = arith.subf %181, %184 : vector<8x16xf32>
    %186 = math.exp %185 : vector<8x16xf32>
    %cst_90 = arith.constant dense<0.000000e+00> : vector<8xf32>
    %187 = vector.multi_reduction <add>, %186, %cst_90 [1] : vector<8x16xf32> to vector<8xf32>
    %188 = vector.shape_cast %187 : vector<8xf32> to vector<8x1xf32>
    %189 = tpu.reciprocal %188 {approx = true} : vector<8x1xf32> -> vector<8x1xf32>
    %190 = vector.broadcast %189 : vector<8x1xf32> to vector<8x16xf32>
    %191 = arith.mulf %186, %190 : vector<8x16xf32>
    %cst_91 = arith.constant dense<0.000000e+00> : vector<8x16xf32>
    %192 = tpu.matmul %191, %178, %cst_91 {dimension_numbers = #tpu.dot_dimension_numbers<[1], [0], [0], [1], [0, 0, 1, 1], [], []>} : vector<8x16xf32>, vector<16x16xf32>, vector<8x16xf32> -> vector<8x16xf32>
    %193 = vector.extract_strided_slice %161 {offsets = [0, 0], sizes = [16, 32], strides = [1, 1]} : vector<32x32xf32> to vector<16x32xf32>
    %cst_92 = arith.constant dense<0.000000e+00> : vector<8x32xf32>
    %194 = tpu.matmul %192, %193, %cst_92 {dimension_numbers = #tpu.dot_dimension_numbers<[1], [0], [0], [1], [0, 0, 1, 1], [], []>} : vector<8x16xf32>, vector<16x32xf32>, vector<8x32xf32> -> vector<8x32xf32>
    %195 = arith.addf %175, %194 : vector<8x32xf32>
    %196 = vector.extract_strided_slice %170 {offsets = [0, 16], sizes = [8, 16], strides = [1, 1]} : vector<8x32xf32> to vector<8x16xf32>
    %197 = vector.extract_strided_slice %171 {offsets = [0, 16], sizes = [16, 16], strides = [1, 1]} : vector<16x32xf32> to vector<16x16xf32>
    %198 = vector.extract_strided_slice %172 {offsets = [0, 16], sizes = [16, 16], strides = [1, 1]} : vector<16x32xf32> to vector<16x16xf32>
    %cst_93 = arith.constant dense<0.000000e+00> : vector<8x16xf32>
    %199 = tpu.matmul %196, %197, %cst_93 {dimension_numbers = #tpu.dot_dimension_numbers<[1], [1], [0], [0], [0, 0, 1, 0], [], []>} : vector<8x16xf32>, vector<16x16xf32>, vector<8x16xf32> -> vector<8x16xf32>
    %200 = vector.broadcast %174 : vector<1x16xf32> to vector<8x16xf32>
    %201 = arith.addf %199, %200 : vector<8x16xf32>
    %cst_94 = arith.constant dense<0xFF800000> : vector<8xf32>
    %202 = vector.multi_reduction <maximumf>, %201, %cst_94 [1] : vector<8x16xf32> to vector<8xf32>
    %203 = vector.shape_cast %202 : vector<8xf32> to vector<8x1xf32>
    %204 = vector.broadcast %203 : vector<8x1xf32> to vector<8x16xf32>
    %205 = arith.subf %201, %204 : vector<8x16xf32>
    %206 = math.exp %205 : vector<8x16xf32>
    %cst_95 = arith.constant dense<0.000000e+00> : vector<8xf32>
    %207 = vector.multi_reduction <add>, %206, %cst_95 [1] : vector<8x16xf32> to vector<8xf32>
    %208 = vector.shape_cast %207 : vector<8xf32> to vector<8x1xf32>
    %209 = tpu.reciprocal %208 {approx = true} : vector<8x1xf32> -> vector<8x1xf32>
    %210 = vector.broadcast %209 : vector<8x1xf32> to vector<8x16xf32>
    %211 = arith.mulf %206, %210 : vector<8x16xf32>
    %cst_96 = arith.constant dense<0.000000e+00> : vector<8x16xf32>
    %212 = tpu.matmul %211, %198, %cst_96 {dimension_numbers = #tpu.dot_dimension_numbers<[1], [0], [0], [1], [0, 0, 1, 1], [], []>} : vector<8x16xf32>, vector<16x16xf32>, vector<8x16xf32> -> vector<8x16xf32>
    %213 = vector.extract_strided_slice %161 {offsets = [16, 0], sizes = [16, 32], strides = [1, 1]} : vector<32x32xf32> to vector<16x32xf32>
    %cst_97 = arith.constant dense<0.000000e+00> : vector<8x32xf32>
    %214 = tpu.matmul %212, %213, %cst_97 {dimension_numbers = #tpu.dot_dimension_numbers<[1], [0], [0], [1], [0, 0, 1, 1], [], []>} : vector<8x16xf32>, vector<16x32xf32>, vector<8x32xf32> -> vector<8x32xf32>
    %215 = arith.addf %195, %214 : vector<8x32xf32>
    %cst_98 = arith.constant dense<0.000000e+00> : vector<8xf32>
    %216 = vector.multi_reduction <add>, %215, %cst_98 [1] : vector<8x32xf32> to vector<8xf32>
    %217 = vector.shape_cast %216 : vector<8xf32> to vector<8x1xf32>
    %cst_99 = arith.constant 3.200000e+01 : f32
    %218 = vector.broadcast %cst_99 : f32 to vector<8x1xf32>
    %219 = arith.divf %217, %218 : vector<8x1xf32>
    %220 = vector.broadcast %219 : vector<8x1xf32> to vector<8x32xf32>
    %221 = arith.subf %215, %220 : vector<8x32xf32>
    %222 = arith.mulf %221, %221 : vector<8x32xf32>
    %cst_100 = arith.constant dense<0.000000e+00> : vector<8xf32>
    %223 = vector.multi_reduction <add>, %222, %cst_100 [1] : vector<8x32xf32> to vector<8xf32>
    %224 = vector.shape_cast %223 : vector<8xf32> to vector<8x1xf32>
    %cst_101 = arith.constant 3.200000e+01 : f32
    %225 = vector.broadcast %cst_101 : f32 to vector<8x1xf32>
    %226 = arith.divf %224, %225 : vector<8x1xf32>
    %227 = vector.broadcast %219 : vector<8x1xf32> to vector<8x32xf32>
    %228 = arith.subf %215, %227 : vector<8x32xf32>
    %cst_102 = arith.constant 9.99999997E-7 : f32
    %229 = vector.broadcast %cst_102 : f32 to vector<8x1xf32>
    %230 = arith.addf %226, %229 : vector<8x1xf32>
    %231 = math.rsqrt %230 : vector<8x1xf32>
    %232 = vector.broadcast %231 : vector<8x1xf32> to vector<8x32xf32>
    %233 = arith.mulf %228, %232 : vector<8x32xf32>
    %234 = vector.broadcast %163 : vector<1x32xf32> to vector<8x32xf32>
    %235 = arith.mulf %233, %234 : vector<8x32xf32>
    %236 = vector.broadcast %165 : vector<1x32xf32> to vector<8x32xf32>
    %237 = arith.addf %235, %236 : vector<8x32xf32>
    %c0_103 = arith.constant 0 : index
    %c0_104 = arith.constant 0 : index
    %238 = vector.load %arg23[%c0_103, %c0_104] : memref<16x32xf32, #tpu.memory_space<vmem>>, vector<8x32xf32>
    tpu.vector_store %arg23[%c0_103, %c0_104], %237 {strides = array<i32>} : memref<16x32xf32, #tpu.memory_space<vmem>>, vector<8x32xf32>,
    %239 = vector.extract_strided_slice %167 {offsets = [8, 0], sizes = [8, 32], strides = [1, 1]} : vector<16x32xf32> to vector<8x32xf32>
    %240 = vector.extract_strided_slice %168 {offsets = [16, 0], sizes = [16, 32], strides = [1, 1]} : vector<32x32xf32> to vector<16x32xf32>
    %241 = vector.extract_strided_slice %169 {offsets = [16, 0], sizes = [16, 32], strides = [1, 1]} : vector<32x32xf32> to vector<16x32xf32>
    %c1_105 = arith.constant 1 : index
    %c0_106 = arith.constant 0 : index
    %c0_107 = arith.constant 0 : index
    %242 = vector.load %arg4[%c1_105, %c0_106, %c0_107] : memref<2x1x16xf32, #tpu.memory_space<vmem>>, vector<1x1x16xf32>
    %243 = vector.shape_cast %242 : vector<1x1x16xf32> to vector<1x16xf32>
    %244 = vector.extract_strided_slice %166 {offsets = [8, 0], sizes = [8, 32], strides = [1, 1]} : vector<16x32xf32> to vector<8x32xf32>
    %245 = vector.extract_strided_slice %239 {offsets = [0, 0], sizes = [8, 16], strides = [1, 1]} : vector<8x32xf32> to vector<8x16xf32>
    %246 = vector.extract_strided_slice %240 {offsets = [0, 0], sizes = [16, 16], strides = [1, 1]} : vector<16x32xf32> to vector<16x16xf32>
    %247 = vector.extract_strided_slice %241 {offsets = [0, 0], sizes = [16, 16], strides = [1, 1]} : vector<16x32xf32> to vector<16x16xf32>
    %cst_108 = arith.constant dense<0.000000e+00> : vector<8x16xf32>
    %248 = tpu.matmul %245, %246, %cst_108 {dimension_numbers = #tpu.dot_dimension_numbers<[1], [1], [0], [0], [0, 0, 1, 0], [], []>} : vector<8x16xf32>, vector<16x16xf32>, vector<8x16xf32> -> vector<8x16xf32>
    %249 = vector.broadcast %243 : vector<1x16xf32> to vector<8x16xf32>
    %250 = arith.addf %248, %249 : vector<8x16xf32>
    %cst_109 = arith.constant dense<0xFF800000> : vector<8xf32>
    %251 = vector.multi_reduction <maximumf>, %250, %cst_109 [1] : vector<8x16xf32> to vector<8xf32>
    %252 = vector.shape_cast %251 : vector<8xf32> to vector<8x1xf32>
    %253 = vector.broadcast %252 : vector<8x1xf32> to vector<8x16xf32>
    %254 = arith.subf %250, %253 : vector<8x16xf32>
    %255 = math.exp %254 : vector<8x16xf32>
    %cst_110 = arith.constant dense<0.000000e+00> : vector<8xf32>
    %256 = vector.multi_reduction <add>, %255, %cst_110 [1] : vector<8x16xf32> to vector<8xf32>
    %257 = vector.shape_cast %256 : vector<8xf32> to vector<8x1xf32>
    %258 = tpu.reciprocal %257 {approx = true} : vector<8x1xf32> -> vector<8x1xf32>
    %259 = vector.broadcast %258 : vector<8x1xf32> to vector<8x16xf32>
    %260 = arith.mulf %255, %259 : vector<8x16xf32>
    %cst_111 = arith.constant dense<0.000000e+00> : vector<8x16xf32>
    %261 = tpu.matmul %260, %247, %cst_111 {dimension_numbers = #tpu.dot_dimension_numbers<[1], [0], [0], [1], [0, 0, 1, 1], [], []>} : vector<8x16xf32>, vector<16x16xf32>, vector<8x16xf32> -> vector<8x16xf32>
    %262 = vector.extract_strided_slice %161 {offsets = [0, 0], sizes = [16, 32], strides = [1, 1]} : vector<32x32xf32> to vector<16x32xf32>
    %cst_112 = arith.constant dense<0.000000e+00> : vector<8x32xf32>
    %263 = tpu.matmul %261, %262, %cst_112 {dimension_numbers = #tpu.dot_dimension_numbers<[1], [0], [0], [1], [0, 0, 1, 1], [], []>} : vector<8x16xf32>, vector<16x32xf32>, vector<8x32xf32> -> vector<8x32xf32>
    %264 = arith.addf %244, %263 : vector<8x32xf32>
    %265 = vector.extract_strided_slice %239 {offsets = [0, 16], sizes = [8, 16], strides = [1, 1]} : vector<8x32xf32> to vector<8x16xf32>
    %266 = vector.extract_strided_slice %240 {offsets = [0, 16], sizes = [16, 16], strides = [1, 1]} : vector<16x32xf32> to vector<16x16xf32>
    %267 = vector.extract_strided_slice %241 {offsets = [0, 16], sizes = [16, 16], strides = [1, 1]} : vector<16x32xf32> to vector<16x16xf32>
    %cst_113 = arith.constant dense<0.000000e+00> : vector<8x16xf32>
    %268 = tpu.matmul %265, %266, %cst_113 {dimension_numbers = #tpu.dot_dimension_numbers<[1], [1], [0], [0], [0, 0, 1, 0], [], []>} : vector<8x16xf32>, vector<16x16xf32>, vector<8x16xf32> -> vector<8x16xf32>
    %269 = vector.broadcast %243 : vector<1x16xf32> to vector<8x16xf32>
    %270 = arith.addf %268, %269 : vector<8x16xf32>
    %cst_114 = arith.constant dense<0xFF800000> : vector<8xf32>
    %271 = vector.multi_reduction <maximumf>, %270, %cst_114 [1] : vector<8x16xf32> to vector<8xf32>
    %272 = vector.shape_cast %271 : vector<8xf32> to vector<8x1xf32>
    %273 = vector.broadcast %272 : vector<8x1xf32> to vector<8x16xf32>
    %274 = arith.subf %270, %273 : vector<8x16xf32>
    %275 = math.exp %274 : vector<8x16xf32>
    %cst_115 = arith.constant dense<0.000000e+00> : vector<8xf32>
    %276 = vector.multi_reduction <add>, %275, %cst_115 [1] : vector<8x16xf32> to vector<8xf32>
    %277 = vector.shape_cast %276 : vector<8xf32> to vector<8x1xf32>
    %278 = tpu.reciprocal %277 {approx = true} : vector<8x1xf32> -> vector<8x1xf32>
    %279 = vector.broadcast %278 : vector<8x1xf32> to vector<8x16xf32>
    %280 = arith.mulf %275, %279 : vector<8x16xf32>
    %cst_116 = arith.constant dense<0.000000e+00> : vector<8x16xf32>
    %281 = tpu.matmul %280, %267, %cst_116 {dimension_numbers = #tpu.dot_dimension_numbers<[1], [0], [0], [1], [0, 0, 1, 1], [], []>} : vector<8x16xf32>, vector<16x16xf32>, vector<8x16xf32> -> vector<8x16xf32>
    %282 = vector.extract_strided_slice %161 {offsets = [16, 0], sizes = [16, 32], strides = [1, 1]} : vector<32x32xf32> to vector<16x32xf32>
    %cst_117 = arith.constant dense<0.000000e+00> : vector<8x32xf32>
    %283 = tpu.matmul %281, %282, %cst_117 {dimension_numbers = #tpu.dot_dimension_numbers<[1], [0], [0], [1], [0, 0, 1, 1], [], []>} : vector<8x16xf32>, vector<16x32xf32>, vector<8x32xf32> -> vector<8x32xf32>
    %284 = arith.addf %264, %283 : vector<8x32xf32>
    %cst_118 = arith.constant dense<0.000000e+00> : vector<8xf32>
    %285 = vector.multi_reduction <add>, %284, %cst_118 [1] : vector<8x32xf32> to vector<8xf32>
    %286 = vector.shape_cast %285 : vector<8xf32> to vector<8x1xf32>
    %cst_119 = arith.constant 3.200000e+01 : f32
    %287 = vector.broadcast %cst_119 : f32 to vector<8x1xf32>
    %288 = arith.divf %286, %287 : vector<8x1xf32>
    %289 = vector.broadcast %288 : vector<8x1xf32> to vector<8x32xf32>
    %290 = arith.subf %284, %289 : vector<8x32xf32>
    %291 = arith.mulf %290, %290 : vector<8x32xf32>
    %cst_120 = arith.constant dense<0.000000e+00> : vector<8xf32>
    %292 = vector.multi_reduction <add>, %291, %cst_120 [1] : vector<8x32xf32> to vector<8xf32>
    %293 = vector.shape_cast %292 : vector<8xf32> to vector<8x1xf32>
    %cst_121 = arith.constant 3.200000e+01 : f32
    %294 = vector.broadcast %cst_121 : f32 to vector<8x1xf32>
    %295 = arith.divf %293, %294 : vector<8x1xf32>
    %296 = vector.broadcast %288 : vector<8x1xf32> to vector<8x32xf32>
    %297 = arith.subf %284, %296 : vector<8x32xf32>
    %cst_122 = arith.constant 9.99999997E-7 : f32
    %298 = vector.broadcast %cst_122 : f32 to vector<8x1xf32>
    %299 = arith.addf %295, %298 : vector<8x1xf32>
    %300 = math.rsqrt %299 : vector<8x1xf32>
    %301 = vector.broadcast %300 : vector<8x1xf32> to vector<8x32xf32>
    %302 = arith.mulf %297, %301 : vector<8x32xf32>
    %303 = vector.broadcast %163 : vector<1x32xf32> to vector<8x32xf32>
    %304 = arith.mulf %302, %303 : vector<8x32xf32>
    %305 = vector.broadcast %165 : vector<1x32xf32> to vector<8x32xf32>
    %306 = arith.addf %304, %305 : vector<8x32xf32>
    %c8_123 = arith.constant 8 : index
    %c0_124 = arith.constant 0 : index
    %307 = vector.load %arg23[%c8_123, %c0_124] : memref<16x32xf32, #tpu.memory_space<vmem>>, vector<8x32xf32>
    tpu.vector_store %arg23[%c8_123, %c0_124], %306 {strides = array<i32>} : memref<16x32xf32, #tpu.memory_space<vmem>>, vector<8x32xf32>,
    %c0_125 = arith.constant 0 : index
    %c0_126 = arith.constant 0 : index
    %308 = vector.load %arg23[%c0_125, %c0_126] : memref<16x32xf32, #tpu.memory_space<vmem>>, vector<16x32xf32>
    %c0_127 = arith.constant 0 : index
    %c0_128 = arith.constant 0 : index
    %c0_129 = arith.constant 0 : index
    %309 = vector.load %arg17[%c0_127, %c0_128, %c0_129] : memref<1x32x64xf32, #tpu.memory_space<vmem>>, vector<1x32x64xf32>
    %310 = vector.shape_cast %309 : vector<1x32x64xf32> to vector<32x64xf32>
    %cst_130 = arith.constant dense<0.000000e+00> : vector<16x64xf32>
    %311 = tpu.matmul %308, %310, %cst_130 {dimension_numbers = #tpu.dot_dimension_numbers<[1], [0], [0], [1], [0, 0, 1, 1], [], []>} : vector<16x32xf32>, vector<32x64xf32>, vector<16x64xf32> -> vector<16x64xf32>
    %c0_131 = arith.constant 0 : index
    %c0_132 = arith.constant 0 : index
    %c0_133 = arith.constant 0 : index
    %312 = vector.load %arg18[%c0_131, %c0_132, %c0_133] : memref<1x1x64xf32, #tpu.memory_space<vmem>>, vector<1x1x64xf32>
    %313 = vector.shape_cast %312 : vector<1x1x64xf32> to vector<1x64xf32>
    %314 = vector.broadcast %313 : vector<1x64xf32> to vector<16x64xf32>
    %315 = arith.addf %311, %314 : vector<16x64xf32>
    %cst_134 = arith.constant 0.000000e+00 : f32
    %316 = vector.broadcast %cst_134 : f32 to vector<16x64xf32>
    %317 = arith.maximumf %315, %316 : vector<16x64xf32>
    %c0_135 = arith.constant 0 : index
    %c0_136 = arith.constant 0 : index
    %c0_137 = arith.constant 0 : index
    %318 = vector.load %arg19[%c0_135, %c0_136, %c0_137] : memref<1x64x32xf32, #tpu.memory_space<vmem>>, vector<1x64x32xf32>
    %319 = vector.shape_cast %318 : vector<1x64x32xf32> to vector<64x32xf32>
    %cst_138 = arith.constant dense<0.000000e+00> : vector<16x32xf32>
    %320 = tpu.matmul %317, %319, %cst_138 {dimension_numbers = #tpu.dot_dimension_numbers<[1], [0], [0], [1], [0, 0, 1, 1], [], []>} : vector<16x64xf32>, vector<64x32xf32>, vector<16x32xf32> -> vector<16x32xf32>
    %c0_139 = arith.constant 0 : index
    %c0_140 = arith.constant 0 : index
    %c0_141 = arith.constant 0 : index
    %321 = vector.load %arg20[%c0_139, %c0_140, %c0_141] : memref<1x1x32xf32, #tpu.memory_space<vmem>>, vector<1x1x32xf32>
    %322 = vector.shape_cast %321 : vector<1x1x32xf32> to vector<1x32xf32>
    %323 = vector.broadcast %322 : vector<1x32xf32> to vector<16x32xf32>
    %324 = arith.addf %320, %323 : vector<16x32xf32>
    %325 = arith.addf %324, %308 : vector<16x32xf32>
    %c0_142 = arith.constant 0 : index
    %c0_143 = arith.constant 0 : index
    %c0_144 = arith.constant 0 : index
    %326 = vector.load %arg21[%c0_142, %c0_143, %c0_144] : memref<1x1x32xf32, #tpu.memory_space<vmem>>, vector<1x1x32xf32>
    %327 = vector.shape_cast %326 : vector<1x1x32xf32> to vector<1x32xf32>
    %c0_145 = arith.constant 0 : index
    %c0_146 = arith.constant 0 : index
    %c0_147 = arith.constant 0 : index
    %328 = vector.load %arg22[%c0_145, %c0_146, %c0_147] : memref<1x1x32xf32, #tpu.memory_space<vmem>>, vector<1x1x32xf32>
    %329 = vector.shape_cast %328 : vector<1x1x32xf32> to vector<1x32xf32>
    %cst_148 = arith.constant dense<0.000000e+00> : vector<16xf32>
    %330 = vector.multi_reduction <add>, %325, %cst_148 [1] : vector<16x32xf32> to vector<16xf32>
    %331 = vector.shape_cast %330 : vector<16xf32> to vector<16x1xf32>
    %cst_149 = arith.constant 3.200000e+01 : f32
    %332 = vector.broadcast %cst_149 : f32 to vector<16x1xf32>
    %333 = arith.divf %331, %332 : vector<16x1xf32>
    %334 = vector.broadcast %333 : vector<16x1xf32> to vector<16x32xf32>
    %335 = arith.subf %325, %334 : vector<16x32xf32>
    %336 = arith.mulf %335, %335 : vector<16x32xf32>
    %cst_150 = arith.constant dense<0.000000e+00> : vector<16xf32>
    %337 = vector.multi_reduction <add>, %336, %cst_150 [1] : vector<16x32xf32> to vector<16xf32>
    %338 = vector.shape_cast %337 : vector<16xf32> to vector<16x1xf32>
    %cst_151 = arith.constant 3.200000e+01 : f32
    %339 = vector.broadcast %cst_151 : f32 to vector<16x1xf32>
    %340 = arith.divf %338, %339 : vector<16x1xf32>
    %341 = vector.broadcast %333 : vector<16x1xf32> to vector<16x32xf32>
    %342 = arith.subf %325, %341 : vector<16x32xf32>
    %cst_152 = arith.constant 9.99999997E-7 : f32
    %343 = vector.broadcast %cst_152 : f32 to vector<16x1xf32>
    %344 = arith.addf %340, %343 : vector<16x1xf32>
    %345 = math.rsqrt %344 : vector<16x1xf32>
    %346 = vector.broadcast %345 : vector<16x1xf32> to vector<16x32xf32>
    %347 = arith.mulf %342, %346 : vector<16x32xf32>
    %348 = vector.broadcast %327 : vector<1x32xf32> to vector<16x32xf32>
    %349 = arith.mulf %347, %348 : vector<16x32xf32>
    %350 = vector.broadcast %329 : vector<1x32xf32> to vector<16x32xf32>
    %351 = arith.addf %349, %350 : vector<16x32xf32>
    %c0_153 = arith.constant 0 : index
    %c0_154 = arith.constant 0 : index
    %352 = vector.load %arg23[%c0_153, %c0_154] : memref<16x32xf32, #tpu.memory_space<vmem>>, vector<16x32xf32>
    tpu.vector_store %arg23[%c0_153, %c0_154], %351 {strides = array<i32>} : memref<16x32xf32, #tpu.memory_space<vmem>>, vector<16x32xf32>,
    return
  }
  func.func @transform_0(%arg0: i32) -> (i32, i32) {
    %c0_i32 = arith.constant 0 : i32
    %c0_i32_0 = arith.constant 0 : i32
    %c0_i32_1 = arith.constant 0 : i32
    return %c0_i32, %c0_i32_0 : i32, i32
  }
  func.func @transform_1(%arg0: i32) -> (i32, i32) {
    %c0_i32 = arith.constant 0 : i32
    %c0_i32_0 = arith.constant 0 : i32
    %c0_i32_1 = arith.constant 0 : i32
    return %c0_i32, %c0_i32_0 : i32, i32
  }
  func.func @transform_2(%arg0: i32) -> (i32, i32, i32) {
    %c0_i32 = arith.constant 0 : i32
    %c0_i32_0 = arith.constant 0 : i32
    %c0_i32_1 = arith.constant 0 : i32
    %c0_i32_2 = arith.constant 0 : i32
    return %c0_i32, %c0_i32_0, %c0_i32_1 : i32, i32, i32
  }
  func.func @transform_3(%arg0: i32) -> (i32, i32, i32) {
    %c0_i32 = arith.constant 0 : i32
    %c0_i32_0 = arith.constant 0 : i32
    %c0_i32_1 = arith.constant 0 : i32
    %c0_i32_2 = arith.constant 0 : i32
    return %c0_i32, %c0_i32_0, %c0_i32_1 : i32, i32, i32
  }
  func.func @transform_4(%arg0: i32) -> (i32, i32, i32) {
    %c0_i32 = arith.constant 0 : i32
    %c0_i32_0 = arith.constant 0 : i32
    %c0_i32_1 = arith.constant 0 : i32
    return %arg0, %c0_i32, %c0_i32_0 : i32, i32, i32
  }
  func.func @transform_5(%arg0: i32) -> (i32, i32, i32) {
    %c0_i32 = arith.constant 0 : i32
    %c0_i32_0 = arith.constant 0 : i32
    %c0_i32_1 = arith.constant 0 : i32
    return %arg0, %c0_i32, %c0_i32_0 : i32, i32, i32
  }
  func.func @transform_6(%arg0: i32) -> (i32, i32, i32) {
    %c0_i32 = arith.constant 0 : i32
    %c0_i32_0 = arith.constant 0 : i32
    %c0_i32_1 = arith.constant 0 : i32
    return %arg0, %c0_i32, %c0_i32_0 : i32, i32, i32
  }
  func.func @transform_7(%arg0: i32) -> (i32, i32, i32) {
    %c0_i32 = arith.constant 0 : i32
    %c0_i32_0 = arith.constant 0 : i32
    %c0_i32_1 = arith.constant 0 : i32
    return %arg0, %c0_i32, %c0_i32_0 : i32, i32, i32
  }
  func.func @transform_8(%arg0: i32) -> (i32, i32, i32) {
    %c0_i32 = arith.constant 0 : i32
    %c0_i32_0 = arith.constant 0 : i32
    %c0_i32_1 = arith.constant 0 : i32
    return %arg0, %c0_i32, %c0_i32_0 : i32, i32, i32
  }
  func.func @transform_9(%arg0: i32) -> (i32, i32, i32) {
    %c0_i32 = arith.constant 0 : i32
    %c0_i32_0 = arith.constant 0 : i32
    %c0_i32_1 = arith.constant 0 : i32
    return %arg0, %c0_i32, %c0_i32_0 : i32, i32, i32
  }
  func.func @transform_10(%arg0: i32) -> (i32, i32, i32) {
    %c0_i32 = arith.constant 0 : i32
    %c0_i32_0 = arith.constant 0 : i32
    %c0_i32_1 = arith.constant 0 : i32
    return %arg0, %c0_i32, %c0_i32_0 : i32, i32, i32
  }
  func.func @transform_11(%arg0: i32) -> (i32, i32, i32) {
    %c0_i32 = arith.constant 0 : i32
    %c0_i32_0 = arith.constant 0 : i32
    %c0_i32_1 = arith.constant 0 : i32
    return %arg0, %c0_i32, %c0_i32_0 : i32, i32, i32
  }
  func.func @transform_12(%arg0: i32) -> (i32, i32, i32) {
    %c0_i32 = arith.constant 0 : i32
    %c0_i32_0 = arith.constant 0 : i32
    %c0_i32_1 = arith.constant 0 : i32
    return %arg0, %c0_i32, %c0_i32_0 : i32, i32, i32
  }
  func.func @transform_13(%arg0: i32) -> (i32, i32, i32) {
    %c0_i32 = arith.constant 0 : i32
    %c0_i32_0 = arith.constant 0 : i32
    %c0_i32_1 = arith.constant 0 : i32
    return %arg0, %c0_i32, %c0_i32_0 : i32, i32, i32
  }
  func.func @transform_14(%arg0: i32) -> (i32, i32, i32) {
    %c0_i32 = arith.constant 0 : i32
    %c0_i32_0 = arith.constant 0 : i32
    %c0_i32_1 = arith.constant 0 : i32
    return %arg0, %c0_i32, %c0_i32_0 : i32, i32, i32
  }
  func.func @transform_15(%arg0: i32) -> (i32, i32, i32) {
    %c0_i32 = arith.constant 0 : i32
    %c0_i32_0 = arith.constant 0 : i32
    %c0_i32_1 = arith.constant 0 : i32
    return %arg0, %c0_i32, %c0_i32_0 : i32, i32, i32
  }
  func.func @transform_16(%arg0: i32) -> (i32, i32, i32) {
    %c0_i32 = arith.constant 0 : i32
    %c0_i32_0 = arith.constant 0 : i32
    %c0_i32_1 = arith.constant 0 : i32
    return %arg0, %c0_i32, %c0_i32_0 : i32, i32, i32
  }
  func.func @transform_17(%arg0: i32) -> (i32, i32, i32) {
    %c0_i32 = arith.constant 0 : i32
    %c0_i32_0 = arith.constant 0 : i32
    %c0_i32_1 = arith.constant 0 : i32
    return %arg0, %c0_i32, %c0_i32_0 : i32, i32, i32
  }
  func.func @transform_18(%arg0: i32) -> (i32, i32, i32) {
    %c0_i32 = arith.constant 0 : i32
    %c0_i32_0 = arith.constant 0 : i32
    %c0_i32_1 = arith.constant 0 : i32
    return %arg0, %c0_i32, %c0_i32_0 : i32, i32, i32
  }
  func.func @transform_19(%arg0: i32) -> (i32, i32, i32) {
    %c0_i32 = arith.constant 0 : i32
    %c0_i32_0 = arith.constant 0 : i32
    %c0_i32_1 = arith.constant 0 : i32
    return %arg0, %c0_i32, %c0_i32_0 : i32, i32, i32
  }
  func.func @transform_20(%arg0: i32) -> (i32, i32, i32) {
    %c0_i32 = arith.constant 0 : i32
    %c0_i32_0 = arith.constant 0 : i32
    %c0_i32_1 = arith.constant 0 : i32
    return %arg0, %c0_i32, %c0_i32_0 : i32, i32, i32
  }
  func.func @transform_21(%arg0: i32) -> (i32, i32, i32) {
    %c0_i32 = arith.constant 0 : i32
    %c0_i32_0 = arith.constant 0 : i32
    %c0_i32_1 = arith.constant 0 : i32
    return %arg0, %c0_i32, %c0_i32_0 : i32, i32, i32
  }
  func.func @transform_22(%arg0: i32) -> (i32, i32) {
    %c0_i32 = arith.constant 0 : i32
    %c0_i32_0 = arith.constant 0 : i32
    %c0_i32_1 = arith.constant 0 : i32
    return %c0_i32, %c0_i32_0 : i32, i32
  }
}

</mosaic_0001>

<llo_original>
// kernel: tpu_custom_call.1
$region0: #{tpu_custom_call.1}
  #allocation0 [shape = 'u32[]', space=smem, size = 0x4, offset = 0x4, fixed_abs, tag = 'smem constant byte address 0x4 - core index']
  #allocation1 [shape = 'u32[72,128]{1,0:T(1,128)}', space=vmem, size = 0x9000, scoped, tag = 'internal scratch']
  %s0 = inlined_call_operand.hbm [shape: f32[16,32], index: 0, kind: input, shape index: {}]
  %s1 = inlined_call_operand.hbm [shape: f32[32,32], index: 1, kind: input, shape index: {}]
  %s2 = inlined_call_operand.hbm [shape: f32[2,8,8], index: 2, kind: input, shape index: {}]
  %s3 = inlined_call_operand.vmem [shape: f32[2,1,16], index: 3, kind: input, shape index: {}]
  %s4 = inlined_call_operand.vmem [shape: f32[2,32,32], index: 4, kind: input, shape index: {}]
  %s5 = inlined_call_operand.vmem [shape: f32[2,32,32], index: 5, kind: input, shape index: {}]
  %s6 = inlined_call_operand.vmem [shape: f32[2,32,32], index: 6, kind: input, shape index: {}]
  %s7 = inlined_call_operand.hbm [shape: f32[2,32,32], index: 7, kind: input, shape index: {}]
  %s8 = inlined_call_operand.vmem [shape: f32[2,1,32], index: 8, kind: input, shape index: {}]
  %s9 = inlined_call_operand.vmem [shape: f32[2,1,32], index: 9, kind: input, shape index: {}]
  %s10 = inlined_call_operand.hbm [shape: f32[2,32,32], index: 10, kind: input, shape index: {}]
  %s11 = inlined_call_operand.hbm [shape: f32[2,32,32], index: 11, kind: input, shape index: {}]
  %s12 = inlined_call_operand.hbm [shape: f32[2,32,32], index: 12, kind: input, shape index: {}]
  %s13 = inlined_call_operand.hbm [shape: f32[2,32,32], index: 13, kind: input, shape index: {}]
  %s14 = inlined_call_operand.vmem [shape: f32[2,1,32], index: 14, kind: input, shape index: {}]
  %s15 = inlined_call_operand.vmem [shape: f32[2,1,32], index: 15, kind: input, shape index: {}]
  %s16 = inlined_call_operand.hbm [shape: f32[2,32,64], index: 16, kind: input, shape index: {}]
  %s17 = inlined_call_operand.vmem [shape: f32[2,1,64], index: 17, kind: input, shape index: {}]
  %s18 = inlined_call_operand.vmem [shape: f32[2,64,32], index: 18, kind: input, shape index: {}]
  %s19 = inlined_call_operand.vmem [shape: f32[2,1,32], index: 19, kind: input, shape index: {}]
  %s20 = inlined_call_operand.vmem [shape: f32[2,1,32], index: 20, kind: input, shape index: {}]
  %s21 = inlined_call_operand.vmem [shape: f32[2,1,32], index: 21, kind: input, shape index: {}]
  %s22 = inlined_call_operand.hbm [shape: f32[16,32], index: 22, kind: output, shape index: {}]
  %s23 = sld [smem:[#allocation0]]
  $region161: #{tpu_custom_call.1} parent=0
    _
  %s25 = ssub.s32 1, %s23
  %s26 = scalar_select 0, %s25, %s23
  $region1: #{tpu_custom_call.1} parent=0
    #allocation2 [shape = 'u8[8192]{0}', space=vmem, size = 0x2000, scoped, tag = 'input window, operand 0, single buffered']
    #allocation3 [shape = 's32[2]{0}', space=sflag, size = 0x8, scoped, tag = 'scoped memory for tpu_custom_call.1']
    #allocation4 [shape = 's32[2]{0}', space=sflag, size = 0x8, scoped, tag = 'scoped memory for tpu_custom_call.1']
    #allocation5 [shape = 'u8[16384]{0}', space=vmem, size = 0x4000, scoped, tag = 'input window, operand 1, single buffered']
    #allocation6 [shape = 's32[1]{0}', space=sflag, size = 0x4, scoped, tag = 'scoped memory for tpu_custom_call.1']
    #allocation7 [shape = 'u8[8192]{0}', space=vmem, size = 0x2000, scoped, tag = 'input window, operand 2, single buffered']
    #allocation8 [shape = 'u8[32768]{0}', space=vmem, size = 0x8000, scoped, tag = 'input window, operand 7']
    #allocation9 [shape = 's32[2]{0}', space=sflag, size = 0x8, scoped, tag = 'scoped memory for tpu_custom_call.1']
    #allocation10 [shape = 'u8[32768]{0}', space=vmem, size = 0x8000, scoped, tag = 'input window, operand 10']
    #allocation11 [shape = 'u8[32768]{0}', space=vmem, size = 0x8000, scoped, tag = 'input window, operand 11']
    #allocation12 [shape = 's32[2]{0}', space=sflag, size = 0x8, scoped, tag = 'scoped memory for tpu_custom_call.1']
    #allocation13 [shape = 'u8[32768]{0}', space=vmem, size = 0x8000, scoped, tag = 'input window, operand 12']
    #allocation14 [shape = 'u8[32768]{0}', space=vmem, size = 0x8000, scoped, tag = 'input window, operand 13']
    #allocation15 [shape = 's32[2]{0}', space=sflag, size = 0x8, scoped, tag = 'scoped memory for tpu_custom_call.1']
    #allocation16 [shape = 'u8[32768]{0}', space=vmem, size = 0x8000, scoped, tag = 'input window, operand 16']
    #allocation17 [shape = 'u8[8192]{0}', space=vmem, size = 0x2000, scoped, tag = 'output window, operand 0, single buffered']
    %27 = vsyncpa [#allocation3], 0
    %28 = vsyncpa [#allocation6], 0
    %29 = vsyncpa [#allocation9], 0
    %s30 = scalar_lea.sflag [#allocation9], 1
    %31 = vsyncpa %s30, 0
    %32 = vsyncpa [#allocation12], 0
    %s33 = scalar_lea.sflag [#allocation12], 1
    %34 = vsyncpa %s33, 0
    %35 = vsyncpa [#allocation15], 0
    %s36 = scalar_lea.sflag [#allocation15], 1
    %37 = vsyncpa %s36, 0
    %38 = vsyncpa [#allocation4], 0
    loop: start=0, step=1, limit=4
    $region2: #{tpu_custom_call.1} parent=1 // loop_pre_header
      _
    $region3: #{tpu_custom_call.1} parent=1 // loop_header
      %s40 = sphi 0, %s44
      %p41 = scmp.ge.s32.totalorder %s40, 4
      %s48 = sphi 0, %s48
      %s50 = sphi 0, %s48
      %s51 = sphi 0, %s50
      %s65 = sphi 0, %s51
      %s69 = sphi 0, %s69
      %s71 = sphi 0, %s69
      %s72 = sphi 0, %s71
      %s86 = sphi 0, %s72
      %s90 = sphi 0, %s90
      %s92 = sphi 0, %s90
      %s93 = sphi 0, %s92
      %s107 = sphi 0, %s93
      %s111 = sphi 0, %s111
      %s113 = sphi 0, %s111
      %s114 = sphi 0, %s113
      %s128 = sphi 0, %s114
      %s134 = sphi 0, %s136
      %s137 = sphi 0, %s134
      %s138 = sphi 0, %s137
      %s154 = sphi 0, %s138
      %s160 = sphi 0, %s162
      %s163 = sphi 0, %s160
      %s164 = sphi 0, %s163
      %s180 = sphi 0, %s164
      %s186 = sphi 0, %s188
      %s189 = sphi 0, %s186
      %s190 = sphi 0, %s189
      %s206 = sphi 0, %s190
      %s212 = sphi 0, %s214
      %s215 = sphi 0, %s212
      %s216 = sphi 0, %s215
      %s232 = sphi 0, %s216
      %s238 = sphi 0, %s240
      %s241 = sphi 0, %s238
      %s242 = sphi 0, %s241
      %s258 = sphi 0, %s242
      %s264 = sphi 0, %s266
      %s267 = sphi 0, %s264
      %s268 = sphi 0, %s267
      %s284 = sphi 0, %s268
      %s290 = sphi 0, %s292
      %s293 = sphi 0, %s290
      %s294 = sphi 0, %s293
      %s310 = sphi 0, %s294
      %s316 = sphi 0, %s318
      %s319 = sphi 0, %s316
      %s320 = sphi 0, %s319
      %s336 = sphi 0, %s320
      %s342 = sphi 0, %s344
      %s345 = sphi 0, %s342
      %s346 = sphi 0, %s345
      %s362 = sphi 0, %s346
      %s368 = sphi 0, %s370
      %s371 = sphi 0, %s368
      %s372 = sphi 0, %s371
      %s388 = sphi 0, %s372
      %s394 = sphi 0, %s396
      %s397 = sphi 0, %s394
      %s398 = sphi 0, %s397
      %s414 = sphi 0, %s398
      %s420 = sphi 0, %s422
      %s423 = sphi 0, %s420
      %s424 = sphi 0, %s423
      %s440 = sphi 0, %s424
      %s446 = sphi 0, %s448
      %s449 = sphi 0, %s446
      %s450 = sphi 0, %s449
      %s466 = sphi 0, %s450
      %s472 = sphi 0, %s474
      %s475 = sphi 0, %s472
      %s476 = sphi 0, %s475
      %s492 = sphi 0, %s476
      %s498 = sphi 0, %s500
      %s501 = sphi 0, %s498
      %s502 = sphi 0, %s501
      %s518 = sphi 0, %s502
      %s524 = sphi 0, %s526
      %s527 = sphi 0, %s524
      %s528 = sphi 0, %s527
      %s544 = sphi 0, %s528
      %s550 = sphi 0, %s552
      %s553 = sphi 0, %s550
      %s554 = sphi 0, %s553
      %s570 = sphi 0, %s554
      %s576 = sphi 0, %s578
      %s579 = sphi 0, %s576
      %s580 = sphi 0, %s579
      %s596 = sphi 0, %s580
      %s600 = sphi 0, %s600
      %s602 = sphi 0, %s600
      %s603 = sphi 0, %s602
      %s617 = sphi 0, %s603
    $region4: #{tpu_custom_call.1} parent=1 // loop_header_branch
      %43 = sbr.rel (%p41) target = $region8
    $region5: #{tpu_custom_call.1} parent=1 // loop_body
      %s45 = ssub.s32 %s40, 1
      %s46 = ssub.s32 %s40, 2
      %s47 = sadd.s32 %s40, 1
      %s49 = sadd.s32 %s48, 1
      %p52 = scmp.eq.s32.totalorder %s40, 1
      %p53 = scmp.ne.s32.totalorder %s48, %s50
      %p54 = scmp.eq.s32.totalorder %s40, 0
      %p55 = por %p53, %p54
      %p56 = scmp.ne.s32.totalorder %s48, %s50
      %p57 = scmp.eq.s32.totalorder %s45, 1
      %p58 = por %p56, %p57
      %p59 = scmp.ne.s32.totalorder %s50, %s51
      %p60 = scmp.eq.s32.totalorder %s45, 0
      %p61 = por %p59, %p60
      %p62 = scmp.ne.s32.totalorder %s50, %s51
      %p63 = scmp.eq.s32.totalorder %s46, 1
      %p64 = por %p62, %p63
      %p66 = scmp.ne.s32.totalorder %s51, %s65
      %p67 = scmp.eq.s32.totalorder %s46, 0
      %p68 = por %p66, %p67
      %s70 = sadd.s32 %s69, 1
      %p73 = scmp.eq.s32.totalorder %s40, 1
      %p74 = scmp.ne.s32.totalorder %s69, %s71
      %p75 = scmp.eq.s32.totalorder %s40, 0
      %p76 = por %p74, %p75
      %p77 = scmp.ne.s32.totalorder %s69, %s71
      %p78 = scmp.eq.s32.totalorder %s45, 1
      %p79 = por %p77, %p78
      %p80 = scmp.ne.s32.totalorder %s71, %s72
      %p81 = scmp.eq.s32.totalorder %s45, 0
      %p82 = por %p80, %p81
      %p83 = scmp.ne.s32.totalorder %s71, %s72
      %p84 = scmp.eq.s32.totalorder %s46, 1
      %p85 = por %p83, %p84
      %p87 = scmp.ne.s32.totalorder %s72, %s86
      %p88 = scmp.eq.s32.totalorder %s46, 0
      %p89 = por %p87, %p88
      %s91 = sadd.s32 %s90, 1
      %p94 = scmp.eq.s32.totalorder %s40, 1
      %p95 = scmp.ne.s32.totalorder %s90, %s92
      %p96 = scmp.eq.s32.totalorder %s40, 0
      %p97 = por %p95, %p96
      %p98 = scmp.ne.s32.totalorder %s90, %s92
      %p99 = scmp.eq.s32.totalorder %s45, 1
      %p100 = por %p98, %p99
      %p101 = scmp.ne.s32.totalorder %s92, %s93
      %p102 = scmp.eq.s32.totalorder %s45, 0
      %p103 = por %p101, %p102
      %p104 = scmp.ne.s32.totalorder %s92, %s93
      %p105 = scmp.eq.s32.totalorder %s46, 1
      %p106 = por %p104, %p105
      %p108 = scmp.ne.s32.totalorder %s93, %s107
      %p109 = scmp.eq.s32.totalorder %s46, 0
      %p110 = por %p108, %p109
      %s112 = sadd.s32 %s111, 1
      %p115 = scmp.eq.s32.totalorder %s40, 1
      %p116 = scmp.ne.s32.totalorder %s111, %s113
      %p117 = scmp.eq.s32.totalorder %s40, 0
      %p118 = por %p116, %p117
      %p119 = scmp.ne.s32.totalorder %s111, %s113
      %p120 = scmp.eq.s32.totalorder %s45, 1
      %p121 = por %p119, %p120
      %p122 = scmp.ne.s32.totalorder %s113, %s114
      %p123 = scmp.eq.s32.totalorder %s45, 0
      %p124 = por %p122, %p123
      %p125 = scmp.ne.s32.totalorder %s113, %s114
      %p126 = scmp.eq.s32.totalorder %s46, 1
      %p127 = por %p125, %p126
      %p129 = scmp.ne.s32.totalorder %s114, %s128
      %p130 = scmp.eq.s32.totalorder %s46, 0
      %p131 = por %p129, %p130
      %s132 = ssub.s32 %s40, %s47
      %p133 = scmp.eq.s32.totalorder %s132, 0
      %s135 = sadd.s32 %s134, 1
      %s136 = scalar_select %p133, %s134, %s135
      %p139 = pneg %p133
      %p140 = scmp.eq.s32.totalorder %s40, 1
      %p141 = por %p139, %p140
      %p142 = scmp.ne.s32.totalorder %s134, %s137
      %p143 = scmp.eq.s32.totalorder %s40, 0
      %p144 = por %p142, %p143
      %p145 = scmp.ne.s32.totalorder %s134, %s137
      %p146 = scmp.eq.s32.totalorder %s45, 1
      %p147 = por %p145, %p146
      %p148 = scmp.ne.s32.totalorder %s137, %s138
      %p149 = scmp.eq.s32.totalorder %s45, 0
      %p150 = por %p148, %p149
      %p151 = scmp.ne.s32.totalorder %s137, %s138
      %p152 = scmp.eq.s32.totalorder %s46, 1
      %p153 = por %p151, %p152
      %p155 = scmp.ne.s32.totalorder %s138, %s154
      %p156 = scmp.eq.s32.totalorder %s46, 0
      %p157 = por %p155, %p156
      %s158 = ssub.s32 %s40, %s47
      %p159 = scmp.eq.s32.totalorder %s158, 0
      %s161 = sadd.s32 %s160, 1
      %s162 = scalar_select %p159, %s160, %s161
      %p165 = pneg %p159
      %p166 = scmp.eq.s32.totalorder %s40, 1
      %p167 = por %p165, %p166
      %p168 = scmp.ne.s32.totalorder %s160, %s163
      %p169 = scmp.eq.s32.totalorder %s40, 0
      %p170 = por %p168, %p169
      %p171 = scmp.ne.s32.totalorder %s160, %s163
      %p172 = scmp.eq.s32.totalorder %s45, 1
      %p173 = por %p171, %p172
      %p174 = scmp.ne.s32.totalorder %s163, %s164
      %p175 = scmp.eq.s32.totalorder %s45, 0
      %p176 = por %p174, %p175
      %p177 = scmp.ne.s32.totalorder %s163, %s164
      %p178 = scmp.eq.s32.totalorder %s46, 1
      %p179 = por %p177, %p178
      %p181 = scmp.ne.s32.totalorder %s164, %s180
      %p182 = scmp.eq.s32.totalorder %s46, 0
      %p183 = por %p181, %p182
      %s184 = ssub.s32 %s40, %s47
      %p185 = scmp.eq.s32.totalorder %s184, 0
      %s187 = sadd.s32 %s186, 1
      %s188 = scalar_select %p185, %s186, %s187
      %p191 = pneg %p185
      %p192 = scmp.eq.s32.totalorder %s40, 1
      %p193 = por %p191, %p192
      %p194 = scmp.ne.s32.totalorder %s186, %s189
      %p195 = scmp.eq.s32.totalorder %s40, 0
      %p196 = por %p194, %p195
      %p197 = scmp.ne.s32.totalorder %s186, %s189
      %p198 = scmp.eq.s32.totalorder %s45, 1
      %p199 = por %p197, %p198
      %p200 = scmp.ne.s32.totalorder %s189, %s190
      %p201 = scmp.eq.s32.totalorder %s45, 0
      %p202 = por %p200, %p201
      %p203 = scmp.ne.s32.totalorder %s189, %s190
      %p204 = scmp.eq.s32.totalorder %s46, 1
      %p205 = por %p203, %p204
      %p207 = scmp.ne.s32.totalorder %s190, %s206
      %p208 = scmp.eq.s32.totalorder %s46, 0
      %p209 = por %p207, %p208
      %s210 = ssub.s32 %s40, %s47
      %p211 = scmp.eq.s32.totalorder %s210, 0
      %s213 = sadd.s32 %s212, 1
      %s214 = scalar_select %p211, %s212, %s213
      %p217 = pneg %p211
      %p218 = scmp.eq.s32.totalorder %s40, 1
      %p219 = por %p217, %p218
      %p220 = scmp.ne.s32.totalorder %s212, %s215
      %p221 = scmp.eq.s32.totalorder %s40, 0
      %p222 = por %p220, %p221
      %p223 = scmp.ne.s32.totalorder %s212, %s215
      %p224 = scmp.eq.s32.totalorder %s45, 1
      %p225 = por %p223, %p224
      %p226 = scmp.ne.s32.totalorder %s215, %s216
      %p227 = scmp.eq.s32.totalorder %s45, 0
      %p228 = por %p226, %p227
      %p229 = scmp.ne.s32.totalorder %s215, %s216
      %p230 = scmp.eq.s32.totalorder %s46, 1
      %p231 = por %p229, %p230
      %p233 = scmp.ne.s32.totalorder %s216, %s232
      %p234 = scmp.eq.s32.totalorder %s46, 0
      %p235 = por %p233, %p234
      %s236 = ssub.s32 %s40, %s47
      %p237 = scmp.eq.s32.totalorder %s236, 0
      %s239 = sadd.s32 %s238, 1
      %s240 = scalar_select %p237, %s238, %s239
      %p243 = pneg %p237
      %p244 = scmp.eq.s32.totalorder %s40, 1
      %p245 = por %p243, %p244
      %p246 = scmp.ne.s32.totalorder %s238, %s241
      %p247 = scmp.eq.s32.totalorder %s40, 0
      %p248 = por %p246, %p247
      %p249 = scmp.ne.s32.totalorder %s238, %s241
      %p250 = scmp.eq.s32.totalorder %s45, 1
      %p251 = por %p249, %p250
      %p252 = scmp.ne.s32.totalorder %s241, %s242
      %p253 = scmp.eq.s32.totalorder %s45, 0
      %p254 = por %p252, %p253
      %p255 = scmp.ne.s32.totalorder %s241, %s242
      %p256 = scmp.eq.s32.totalorder %s46, 1
      %p257 = por %p255, %p256
      %p259 = scmp.ne.s32.totalorder %s242, %s258
      %p260 = scmp.eq.s32.totalorder %s46, 0
      %p261 = por %p259, %p260
      %s262 = ssub.s32 %s40, %s47
      %p263 = scmp.eq.s32.totalorder %s262, 0
      %s265 = sadd.s32 %s264, 1
      %s266 = scalar_select %p263, %s264, %s265
      %p269 = pneg %p263
      %p270 = scmp.eq.s32.totalorder %s40, 1
      %p271 = por %p269, %p270
      %p272 = scmp.ne.s32.totalorder %s264, %s267
      %p273 = scmp.eq.s32.totalorder %s40, 0
      %p274 = por %p272, %p273
      %p275 = scmp.ne.s32.totalorder %s264, %s267
      %p276 = scmp.eq.s32.totalorder %s45, 1
      %p277 = por %p275, %p276
      %p278 = scmp.ne.s32.totalorder %s267, %s268
      %p279 = scmp.eq.s32.totalorder %s45, 0
      %p280 = por %p278, %p279
      %p281 = scmp.ne.s32.totalorder %s267, %s268
      %p282 = scmp.eq.s32.totalorder %s46, 1
      %p283 = por %p281, %p282
      %p285 = scmp.ne.s32.totalorder %s268, %s284
      %p286 = scmp.eq.s32.totalorder %s46, 0
      %p287 = por %p285, %p286
      %s288 = ssub.s32 %s40, %s47
      %p289 = scmp.eq.s32.totalorder %s288, 0
      %s291 = sadd.s32 %s290, 1
      %s292 = scalar_select %p289, %s290, %s291
      %p295 = pneg %p289
      %p296 = scmp.eq.s32.totalorder %s40, 1
      %p297 = por %p295, %p296
      %p298 = scmp.ne.s32.totalorder %s290, %s293
      %p299 = scmp.eq.s32.totalorder %s40, 0
      %p300 = por %p298, %p299
      %p301 = scmp.ne.s32.totalorder %s290, %s293
      %p302 = scmp.eq.s32.totalorder %s45, 1
      %p303 = por %p301, %p302
      %p304 = scmp.ne.s32.totalorder %s293, %s294
      %p305 = scmp.eq.s32.totalorder %s45, 0
      %p306 = por %p304, %p305
      %p307 = scmp.ne.s32.totalorder %s293, %s294
      %p308 = scmp.eq.s32.totalorder %s46, 1
      %p309 = por %p307, %p308
      %p311 = scmp.ne.s32.totalorder %s294, %s310
      %p312 = scmp.eq.s32.totalorder %s46, 0
      %p313 = por %p311, %p312
      %s314 = ssub.s32 %s40, %s47
      %p315 = scmp.eq.s32.totalorder %s314, 0
      %s317 = sadd.s32 %s316, 1
      %s318 = scalar_select %p315, %s316, %s317
      %p321 = pneg %p315
      %p322 = scmp.eq.s32.totalorder %s40, 1
      %p323 = por %p321, %p322
      %p324 = scmp.ne.s32.totalorder %s316, %s319
      %p325 = scmp.eq.s32.totalorder %s40, 0
      %p326 = por %p324, %p325
      %p327 = scmp.ne.s32.totalorder %s316, %s319
      %p328 = scmp.eq.s32.totalorder %s45, 1
      %p329 = por %p327, %p328
      %p330 = scmp.ne.s32.totalorder %s319, %s320
      %p331 = scmp.eq.s32.totalorder %s45, 0
      %p332 = por %p330, %p331
      %p333 = scmp.ne.s32.totalorder %s319, %s320
      %p334 = scmp.eq.s32.totalorder %s46, 1
      %p335 = por %p333, %p334
      %p337 = scmp.ne.s32.totalorder %s320, %s336
      %p338 = scmp.eq.s32.totalorder %s46, 0
      %p339 = por %p337, %p338
      %s340 = ssub.s32 %s40, %s47
      %p341 = scmp.eq.s32.totalorder %s340, 0
      %s343 = sadd.s32 %s342, 1
      %s344 = scalar_select %p341, %s342, %s343
      %p347 = pneg %p341
      %p348 = scmp.eq.s32.totalorder %s40, 1
      %p349 = por %p347, %p348
      %p350 = scmp.ne.s32.totalorder %s342, %s345
      %p351 = scmp.eq.s32.totalorder %s40, 0
      %p352 = por %p350, %p351
      %p353 = scmp.ne.s32.totalorder %s342, %s345
      %p354 = scmp.eq.s32.totalorder %s45, 1
      %p355 = por %p353, %p354
      %p356 = scmp.ne.s32.totalorder %s345, %s346
      %p357 = scmp.eq.s32.totalorder %s45, 0
      %p358 = por %p356, %p357
      %p359 = scmp.ne.s32.totalorder %s345, %s346
      %p360 = scmp.eq.s32.totalorder %s46, 1
      %p361 = por %p359, %p360
      %p363 = scmp.ne.s32.totalorder %s346, %s362
      %p364 = scmp.eq.s32.totalorder %s46, 0
      %p365 = por %p363, %p364
      %s366 = ssub.s32 %s40, %s47
      %p367 = scmp.eq.s32.totalorder %s366, 0
      %s369 = sadd.s32 %s368, 1
      %s370 = scalar_select %p367, %s368, %s369
      %p373 = pneg %p367
      %p374 = scmp.eq.s32.totalorder %s40, 1
      %p375 = por %p373, %p374
      %p376 = scmp.ne.s32.totalorder %s368, %s371
      %p377 = scmp.eq.s32.totalorder %s40, 0
      %p378 = por %p376, %p377
      %p379 = scmp.ne.s32.totalorder %s368, %s371
      %p380 = scmp.eq.s32.totalorder %s45, 1
      %p381 = por %p379, %p380
      %p382 = scmp.ne.s32.totalorder %s371, %s372
      %p383 = scmp.eq.s32.totalorder %s45, 0
      %p384 = por %p382, %p383
      %p385 = scmp.ne.s32.totalorder %s371, %s372
      %p386 = scmp.eq.s32.totalorder %s46, 1
      %p387 = por %p385, %p386
      %p389 = scmp.ne.s32.totalorder %s372, %s388
      %p390 = scmp.eq.s32.totalorder %s46, 0
      %p391 = por %p389, %p390
      %s392 = ssub.s32 %s40, %s47
      %p393 = scmp.eq.s32.totalorder %s392, 0
      %s395 = sadd.s32 %s394, 1
      %s396 = scalar_select %p393, %s394, %s395
      %p399 = pneg %p393
      %p400 = scmp.eq.s32.totalorder %s40, 1
      %p401 = por %p399, %p400
      %p402 = scmp.ne.s32.totalorder %s394, %s397
      %p403 = scmp.eq.s32.totalorder %s40, 0
      %p404 = por %p402, %p403
      %p405 = scmp.ne.s32.totalorder %s394, %s397
      %p406 = scmp.eq.s32.totalorder %s45, 1
      %p407 = por %p405, %p406
      %p408 = scmp.ne.s32.totalorder %s397, %s398
      %p409 = scmp.eq.s32.totalorder %s45, 0
      %p410 = por %p408, %p409
      %p411 = scmp.ne.s32.totalorder %s397, %s398
      %p412 = scmp.eq.s32.totalorder %s46, 1
      %p413 = por %p411, %p412
      %p415 = scmp.ne.s32.totalorder %s398, %s414
      %p416 = scmp.eq.s32.totalorder %s46, 0
      %p417 = por %p415, %p416
      %s418 = ssub.s32 %s40, %s47
      %p419 = scmp.eq.s32.totalorder %s418, 0
      %s421 = sadd.s32 %s420, 1
      %s422 = scalar_select %p419, %s420, %s421
      %p425 = pneg %p419
      %p426 = scmp.eq.s32.totalorder %s40, 1
      %p427 = por %p425, %p426
      %p428 = scmp.ne.s32.totalorder %s420, %s423
      %p429 = scmp.eq.s32.totalorder %s40, 0
      %p430 = por %p428, %p429
      %p431 = scmp.ne.s32.totalorder %s420, %s423
      %p432 = scmp.eq.s32.totalorder %s45, 1
      %p433 = por %p431, %p432
      %p434 = scmp.ne.s32.totalorder %s423, %s424
      %p435 = scmp.eq.s32.totalorder %s45, 0
      %p436 = por %p434, %p435
      %p437 = scmp.ne.s32.totalorder %s423, %s424
      %p438 = scmp.eq.s32.totalorder %s46, 1
      %p439 = por %p437, %p438
      %p441 = scmp.ne.s32.totalorder %s424, %s440
      %p442 = scmp.eq.s32.totalorder %s46, 0
      %p443 = por %p441, %p442
      %s444 = ssub.s32 %s40, %s47
      %p445 = scmp.eq.s32.totalorder %s444, 0
      %s447 = sadd.s32 %s446, 1
      %s448 = scalar_select %p445, %s446, %s447
      %p451 = pneg %p445
      %p452 = scmp.eq.s32.totalorder %s40, 1
      %p453 = por %p451, %p452
      %p454 = scmp.ne.s32.totalorder %s446, %s449
      %p455 = scmp.eq.s32.totalorder %s40, 0
      %p456 = por %p454, %p455
      %p457 = scmp.ne.s32.totalorder %s446, %s449
      %p458 = scmp.eq.s32.totalorder %s45, 1
      %p459 = por %p457, %p458
      %p460 = scmp.ne.s32.totalorder %s449, %s450
      %p461 = scmp.eq.s32.totalorder %s45, 0
      %p462 = por %p460, %p461
      %p463 = scmp.ne.s32.totalorder %s449, %s450
      %p464 = scmp.eq.s32.totalorder %s46, 1
      %p465 = por %p463, %p464
      %p467 = scmp.ne.s32.totalorder %s450, %s466
      %p468 = scmp.eq.s32.totalorder %s46, 0
      %p469 = por %p467, %p468
      %s470 = ssub.s32 %s40, %s47
      %p471 = scmp.eq.s32.totalorder %s470, 0
      %s473 = sadd.s32 %s472, 1
      %s474 = scalar_select %p471, %s472, %s473
      %p477 = pneg %p471
      %p478 = scmp.eq.s32.totalorder %s40, 1
      %p479 = por %p477, %p478
      %p480 = scmp.ne.s32.totalorder %s472, %s475
      %p481 = scmp.eq.s32.totalorder %s40, 0
      %p482 = por %p480, %p481
      %p483 = scmp.ne.s32.totalorder %s472, %s475
      %p484 = scmp.eq.s32.totalorder %s45, 1
      %p485 = por %p483, %p484
      %p486 = scmp.ne.s32.totalorder %s475, %s476
      %p487 = scmp.eq.s32.totalorder %s45, 0
      %p488 = por %p486, %p487
      %p489 = scmp.ne.s32.totalorder %s475, %s476
      %p490 = scmp.eq.s32.totalorder %s46, 1
      %p491 = por %p489, %p490
      %p493 = scmp.ne.s32.totalorder %s476, %s492
      %p494 = scmp.eq.s32.totalorder %s46, 0
      %p495 = por %p493, %p494
      %s496 = ssub.s32 %s40, %s47
      %p497 = scmp.eq.s32.totalorder %s496, 0
      %s499 = sadd.s32 %s498, 1
      %s500 = scalar_select %p497, %s498, %s499
      %p503 = pneg %p497
      %p504 = scmp.eq.s32.totalorder %s40, 1
      %p505 = por %p503, %p504
      %p506 = scmp.ne.s32.totalorder %s498, %s501
      %p507 = scmp.eq.s32.totalorder %s40, 0
      %p508 = por %p506, %p507
      %p509 = scmp.ne.s32.totalorder %s498, %s501
      %p510 = scmp.eq.s32.totalorder %s45, 1
      %p511 = por %p509, %p510
      %p512 = scmp.ne.s32.totalorder %s501, %s502
      %p513 = scmp.eq.s32.totalorder %s45, 0
      %p514 = por %p512, %p513
      %p515 = scmp.ne.s32.totalorder %s501, %s502
      %p516 = scmp.eq.s32.totalorder %s46, 1
      %p517 = por %p515, %p516
      %p519 = scmp.ne.s32.totalorder %s502, %s518
      %p520 = scmp.eq.s32.totalorder %s46, 0
      %p521 = por %p519, %p520
      %s522 = ssub.s32 %s40, %s47
      %p523 = scmp.eq.s32.totalorder %s522, 0
      %s525 = sadd.s32 %s524, 1
      %s526 = scalar_select %p523, %s524, %s525
      %p529 = pneg %p523
      %p530 = scmp.eq.s32.totalorder %s40, 1
      %p531 = por %p529, %p530
      %p532 = scmp.ne.s32.totalorder %s524, %s527
      %p533 = scmp.eq.s32.totalorder %s40, 0
      %p534 = por %p532, %p533
      %p535 = scmp.ne.s32.totalorder %s524, %s527
      %p536 = scmp.eq.s32.totalorder %s45, 1
      %p537 = por %p535, %p536
      %p538 = scmp.ne.s32.totalorder %s527, %s528
      %p539 = scmp.eq.s32.totalorder %s45, 0
      %p540 = por %p538, %p539
      %p541 = scmp.ne.s32.totalorder %s527, %s528
      %p542 = scmp.eq.s32.totalorder %s46, 1
      %p543 = por %p541, %p542
      %p545 = scmp.ne.s32.totalorder %s528, %s544
      %p546 = scmp.eq.s32.totalorder %s46, 0
      %p547 = por %p545, %p546
      %s548 = ssub.s32 %s40, %s47
      %p549 = scmp.eq.s32.totalorder %s548, 0
      %s551 = sadd.s32 %s550, 1
      %s552 = scalar_select %p549, %s550, %s551
      %p555 = pneg %p549
      %p556 = scmp.eq.s32.totalorder %s40, 1
      %p557 = por %p555, %p556
      %p558 = scmp.ne.s32.totalorder %s550, %s553
      %p559 = scmp.eq.s32.totalorder %s40, 0
      %p560 = por %p558, %p559
      %p561 = scmp.ne.s32.totalorder %s550, %s553
      %p562 = scmp.eq.s32.totalorder %s45, 1
      %p563 = por %p561, %p562
      %p564 = scmp.ne.s32.totalorder %s553, %s554
      %p565 = scmp.eq.s32.totalorder %s45, 0
      %p566 = por %p564, %p565
      %p567 = scmp.ne.s32.totalorder %s553, %s554
      %p568 = scmp.eq.s32.totalorder %s46, 1
      %p569 = por %p567, %p568
      %p571 = scmp.ne.s32.totalorder %s554, %s570
      %p572 = scmp.eq.s32.totalorder %s46, 0
      %p573 = por %p571, %p572
      %s574 = ssub.s32 %s40, %s47
      %p575 = scmp.eq.s32.totalorder %s574, 0
      %s577 = sadd.s32 %s576, 1
      %s578 = scalar_select %p575, %s576, %s577
      %p581 = pneg %p575
      %p582 = scmp.eq.s32.totalorder %s40, 1
      %p583 = por %p581, %p582
      %p584 = scmp.ne.s32.totalorder %s576, %s579
      %p585 = scmp.eq.s32.totalorder %s40, 0
      %p586 = por %p584, %p585
      %p587 = scmp.ne.s32.totalorder %s576, %s579
      %p588 = scmp.eq.s32.totalorder %s45, 1
      %p589 = por %p587, %p588
      %p590 = scmp.ne.s32.totalorder %s579, %s580
      %p591 = scmp.eq.s32.totalorder %s45, 0
      %p592 = por %p590, %p591
      %p593 = scmp.ne.s32.totalorder %s579, %s580
      %p594 = scmp.eq.s32.totalorder %s46, 1
      %p595 = por %p593, %p594
      %p597 = scmp.ne.s32.totalorder %s580, %s596
      %p598 = scmp.eq.s32.totalorder %s46, 0
      %p599 = por %p597, %p598
      %s601 = sadd.s32 %s600, 1
      %p604 = scmp.eq.s32.totalorder %s40, 1
      %p605 = scmp.ne.s32.totalorder %s600, %s602
      %p606 = scmp.eq.s32.totalorder %s40, 0
      %p607 = por %p605, %p606
      %p608 = scmp.ne.s32.totalorder %s600, %s602
      %p609 = scmp.eq.s32.totalorder %s45, 1
      %p610 = por %p608, %p609
      %p611 = scmp.ne.s32.totalorder %s602, %s603
      %p612 = scmp.eq.s32.totalorder %s45, 0
      %p613 = por %p611, %p612
      %p614 = scmp.ne.s32.totalorder %s602, %s603
      %p615 = scmp.eq.s32.totalorder %s46, 1
      %p616 = por %p614, %p615
      %p618 = scmp.ne.s32.totalorder %s603, %s617
      %p619 = scmp.eq.s32.totalorder %s46, 0
      %p620 = por %p618, %p619
      %p621 = scmp.le.s32.totalorder 1, %s40
      %p622 = scmp.lt.s32.totalorder %s40, 3
      %p623 = pnand %p621, %p622
      %p624 = pneg %p623
      // Predicated region
      $region9: #{tpu_custom_call.1} parent=5 // pred_check
        _
      $region10: #{tpu_custom_call.1} parent=5 // pred_check_branch
        %626 = sbr.rel (%p623) target = $region12
      $region11: #{tpu_custom_call.1} parent=5 // pred_region
        %s627 = ssub.s32 %s40, 1
        // Predicated region
        $region13: #{tpu_custom_call.1} parent=11 // pred_check
          %p628 = pneg %p61
        $region14: #{tpu_custom_call.1} parent=11 // pred_check_branch
          %630 = sbr.rel (%p628) target = $region16
        $region15: #{tpu_custom_call.1} parent=11 // pred_region
          %632 = vsyncadd [#allocation3], 0
          %s633 = sshll.u32 %s0, 4
          %s634 = int_to_ptr.hbm [resolvable:$true] %s633
          %s635 = sshll.u32 [#allocation2], 4
          %s636 = int_to_ptr.vmem [resolvable:$true] %s635
          %641 = dma.hbm_to_vmem [thread:$0]  %s634, 256, %s636, [#allocation3], 128, 128, 8
        $region16: #{tpu_custom_call.1} parent=11 // pred_fallthru
          _
        // Predicated region
        $region17: #{tpu_custom_call.1} parent=11 // pred_check
          %p642 = pneg %p82
        $region18: #{tpu_custom_call.1} parent=11 // pred_check_branch
          %644 = sbr.rel (%p642) target = $region20
        $region19: #{tpu_custom_call.1} parent=11 // pred_region
          %646 = vsyncadd [#allocation6], 0
          %s647 = sshll.u32 %s1, 4
          %s648 = int_to_ptr.hbm [resolvable:$true] %s647
          %s649 = sshll.u32 [#allocation5], 4
          %s650 = int_to_ptr.vmem [resolvable:$true] %s649
          %655 = dma.hbm_to_vmem [thread:$0]  %s648, 512, %s650, [#allocation6], 128, 128, 8
        $region20: #{tpu_custom_call.1} parent=11 // pred_fallthru
          _
        // Predicated region
        $region21: #{tpu_custom_call.1} parent=11 // pred_check
          %p656 = pneg %p103
        $region22: #{tpu_custom_call.1} parent=11 // pred_check_branch
          %658 = sbr.rel (%p656) target = $region24
        $region23: #{tpu_custom_call.1} parent=11 // pred_region
          %660 = vsyncadd [#allocation6], 0
          %s661 = sshll.u32 %s2, 4
          %s662 = int_to_ptr.hbm [resolvable:$true] %s661
          %s663 = sshll.u32 [#allocation7], 4
          %s664 = int_to_ptr.vmem [resolvable:$true] %s663
          %669 = dma.hbm_to_vmem [thread:$0]  %s662, 256, %s664, [#allocation6], 128, 128, 8
        $region24: #{tpu_custom_call.1} parent=11 // pred_fallthru
          _
        // Predicated region
        $region25: #{tpu_custom_call.1} parent=11 // pred_check
          %p670 = pneg %p124
        $region26: #{tpu_custom_call.1} parent=11 // pred_check_branch
          %672 = sbr.rel (%p670) target = $region28
        $region27: #{tpu_custom_call.1} parent=11 // pred_region
          _
        $region28: #{tpu_custom_call.1} parent=11 // pred_fallthru
          _
      $region12: #{tpu_custom_call.1} parent=5 // pred_fallthru
        _
      %p673 = scmp.lt.s32.totalorder %s40, 2
      // Predicated region
      $region29: #{tpu_custom_call.1} parent=5 // pred_check
        %p674 = pneg %p673
      $region30: #{tpu_custom_call.1} parent=5 // pred_check_branch
        %676 = sbr.rel (%p674) target = $region32
      $region31: #{tpu_custom_call.1} parent=5 // pred_region
        // Predicated region
        $region33: #{tpu_custom_call.1} parent=31 // pred_check
          %p677 = pneg %p144
        $region34: #{tpu_custom_call.1} parent=31 // pred_check_branch
          %679 = sbr.rel (%p677) target = $region36
        $region35: #{tpu_custom_call.1} parent=31 // pred_region
          %p680 = scmp.lt.s32.totalorder %s40, 1
          %s681 = scalar_select %p680, %s40, 1
          %s682 = smul.addr %s681, 4
          %s683 = smul.addr %s682, 8
          %s684 = scalar_lea.vmem %s4, %s683
        $region36: #{tpu_custom_call.1} parent=31 // pred_fallthru
          _
        // Predicated region
        $region37: #{tpu_custom_call.1} parent=31 // pred_check
          %p685 = pneg %p170
        $region38: #{tpu_custom_call.1} parent=31 // pred_check_branch
          %687 = sbr.rel (%p685) target = $region40
        $region39: #{tpu_custom_call.1} parent=31 // pred_region
          %p688 = scmp.lt.s32.totalorder %s40, 1
          %s689 = scalar_select %p688, %s40, 1
          %s690 = smul.addr %s689, 4
          %s691 = smul.addr %s690, 8
          %s692 = scalar_lea.vmem %s5, %s691
        $region40: #{tpu_custom_call.1} parent=31 // pred_fallthru
          _
        // Predicated region
        $region41: #{tpu_custom_call.1} parent=31 // pred_check
          %p693 = pneg %p196
        $region42: #{tpu_custom_call.1} parent=31 // pred_check_branch
          %695 = sbr.rel (%p693) target = $region44
        $region43: #{tpu_custom_call.1} parent=31 // pred_region
          %p696 = scmp.lt.s32.totalorder %s40, 1
          %s697 = scalar_select %p696, %s40, 1
          %s698 = smul.addr %s697, 4
          %s699 = smul.addr %s698, 8
          %s700 = scalar_lea.vmem %s6, %s699
        $region44: #{tpu_custom_call.1} parent=31 // pred_fallthru
          _
        // Predicated region
        $region45: #{tpu_custom_call.1} parent=31 // pred_check
          %p701 = pneg %p222
        $region46: #{tpu_custom_call.1} parent=31 // pred_check_branch
          %703 = sbr.rel (%p701) target = $region48
        $region47: #{tpu_custom_call.1} parent=31 // pred_region
          %s704 = sand.u32 %s40, 1
          %s705 = scalar_lea.sflag [#allocation9], %s704
          %s706 = sand.u32 %s212, 1
          %s707 = smul.addr %s706, 32
          %s708 = scalar_lea.vmem [#allocation8], %s707
          %710 = vsyncadd %s705, 0
          %s711 = smul.addr %s40, 4
          %s712 = smul.addr %s711, 8
          %s713 = scalar_lea.hbm %s7, %s712
          %s714 = sshll.u32 %s713, 4
          %s715 = int_to_ptr.hbm [resolvable:$true] %s714
          %s716 = sshll.u32 %s708, 4
          %s717 = int_to_ptr.vmem [resolvable:$true] %s716
          %722 = dma.hbm_to_vmem [thread:$0]  %s715, 512, %s717, %s705, 128, 128, 8
        $region48: #{tpu_custom_call.1} parent=31 // pred_fallthru
          _
        // Predicated region
        $region49: #{tpu_custom_call.1} parent=31 // pred_check
          %p723 = pneg %p248
        $region50: #{tpu_custom_call.1} parent=31 // pred_check_branch
          %725 = sbr.rel (%p723) target = $region52
        $region51: #{tpu_custom_call.1} parent=31 // pred_region
          %p726 = scmp.lt.s32.totalorder %s40, 1
          %s727 = scalar_select %p726, %s40, 1
          %s728 = scalar_lea.vmem %s8, %s727
        $region52: #{tpu_custom_call.1} parent=31 // pred_fallthru
          _
        // Predicated region
        $region53: #{tpu_custom_call.1} parent=31 // pred_check
          %p729 = pneg %p274
        $region54: #{tpu_custom_call.1} parent=31 // pred_check_branch
          %731 = sbr.rel (%p729) target = $region56
        $region55: #{tpu_custom_call.1} parent=31 // pred_region
          %p732 = scmp.lt.s32.totalorder %s40, 1
          %s733 = scalar_select %p732, %s40, 1
          %s734 = scalar_lea.vmem %s9, %s733
        $region56: #{tpu_custom_call.1} parent=31 // pred_fallthru
          _
        // Predicated region
        $region57: #{tpu_custom_call.1} parent=31 // pred_check
          %p735 = pneg %p300
        $region58: #{tpu_custom_call.1} parent=31 // pred_check_branch
          %737 = sbr.rel (%p735) target = $region60
        $region59: #{tpu_custom_call.1} parent=31 // pred_region
          %s738 = sand.u32 %s40, 1
          %s739 = scalar_lea.sflag [#allocation9], %s738
          %s740 = sand.u32 %s290, 1
          %s741 = smul.addr %s740, 32
          %s742 = scalar_lea.vmem [#allocation10], %s741
          %744 = vsyncadd %s739, 0
          %s745 = smul.addr %s40, 4
          %s746 = smul.addr %s745, 8
          %s747 = scalar_lea.hbm %s10, %s746
          %s748 = sshll.u32 %s747, 4
          %s749 = int_to_ptr.hbm [resolvable:$true] %s748
          %s750 = sshll.u32 %s742, 4
          %s751 = int_to_ptr.vmem [resolvable:$true] %s750
          %756 = dma.hbm_to_vmem [thread:$0]  %s749, 512, %s751, %s739, 128, 128, 8
        $region60: #{tpu_custom_call.1} parent=31 // pred_fallthru
          _
        // Predicated region
        $region61: #{tpu_custom_call.1} parent=31 // pred_check
          %p757 = pneg %p326
        $region62: #{tpu_custom_call.1} parent=31 // pred_check_branch
          %759 = sbr.rel (%p757) target = $region64
        $region63: #{tpu_custom_call.1} parent=31 // pred_region
          %s760 = sand.u32 %s40, 1
          %s761 = scalar_lea.sflag [#allocation12], %s760
          %s762 = sand.u32 %s316, 1
          %s763 = smul.addr %s762, 32
          %s764 = scalar_lea.vmem [#allocation11], %s763
          %766 = vsyncadd %s761, 0
          %s767 = smul.addr %s40, 4
          %s768 = smul.addr %s767, 8
          %s769 = scalar_lea.hbm %s11, %s768
          %s770 = sshll.u32 %s769, 4
          %s771 = int_to_ptr.hbm [resolvable:$true] %s770
          %s772 = sshll.u32 %s764, 4
          %s773 = int_to_ptr.vmem [resolvable:$true] %s772
          %778 = dma.hbm_to_vmem [thread:$0]  %s771, 512, %s773, %s761, 128, 128, 8
        $region64: #{tpu_custom_call.1} parent=31 // pred_fallthru
          _
        // Predicated region
        $region65: #{tpu_custom_call.1} parent=31 // pred_check
          %p779 = pneg %p352
        $region66: #{tpu_custom_call.1} parent=31 // pred_check_branch
          %781 = sbr.rel (%p779) target = $region68
        $region67: #{tpu_custom_call.1} parent=31 // pred_region
          %s782 = sand.u32 %s40, 1
          %s783 = scalar_lea.sflag [#allocation12], %s782
          %s784 = sand.u32 %s342, 1
          %s785 = smul.addr %s784, 32
          %s786 = scalar_lea.vmem [#allocation13], %s785
          %788 = vsyncadd %s783, 0
          %s789 = smul.addr %s40, 4
          %s790 = smul.addr %s789, 8
          %s791 = scalar_lea.hbm %s12, %s790
          %s792 = sshll.u32 %s791, 4
          %s793 = int_to_ptr.hbm [resolvable:$true] %s792
          %s794 = sshll.u32 %s786, 4
          %s795 = int_to_ptr.vmem [resolvable:$true] %s794
          %800 = dma.hbm_to_vmem [thread:$0]  %s793, 512, %s795, %s783, 128, 128, 8
        $region68: #{tpu_custom_call.1} parent=31 // pred_fallthru
          _
        // Predicated region
        $region69: #{tpu_custom_call.1} parent=31 // pred_check
          %p801 = pneg %p378
        $region70: #{tpu_custom_call.1} parent=31 // pred_check_branch
          %803 = sbr.rel (%p801) target = $region72
        $region71: #{tpu_custom_call.1} parent=31 // pred_region
          %s804 = sand.u32 %s40, 1
          %s805 = scalar_lea.sflag [#allocation15], %s804
          %s806 = sand.u32 %s368, 1
          %s807 = smul.addr %s806, 32
          %s808 = scalar_lea.vmem [#allocation14], %s807
          %810 = vsyncadd %s805, 0
          %s811 = smul.addr %s40, 4
          %s812 = smul.addr %s811, 8
          %s813 = scalar_lea.hbm %s13, %s812
          %s814 = sshll.u32 %s813, 4
          %s815 = int_to_ptr.hbm [resolvable:$true] %s814
          %s816 = sshll.u32 %s808, 4
          %s817 = int_to_ptr.vmem [resolvable:$true] %s816
          %822 = dma.hbm_to_vmem [thread:$0]  %s815, 512, %s817, %s805, 128, 128, 8
        $region72: #{tpu_custom_call.1} parent=31 // pred_fallthru
          _
        // Predicated region
        $region73: #{tpu_custom_call.1} parent=31 // pred_check
          %p823 = pneg %p404
        $region74: #{tpu_custom_call.1} parent=31 // pred_check_branch
          %825 = sbr.rel (%p823) target = $region76
        $region75: #{tpu_custom_call.1} parent=31 // pred_region
          %p826 = scmp.lt.s32.totalorder %s40, 1
          %s827 = scalar_select %p826, %s40, 1
          %s828 = scalar_lea.vmem %s14, %s827
        $region76: #{tpu_custom_call.1} parent=31 // pred_fallthru
          _
        // Predicated region
        $region77: #{tpu_custom_call.1} parent=31 // pred_check
          %p829 = pneg %p430
        $region78: #{tpu_custom_call.1} parent=31 // pred_check_branch
          %831 = sbr.rel (%p829) target = $region80
        $region79: #{tpu_custom_call.1} parent=31 // pred_region
          %p832 = scmp.lt.s32.totalorder %s40, 1
          %s833 = scalar_select %p832, %s40, 1
          %s834 = scalar_lea.vmem %s15, %s833
        $region80: #{tpu_custom_call.1} parent=31 // pred_fallthru
          _
        // Predicated region
        $region81: #{tpu_custom_call.1} parent=31 // pred_check
          %p835 = pneg %p456
        $region82: #{tpu_custom_call.1} parent=31 // pred_check_branch
          %837 = sbr.rel (%p835) target = $region84
        $region83: #{tpu_custom_call.1} parent=31 // pred_region
          %s838 = sand.u32 %s40, 1
          %s839 = scalar_lea.sflag [#allocation15], %s838
          %s840 = sand.u32 %s446, 1
          %s841 = smul.addr %s840, 32
          %s842 = scalar_lea.vmem [#allocation16], %s841
          %844 = vsyncadd %s839, 0
          %s845 = smul.addr %s40, 4
          %s846 = smul.addr %s845, 8
          %s847 = scalar_lea.hbm %s16, %s846
          %s848 = sshll.u32 %s847, 4
          %s849 = int_to_ptr.hbm [resolvable:$true] %s848
          %s850 = sshll.u32 %s842, 4
          %s851 = int_to_ptr.vmem [resolvable:$true] %s850
          %856 = dma.hbm_to_vmem [thread:$0]  %s849, 512, %s851, %s839, 128, 128, 8
        $region84: #{tpu_custom_call.1} parent=31 // pred_fallthru
          _
        // Predicated region
        $region85: #{tpu_custom_call.1} parent=31 // pred_check
          %p857 = pneg %p482
        $region86: #{tpu_custom_call.1} parent=31 // pred_check_branch
          %859 = sbr.rel (%p857) target = $region88
        $region87: #{tpu_custom_call.1} parent=31 // pred_region
          %p860 = scmp.lt.s32.totalorder %s40, 1
          %s861 = scalar_select %p860, %s40, 1
          %s862 = scalar_lea.vmem %s17, %s861
        $region88: #{tpu_custom_call.1} parent=31 // pred_fallthru
          _
        // Predicated region
        $region89: #{tpu_custom_call.1} parent=31 // pred_check
          %p863 = pneg %p508
        $region90: #{tpu_custom_call.1} parent=31 // pred_check_branch
          %865 = sbr.rel (%p863) target = $region92
        $region91: #{tpu_custom_call.1} parent=31 // pred_region
          %p866 = scmp.lt.s32.totalorder %s40, 1
          %s867 = scalar_select %p866, %s40, 1
          %s868 = smul.addr %s867, 8
          %s869 = smul.addr %s868, 8
          %s870 = scalar_lea.vmem %s18, %s869
        $region92: #{tpu_custom_call.1} parent=31 // pred_fallthru
          _
        // Predicated region
        $region93: #{tpu_custom_call.1} parent=31 // pred_check
          %p871 = pneg %p534
        $region94: #{tpu_custom_call.1} parent=31 // pred_check_branch
          %873 = sbr.rel (%p871) target = $region96
        $region95: #{tpu_custom_call.1} parent=31 // pred_region
          %p874 = scmp.lt.s32.totalorder %s40, 1
          %s875 = scalar_select %p874, %s40, 1
          %s876 = scalar_lea.vmem %s19, %s875
        $region96: #{tpu_custom_call.1} parent=31 // pred_fallthru
          _
        // Predicated region
        $region97: #{tpu_custom_call.1} parent=31 // pred_check
          %p877 = pneg %p560
        $region98: #{tpu_custom_call.1} parent=31 // pred_check_branch
          %879 = sbr.rel (%p877) target = $region100
        $region99: #{tpu_custom_call.1} parent=31 // pred_region
          %p880 = scmp.lt.s32.totalorder %s40, 1
          %s881 = scalar_select %p880, %s40, 1
          %s882 = scalar_lea.vmem %s20, %s881
        $region100: #{tpu_custom_call.1} parent=31 // pred_fallthru
          _
        // Predicated region
        $region101: #{tpu_custom_call.1} parent=31 // pred_check
          %p883 = pneg %p586
        $region102: #{tpu_custom_call.1} parent=31 // pred_check_branch
          %885 = sbr.rel (%p883) target = $region104
        $region103: #{tpu_custom_call.1} parent=31 // pred_region
          %p886 = scmp.lt.s32.totalorder %s40, 1
          %s887 = scalar_select %p886, %s40, 1
          %s888 = scalar_lea.vmem %s21, %s887
        $region104: #{tpu_custom_call.1} parent=31 // pred_fallthru
          _
      $region32: #{tpu_custom_call.1} parent=5 // pred_fallthru
        _
      %p889 = scmp.le.s32.totalorder 1, %s40
      %p890 = scmp.lt.s32.totalorder %s40, 3
      %p891 = pnand %p889, %p890
      %p892 = pneg %p891
      // Predicated region
      $region105: #{tpu_custom_call.1} parent=5 // pred_check
        _
      $region106: #{tpu_custom_call.1} parent=5 // pred_check_branch
        %894 = sbr.rel (%p891) target = $region108
      $region107: #{tpu_custom_call.1} parent=5 // pred_region
        %s895 = ssub.s32 %s40, 1
        // Predicated region
        $region109: #{tpu_custom_call.1} parent=107 // pred_check
          %p896 = pneg %p61
        $region110: #{tpu_custom_call.1} parent=107 // pred_check_branch
          %898 = sbr.rel (%p896) target = $region112
        $region111: #{tpu_custom_call.1} parent=107 // pred_region
          %900 = dma.done [#allocation3], 256
        $region112: #{tpu_custom_call.1} parent=107 // pred_fallthru
          _
        // Predicated region
        $region113: #{tpu_custom_call.1} parent=107 // pred_check
          %p901 = pneg %p82
        $region114: #{tpu_custom_call.1} parent=107 // pred_check_branch
          %903 = sbr.rel (%p901) target = $region116
        $region115: #{tpu_custom_call.1} parent=107 // pred_region
          %905 = dma.done [#allocation6], 512
        $region116: #{tpu_custom_call.1} parent=107 // pred_fallthru
          _
        // Predicated region
        $region117: #{tpu_custom_call.1} parent=107 // pred_check
          %p906 = pneg %p103
        $region118: #{tpu_custom_call.1} parent=107 // pred_check_branch
          %908 = sbr.rel (%p906) target = $region120
        $region119: #{tpu_custom_call.1} parent=107 // pred_region
          %910 = dma.done [#allocation6], 256
        $region120: #{tpu_custom_call.1} parent=107 // pred_fallthru
          _
        %s911 = sand.u32 %s45, 1
        %s912 = scalar_lea.sflag [#allocation9], %s911
        %s913 = sand.u32 %s215, 1
        %s914 = smul.addr %s913, 32
        %s915 = scalar_lea.vmem [#allocation8], %s914
        // Predicated region
        $region121: #{tpu_custom_call.1} parent=107 // pred_check
          %p916 = pneg %p228
        $region122: #{tpu_custom_call.1} parent=107 // pred_check_branch
          %918 = sbr.rel (%p916) target = $region124
        $region123: #{tpu_custom_call.1} parent=107 // pred_region
          %920 = dma.done %s912, 512
        $region124: #{tpu_custom_call.1} parent=107 // pred_fallthru
          _
        %s921 = sand.u32 %s45, 1
        %s922 = scalar_lea.sflag [#allocation9], %s921
        %s923 = sand.u32 %s293, 1
        %s924 = smul.addr %s923, 32
        %s925 = scalar_lea.vmem [#allocation10], %s924
        // Predicated region
        $region125: #{tpu_custom_call.1} parent=107 // pred_check
          %p926 = pneg %p306
        $region126: #{tpu_custom_call.1} parent=107 // pred_check_branch
          %928 = sbr.rel (%p926) target = $region128
        $region127: #{tpu_custom_call.1} parent=107 // pred_region
          %930 = dma.done %s922, 512
        $region128: #{tpu_custom_call.1} parent=107 // pred_fallthru
          _
        %s931 = sand.u32 %s45, 1
        %s932 = scalar_lea.sflag [#allocation12], %s931
        %s933 = sand.u32 %s319, 1
        %s934 = smul.addr %s933, 32
        %s935 = scalar_lea.vmem [#allocation11], %s934
        // Predicated region
        $region129: #{tpu_custom_call.1} parent=107 // pred_check
          %p936 = pneg %p332
        $region130: #{tpu_custom_call.1} parent=107 // pred_check_branch
          %938 = sbr.rel (%p936) target = $region132
        $region131: #{tpu_custom_call.1} parent=107 // pred_region
          %940 = dma.done %s932, 512
        $region132: #{tpu_custom_call.1} parent=107 // pred_fallthru
          _
        %s941 = sand.u32 %s45, 1
        %s942 = scalar_lea.sflag [#allocation12], %s941
        %s943 = sand.u32 %s345, 1
        %s944 = smul.addr %s943, 32
        %s945 = scalar_lea.vmem [#allocation13], %s944
        // Predicated region
        $region133: #{tpu_custom_call.1} parent=107 // pred_check
          %p946 = pneg %p358
        $region134: #{tpu_custom_call.1} parent=107 // pred_check_branch
          %948 = sbr.rel (%p946) target = $region136
        $region135: #{tpu_custom_call.1} parent=107 // pred_region
          %950 = dma.done %s942, 512
        $region136: #{tpu_custom_call.1} parent=107 // pred_fallthru
          _
        %s951 = sand.u32 %s45, 1
        %s952 = scalar_lea.sflag [#allocation15], %s951
        %s953 = sand.u32 %s371, 1
        %s954 = smul.addr %s953, 32
        %s955 = scalar_lea.vmem [#allocation14], %s954
        // Predicated region
        $region137: #{tpu_custom_call.1} parent=107 // pred_check
          %p956 = pneg %p384
        $region138: #{tpu_custom_call.1} parent=107 // pred_check_branch
          %958 = sbr.rel (%p956) target = $region140
        $region139: #{tpu_custom_call.1} parent=107 // pred_region
          %960 = dma.done %s952, 512
        $region140: #{tpu_custom_call.1} parent=107 // pred_fallthru
          _
        %s961 = sand.u32 %s45, 1
        %s962 = scalar_lea.sflag [#allocation15], %s961
        %s963 = sand.u32 %s449, 1
        %s964 = smul.addr %s963, 32
        %s965 = scalar_lea.vmem [#allocation16], %s964
        // Predicated region
        $region141: #{tpu_custom_call.1} parent=107 // pred_check
          %p966 = pneg %p462
        $region142: #{tpu_custom_call.1} parent=107 // pred_check_branch
          %968 = sbr.rel (%p966) target = $region144
        $region143: #{tpu_custom_call.1} parent=107 // pred_region
          %970 = dma.done %s962, 512
        $region144: #{tpu_custom_call.1} parent=107 // pred_fallthru
          _
        %p971 = pneg %p61
        %p972 = pneg %p58
        %p973 = pneg %p82
        %p974 = pneg %p79
        %p975 = pneg %p103
        %p976 = pneg %p100
        %p977 = pneg %p124
        %p978 = pneg %p121
        %p979 = scmp.lt.s32.totalorder %s45, 1
        %s980 = scalar_select %p979, %s45, 1
        %s981 = smul.addr %s980, 4
        %s982 = smul.addr %s981, 8
        %s983 = scalar_lea.vmem %s4, %s982
        %p984 = pneg %p150
        %p985 = pneg %p147
        %p986 = scmp.lt.s32.totalorder %s45, 1
        %s987 = scalar_select %p986, %s45, 1
        %s988 = smul.addr %s987, 4
        %s989 = smul.addr %s988, 8
        %s990 = scalar_lea.vmem %s5, %s989
        %p991 = pneg %p176
        %p992 = pneg %p173
        %p993 = scmp.lt.s32.totalorder %s45, 1
        %s994 = scalar_select %p993, %s45, 1
        %s995 = smul.addr %s994, 4
        %s996 = smul.addr %s995, 8
        %s997 = scalar_lea.vmem %s6, %s996
        %p998 = pneg %p202
        %p999 = pneg %p199
        %s1000 = sand.u32 %s45, 1
        %s1001 = scalar_lea.sflag [#allocation9], %s1000
        %s1002 = sand.u32 %s215, 1
        %s1003 = smul.addr %s1002, 32
        %s1004 = scalar_lea.vmem [#allocation8], %s1003
        %p1005 = pneg %p228
        %p1006 = pneg %p225
        %p1007 = scmp.lt.s32.totalorder %s45, 1
        %s1008 = scalar_select %p1007, %s45, 1
        %s1009 = scalar_lea.vmem %s8, %s1008
        %p1010 = pneg %p254
        %p1011 = pneg %p251
        %p1012 = scmp.lt.s32.totalorder %s45, 1
        %s1013 = scalar_select %p1012, %s45, 1
        %s1014 = scalar_lea.vmem %s9, %s1013
        %p1015 = pneg %p280
        %p1016 = pneg %p277
        %s1017 = sand.u32 %s45, 1
        %s1018 = scalar_lea.sflag [#allocation9], %s1017
        %s1019 = sand.u32 %s293, 1
        %s1020 = smul.addr %s1019, 32
        %s1021 = scalar_lea.vmem [#allocation10], %s1020
        %p1022 = pneg %p306
        %p1023 = pneg %p303
        %s1024 = sand.u32 %s45, 1
        %s1025 = scalar_lea.sflag [#allocation12], %s1024
        %s1026 = sand.u32 %s319, 1
        %s1027 = smul.addr %s1026, 32
        %s1028 = scalar_lea.vmem [#allocation11], %s1027
        %p1029 = pneg %p332
        %p1030 = pneg %p329
        %s1031 = sand.u32 %s45, 1
        %s1032 = scalar_lea.sflag [#allocation12], %s1031
        %s1033 = sand.u32 %s345, 1
        %s1034 = smul.addr %s1033, 32
        %s1035 = scalar_lea.vmem [#allocation13], %s1034
        %p1036 = pneg %p358
        %p1037 = pneg %p355
        %s1038 = sand.u32 %s45, 1
        %s1039 = scalar_lea.sflag [#allocation15], %s1038
        %s1040 = sand.u32 %s371, 1
        %s1041 = smul.addr %s1040, 32
        %s1042 = scalar_lea.vmem [#allocation14], %s1041
        %p1043 = pneg %p384
        %p1044 = pneg %p381
        %p1045 = scmp.lt.s32.totalorder %s45, 1
        %s1046 = scalar_select %p1045, %s45, 1
        %s1047 = scalar_lea.vmem %s14, %s1046
        %p1048 = pneg %p410
        %p1049 = pneg %p407
        %p1050 = scmp.lt.s32.totalorder %s45, 1
        %s1051 = scalar_select %p1050, %s45, 1
        %s1052 = scalar_lea.vmem %s15, %s1051
        %p1053 = pneg %p436
        %p1054 = pneg %p433
        %s1055 = sand.u32 %s45, 1
        %s1056 = scalar_lea.sflag [#allocation15], %s1055
        %s1057 = sand.u32 %s449, 1
        %s1058 = smul.addr %s1057, 32
        %s1059 = scalar_lea.vmem [#allocation16], %s1058
        %p1060 = pneg %p462
        %p1061 = pneg %p459
        %p1062 = scmp.lt.s32.totalorder %s45, 1
        %s1063 = scalar_select %p1062, %s45, 1
        %s1064 = scalar_lea.vmem %s17, %s1063
        %p1065 = pneg %p488
        %p1066 = pneg %p485
        %p1067 = scmp.lt.s32.totalorder %s45, 1
        %s1068 = scalar_select %p1067, %s45, 1
        %s1069 = smul.addr %s1068, 8
        %s1070 = smul.addr %s1069, 8
        %s1071 = scalar_lea.vmem %s18, %s1070
        %p1072 = pneg %p514
        %p1073 = pneg %p511
        %p1074 = scmp.lt.s32.totalorder %s45, 1
        %s1075 = scalar_select %p1074, %s45, 1
        %s1076 = scalar_lea.vmem %s19, %s1075
        %p1077 = pneg %p540
        %p1078 = pneg %p537
        %p1079 = scmp.lt.s32.totalorder %s45, 1
        %s1080 = scalar_select %p1079, %s45, 1
        %s1081 = scalar_lea.vmem %s20, %s1080
        %p1082 = pneg %p566
        %p1083 = pneg %p563
        %p1084 = scmp.lt.s32.totalorder %s45, 1
        %s1085 = scalar_select %p1084, %s45, 1
        %s1086 = scalar_lea.vmem %s21, %s1085
        %p1087 = pneg %p592
        %p1088 = pneg %p589
        %p1089 = pneg %p613
        %p1090 = pneg %p610
        %p1091 = scmp.lt.s32.totalorder %s45, 1
        %s1092 = scalar_select %p1091, %s45, 1
        %s1093 = smul.addr %s1092, 4
        %s1094 = smul.addr %s1093, 8
        %s1095 = scalar_lea.vmem %s4, %s1094
        %p1096 = scmp.lt.s32.totalorder %s45, 1
        %s1097 = scalar_select %p1096, %s45, 1
        %s1098 = smul.addr %s1097, 4
        %s1099 = smul.addr %s1098, 8
        %s1100 = scalar_lea.vmem %s5, %s1099
        %p1101 = scmp.lt.s32.totalorder %s45, 1
        %s1102 = scalar_select %p1101, %s45, 1
        %s1103 = smul.addr %s1102, 4
        %s1104 = smul.addr %s1103, 8
        %s1105 = scalar_lea.vmem %s6, %s1104
        %p1106 = scmp.lt.s32.totalorder %s45, 1
        %s1107 = scalar_select %p1106, %s45, 1
        %s1108 = scalar_lea.vmem %s8, %s1107
        %p1109 = scmp.lt.s32.totalorder %s45, 1
        %s1110 = scalar_select %p1109, %s45, 1
        %s1111 = scalar_lea.vmem %s9, %s1110
        %p1112 = scmp.lt.s32.totalorder %s45, 1
        %s1113 = scalar_select %p1112, %s45, 1
        %s1114 = scalar_lea.vmem %s14, %s1113
        %p1115 = scmp.lt.s32.totalorder %s45, 1
        %s1116 = scalar_select %p1115, %s45, 1
        %s1117 = scalar_lea.vmem %s15, %s1116
        %p1118 = scmp.lt.s32.totalorder %s45, 1
        %s1119 = scalar_select %p1118, %s45, 1
        %s1120 = scalar_lea.vmem %s17, %s1119
        %p1121 = scmp.lt.s32.totalorder %s45, 1
        %s1122 = scalar_select %p1121, %s45, 1
        %s1123 = smul.addr %s1122, 8
        %s1124 = smul.addr %s1123, 8
        %s1125 = scalar_lea.vmem %s18, %s1124
        %p1126 = scmp.lt.s32.totalorder %s45, 1
        %s1127 = scalar_select %p1126, %s45, 1
        %s1128 = scalar_lea.vmem %s19, %s1127
        %p1129 = scmp.lt.s32.totalorder %s45, 1
        %s1130 = scalar_select %p1129, %s45, 1
        %s1131 = scalar_lea.vmem %s20, %s1130
        %p1132 = scmp.lt.s32.totalorder %s45, 1
        %s1133 = scalar_select %p1132, %s45, 1
        %s1134 = scalar_lea.vmem %s21, %s1133
        %p1135 = scmp.eq.s32.totalorder %s45, 0
        // Predicated region
        $region145: #{tpu_custom_call.1} parent=107 // pred_check
          %p1136 = pneg %p1135
        $region146: #{tpu_custom_call.1} parent=107 // pred_check_branch
          %1138 = sbr.rel (%p1136) target = $region148
        $region147: #{tpu_custom_call.1} parent=107 // pred_region
          %v1139 = vld [vmem:[#allocation2] sm:$0xff]
          %v1140 = vld [vmem:[#allocation2 + $0x8] sm:$0xff]
          %vm1141 = vcmask 261120
          %1142 = vst.msk [vmem:[#allocation17] sm:$0xff] %vm1141, %v1139
          %1143 = vst.msk [vmem:[#allocation17 + $0x8] sm:$0xff] %vm1141, %v1140
        $region148: #{tpu_custom_call.1} parent=107 // pred_fallthru
          _
        %v1144 = vld [vmem:[%s1095] sm:$0xff]
        %v1145 = vld [vmem:[%s1095 + $0x8] sm:$0xff]
        %v1146 = vld [vmem:[%s1095 + $0x10] sm:$0xff]
        %v1147 = vld [vmem:[%s1095 + $0x18] sm:$0xff]
        %v1148 = vld [vmem:[%s1100] sm:$0xff]
        %v1149 = vld [vmem:[%s1100 + $0x8] sm:$0xff]
        %v1150 = vld [vmem:[%s1100 + $0x10] sm:$0xff]
        %v1151 = vld [vmem:[%s1100 + $0x18] sm:$0xff]
        %v1152 = vld [vmem:[%s1105] sm:$0xff]
        %v1153 = vld [vmem:[%s1105 + $0x8] sm:$0xff]
        %v1154 = vld [vmem:[%s1105 + $0x10] sm:$0xff]
        %v1155 = vld [vmem:[%s1105 + $0x18] sm:$0xff]
        %v1156 = vld [vmem:[%s915] sm:$0xff]
        %v1157 = vld [vmem:[%s915 + $0x8] sm:$0xff]
        %v1158 = vld [vmem:[%s915 + $0x10] sm:$0xff]
        %v1159 = vld [vmem:[%s915 + $0x18] sm:$0xff]
        %v1160 = vld [vmem:[%s1108] sm:$0x1]
        %v1161 = vld [vmem:[%s1111] sm:$0x1]
        %v1162 = vld [vmem:[#allocation17] sm:$0xff]
        %v1163 = vld [vmem:[#allocation17 + $0x8] sm:$0xff]
        %vm1164 = vcmask 261120
        %v1166 = vsel %vm1164, %v1162, 0
        %v1169 = vsel %vm1164, %v1163, 0
        %1171 = vmatpush.msra.mxu0 0.0
        %1172 = vmatpush.msra.mxu0 0.0
        %1173 = vmatpush.msra.mxu0 0.0
        %1174 = vmatpush.msra.mxu0 0.0
        %1175 = vmatpush.msra.mxu0 0.0
        %1176 = vmatpush.msra.mxu0 0.0
        %1177 = vmatpush.msra.mxu0 0.0
        %1178 = vmatpush.msra.mxu0 0.0
        %1179 = vmatpush.msra.mxu0 0.0
        %1180 = vmatpush.msra.mxu0 0.0
        %1181 = vmatpush.msra.mxu0 0.0
        %1182 = vmatpush.msra.mxu0 0.0
        %1183 = vmatpush.msra.mxu0 %v1147
        %1184 = vmatpush.msra.mxu0 %v1146
        %1185 = vmatpush.msra.mxu0 %v1145
        %1186 = vmatpush.msra.mxu0 %v1144
        %1187 = vmatmul.f32.gmra.mxu0 %v1166
        %v1188 = vpop.f32.mrf.mxu0
        %v1189 = vadd.f32 0.0, %v1188
        %1190 = vmatmul.f32.gmra.mxu0 %v1169
        %v1191 = vpop.f32.mrf.mxu0
        %v1192 = vadd.f32 0.0, %v1191
        %1193 = vdwg.mxu0
        %1194 = vmatpush.msra.mxu0 0.0
        %1195 = vmatpush.msra.mxu0 0.0
        %1196 = vmatpush.msra.mxu0 0.0
        %1197 = vmatpush.msra.mxu0 0.0
        %1198 = vmatpush.msra.mxu0 0.0
        %1199 = vmatpush.msra.mxu0 0.0
        %1200 = vmatpush.msra.mxu0 0.0
        %1201 = vmatpush.msra.mxu0 0.0
        %1202 = vmatpush.msra.mxu0 0.0
        %1203 = vmatpush.msra.mxu0 0.0
        %1204 = vmatpush.msra.mxu0 0.0
        %1205 = vmatpush.msra.mxu0 0.0
        %1206 = vmatpush.msra.mxu0 %v1151
        %1207 = vmatpush.msra.mxu0 %v1150
        %1208 = vmatpush.msra.mxu0 %v1149
        %1209 = vmatpush.msra.mxu0 %v1148
        %1210 = vmatmul.f32.gmra.mxu0 %v1166
        %v1211 = vpop.f32.mrf.mxu0
        %v1212 = vadd.f32 0.0, %v1211
        %1213 = vmatmul.f32.gmra.mxu0 %v1169
        %v1214 = vpop.f32.mrf.mxu0
        %v1215 = vadd.f32 0.0, %v1214
        %1216 = vdwg.mxu0
        %1217 = vmatpush.msra.mxu0 0.0
        %1218 = vmatpush.msra.mxu0 0.0
        %1219 = vmatpush.msra.mxu0 0.0
        %1220 = vmatpush.msra.mxu0 0.0
        %1221 = vmatpush.msra.mxu0 0.0
        %1222 = vmatpush.msra.mxu0 0.0
        %1223 = vmatpush.msra.mxu0 0.0
        %1224 = vmatpush.msra.mxu0 0.0
        %1225 = vmatpush.msra.mxu0 0.0
        %1226 = vmatpush.msra.mxu0 0.0
        %1227 = vmatpush.msra.mxu0 0.0
        %1228 = vmatpush.msra.mxu0 0.0
        %1229 = vmatpush.msra.mxu0 %v1155
        %1230 = vmatpush.msra.mxu0 %v1154
        %1231 = vmatpush.msra.mxu0 %v1153
        %1232 = vmatpush.msra.mxu0 %v1152
        %1233 = vmatmul.f32.gmra.mxu0 %v1166
        %v1234 = vpop.f32.mrf.mxu0
        %v1235 = vadd.f32 0.0, %v1234
        %1236 = vmatmul.f32.gmra.mxu0 %v1169
        %v1237 = vpop.f32.mrf.mxu0
        %v1238 = vadd.f32 0.0, %v1237
        %1239 = vdwg.mxu0
        %v1240 = vld [vmem:[#allocation7] sm:$0xff]
        %vm1241 = vcmask 130048
        %v1243 = vsel %vm1241, %v1189, 0
        %v1246 = vsel %vm1241, %v1212, 0
        %1248 = vmatpush.xpose.msra.mxu0 0.0
        %1249 = vmatpush.xpose.msra.mxu0 0.0
        %1250 = vmatpush.xpose.msra.mxu0 0.0
        %1251 = vmatpush.xpose.msra.mxu0 0.0
        %1252 = vmatpush.xpose.msra.mxu0 0.0
        %1253 = vmatpush.xpose.msra.mxu0 0.0
        %1254 = vmatpush.xpose.msra.mxu0 0.0
        %1255 = vmatpush.xpose.msra.mxu0 0.0
        %1256 = vmatpush.xpose.msra.mxu0 0.0
        %1257 = vmatpush.xpose.msra.mxu0 0.0
        %1258 = vmatpush.xpose.msra.mxu0 0.0
        %1259 = vmatpush.xpose.msra.mxu0 0.0
        %1260 = vmatpush.xpose.msra.mxu0 0.0
        %1261 = vmatpush.xpose.msra.mxu0 0.0
        %1262 = vmatpush.xpose.msra.mxu0 0.0
        %1263 = vmatpush.xpose.msra.mxu0 %v1246
        %1264 = vmatmul.f32.gmra.mxu0 %v1243
        %v1265 = vpop.f32.mrf.mxu0
        %v1266 = vadd.f32 %v1240, %v1265
        %1267 = vdwg.mxu0
        %vm1268 = vcmask 64512
        %v1269 = vsel %vm1268, %v1266, -inf
        %1270 = vmax.xlane.f32.xlu0 %v1269
        %v1271 = vpop.xlane.xlu0 %1270
        %v1272 = vsub.f32 %v1266, %v1271
        %v1273 = vmul.f32 %v1272, 1.442695
        %v1274 = vpow.pop %v1273
        %v1275 = vsel %vm1268, %v1274, 0.0
        %1276 = vadd.xlane.f32.xlu0 %v1275
        %v1277 = vpop.xlane.xlu0 %1276
        %v1278 = vrcp.pop %v1277
        %v1279 = vmul.f32 %v1274, %v1278
        %v1281 = vsel %vm1268, %v1279, 0
        %1283 = vmatpush.msra.mxu0 0.0
        %1284 = vmatpush.msra.mxu0 0.0
        %1285 = vmatpush.msra.mxu0 0.0
        %1286 = vmatpush.msra.mxu0 0.0
        %1287 = vmatpush.msra.mxu0 0.0
        %1288 = vmatpush.msra.mxu0 0.0
        %1289 = vmatpush.msra.mxu0 0.0
        %1290 = vmatpush.msra.mxu0 0.0
        %1291 = vmatpush.msra.mxu0 0.0
        %1292 = vmatpush.msra.mxu0 0.0
        %1293 = vmatpush.msra.mxu0 0.0
        %1294 = vmatpush.msra.mxu0 0.0
        %1295 = vmatpush.msra.mxu0 0.0
        %1296 = vmatpush.msra.mxu0 0.0
        %1297 = vmatpush.msra.mxu0 0.0
        %1298 = vmatpush.msra.mxu0 %v1235
        %1299 = vmatmul.f32.gmra.mxu0 %v1281
        %v1300 = vpop.f32.mrf.mxu0
        %v1301 = vadd.f32 0.0, %v1300
        %1302 = vdwg.mxu0
        %v1304 = vsel %vm1241, %v1301, 0
        %1306 = vmatpush.msra.mxu0 0.0
        %1307 = vmatpush.msra.mxu0 0.0
        %1308 = vmatpush.msra.mxu0 0.0
        %1309 = vmatpush.msra.mxu0 0.0
        %1310 = vmatpush.msra.mxu0 0.0
        %1311 = vmatpush.msra.mxu0 0.0
        %1312 = vmatpush.msra.mxu0 0.0
        %1313 = vmatpush.msra.mxu0 0.0
        %1314 = vmatpush.msra.mxu0 0.0
        %1315 = vmatpush.msra.mxu0 0.0
        %1316 = vmatpush.msra.mxu0 0.0
        %1317 = vmatpush.msra.mxu0 0.0
        %1318 = vmatpush.msra.mxu0 0.0
        %1319 = vmatpush.msra.mxu0 0.0
        %1320 = vmatpush.msra.mxu0 %v1157
        %1321 = vmatpush.msra.mxu0 %v1156
        %1322 = vmatmul.f32.gmra.mxu0 %v1304
        %v1323 = vpop.f32.mrf.mxu0
        %v1324 = vadd.f32 0.0, %v1323
        %1325 = vdwg.mxu0
        %v1326 = vadd.f32 %v1162, %v1324
        %1327 = vrot.lane.b32.xlu0 %v1189, 112
        %v1328 = vpop.permute.xlu0 %1327
        %1329 = vrot.lane.b32.xlu0 %v1212, 112
        %v1330 = vpop.permute.xlu0 %1329
        %v1331 = vsel %vm1241, %v1328, 0
        %v1333 = vsel %vm1241, %v1330, 0
        %1335 = vmatpush.xpose.msra.mxu0 0.0
        %1336 = vmatpush.xpose.msra.mxu0 0.0
        %1337 = vmatpush.xpose.msra.mxu0 0.0
        %1338 = vmatpush.xpose.msra.mxu0 0.0
        %1339 = vmatpush.xpose.msra.mxu0 0.0
        %1340 = vmatpush.xpose.msra.mxu0 0.0
        %1341 = vmatpush.xpose.msra.mxu0 0.0
        %1342 = vmatpush.xpose.msra.mxu0 0.0
        %1343 = vmatpush.xpose.msra.mxu0 0.0
        %1344 = vmatpush.xpose.msra.mxu0 0.0
        %1345 = vmatpush.xpose.msra.mxu0 0.0
        %1346 = vmatpush.xpose.msra.mxu0 0.0
        %1347 = vmatpush.xpose.msra.mxu0 0.0
        %1348 = vmatpush.xpose.msra.mxu0 0.0
        %1349 = vmatpush.xpose.msra.mxu0 0.0
        %1350 = vmatpush.xpose.msra.mxu0 %v1333
        %1351 = vmatmul.f32.gmra.mxu0 %v1331
        %v1352 = vpop.f32.mrf.mxu0
        %v1353 = vadd.f32 %v1240, %v1352
        %1354 = vdwg.mxu0
        %v1355 = vsel %vm1268, %v1353, -inf
        %1356 = vmax.xlane.f32.xlu0 %v1355
        %v1357 = vpop.xlane.xlu0 %1356
        %v1358 = vsub.f32 %v1353, %v1357
        %v1359 = vmul.f32 %v1358, 1.442695
        %v1360 = vpow.pop %v1359
        %v1361 = vsel %vm1268, %v1360, 0.0
        %1362 = vadd.xlane.f32.xlu0 %v1361
        %v1363 = vpop.xlane.xlu0 %1362
        %v1364 = vrcp.pop %v1363
        %v1365 = vmul.f32 %v1360, %v1364
        %1367 = vrot.lane.b32.xlu0 %v1235, 112
        %v1368 = vpop.permute.xlu0 %1367
        %v1371 = vsel %vm1268, %v1365, 0
        %1373 = vmatpush.msra.mxu0 0.0
        %1374 = vmatpush.msra.mxu0 0.0
        %1375 = vmatpush.msra.mxu0 0.0
        %1376 = vmatpush.msra.mxu0 0.0
        %1377 = vmatpush.msra.mxu0 0.0
        %1378 = vmatpush.msra.mxu0 0.0
        %1379 = vmatpush.msra.mxu0 0.0
        %1380 = vmatpush.msra.mxu0 0.0
        %1381 = vmatpush.msra.mxu0 0.0
        %1382 = vmatpush.msra.mxu0 0.0
        %1383 = vmatpush.msra.mxu0 0.0
        %1384 = vmatpush.msra.mxu0 0.0
        %1385 = vmatpush.msra.mxu0 0.0
        %1386 = vmatpush.msra.mxu0 0.0
        %1387 = vmatpush.msra.mxu0 0.0
        %1388 = vmatpush.msra.mxu0 %v1368
        %1389 = vmatmul.f32.gmra.mxu0 %v1371
        %v1390 = vpop.f32.mrf.mxu0
        %v1391 = vadd.f32 0.0, %v1390
        %1392 = vdwg.mxu0
        %v1394 = vsel %vm1241, %v1391, 0
        %1396 = vmatpush.msra.mxu0 0.0
        %1397 = vmatpush.msra.mxu0 0.0
        %1398 = vmatpush.msra.mxu0 0.0
        %1399 = vmatpush.msra.mxu0 0.0
        %1400 = vmatpush.msra.mxu0 0.0
        %1401 = vmatpush.msra.mxu0 0.0
        %1402 = vmatpush.msra.mxu0 0.0
        %1403 = vmatpush.msra.mxu0 0.0
        %1404 = vmatpush.msra.mxu0 0.0
        %1405 = vmatpush.msra.mxu0 0.0
        %1406 = vmatpush.msra.mxu0 0.0
        %1407 = vmatpush.msra.mxu0 0.0
        %1408 = vmatpush.msra.mxu0 0.0
        %1409 = vmatpush.msra.mxu0 0.0
        %1410 = vmatpush.msra.mxu0 %v1159
        %1411 = vmatpush.msra.mxu0 %v1158
        %1412 = vmatmul.f32.gmra.mxu0 %v1394
        %v1413 = vpop.f32.mrf.mxu0
        %v1414 = vadd.f32 0.0, %v1413
        %1415 = vdwg.mxu0
        %v1416 = vadd.f32 %v1326, %v1414
        %v1417 = vsel %vm1164, %v1416, 0.0
        %1418 = vadd.xlane.f32.xlu0 %v1417
        %v1419 = vpop.xlane.xlu0 %1418
        %v1420 = vrcp.pop 32.0
        %v1421 = vmul.f32 32.0, %v1420
        %v1422 = vsub.f32 1.0, %v1421
        %v1423 = vmul.f32 %v1420, %v1422
        %v1424 = vadd.f32 %v1420, %v1423
        %vm1425 = vweird.f32 %v1420
        %v1426 = vsel %vm1425, %v1420, %v1424
        %v1427 = vmul.f32 %v1419, %v1426
        %v1428 = vsub.f32 %v1416, %v1427
        %v1429 = vmul.f32 %v1428, %v1428
        %v1430 = vsel %vm1164, %v1429, 0.0
        %1431 = vadd.xlane.f32.xlu0 %v1430
        %v1432 = vpop.xlane.xlu0 %1431
        %v1433 = vmul.f32 %v1432, %v1426
        %v1434 = vadd.f32 %v1433, 1e-06
        %v1435 = vrsqrt.pop %v1434
        %v1436 = vmul.f32 %v1435, %v1434
        %v1437 = vmul.f32 %v1436, %v1435
        %v1438 = vmul.f32 0.5, %v1437
        %v1439 = vsub.f32 1.5, %v1438
        %v1440 = vmul.f32 %v1435, %v1439
        %vm1441 = vweird.f32 %v1434
        %vm1442 = vweird.f32 %v1435
        %vm1443 = vmor %vm1441, %vm1442
        %v1444 = vsel %vm1443, %v1435, %v1440
        %v1445 = vmul.f32 %v1428, %v1444
        %v1447 = vperm.slane %v1160, 0
        %v1449 = vmul.f32 %v1445, %v1447
        %v1451 = vperm.slane %v1161, 0
        %v1453 = vadd.f32 %v1449, %v1451
        %1454 = vst.msk [vmem:[#allocation17] sm:$0xff] %vm1164, %v1453
        %s1455 = scalar_lea.vmem [#allocation7], 8
        %v1456 = vld [vmem:[%s1455] sm:$0xff]
        %v1458 = vsel %vm1241, %v1192, 0
        %v1461 = vsel %vm1241, %v1215, 0
        %1463 = vmatpush.xpose.msra.mxu0 0.0
        %1464 = vmatpush.xpose.msra.mxu0 0.0
        %1465 = vmatpush.xpose.msra.mxu0 0.0
        %1466 = vmatpush.xpose.msra.mxu0 0.0
        %1467 = vmatpush.xpose.msra.mxu0 0.0
        %1468 = vmatpush.xpose.msra.mxu0 0.0
        %1469 = vmatpush.xpose.msra.mxu0 0.0
        %1470 = vmatpush.xpose.msra.mxu0 0.0
        %1471 = vmatpush.xpose.msra.mxu0 0.0
        %1472 = vmatpush.xpose.msra.mxu0 0.0
        %1473 = vmatpush.xpose.msra.mxu0 0.0
        %1474 = vmatpush.xpose.msra.mxu0 0.0
        %1475 = vmatpush.xpose.msra.mxu0 0.0
        %1476 = vmatpush.xpose.msra.mxu0 0.0
        %1477 = vmatpush.xpose.msra.mxu0 0.0
        %1478 = vmatpush.xpose.msra.mxu0 %v1461
        %1479 = vmatmul.f32.gmra.mxu0 %v1458
        %v1480 = vpop.f32.mrf.mxu0
        %v1481 = vadd.f32 %v1456, %v1480
        %1482 = vdwg.mxu0
        %v1483 = vsel %vm1268, %v1481, -inf
        %1484 = vmax.xlane.f32.xlu0 %v1483
        %v1485 = vpop.xlane.xlu0 %1484
        %v1486 = vsub.f32 %v1481, %v1485
        %v1487 = vmul.f32 %v1486, 1.442695
        %v1488 = vpow.pop %v1487
        %v1489 = vsel %vm1268, %v1488, 0.0
        %1490 = vadd.xlane.f32.xlu0 %v1489
        %v1491 = vpop.xlane.xlu0 %1490
        %v1492 = vrcp.pop %v1491
        %v1493 = vmul.f32 %v1488, %v1492
        %v1495 = vsel %vm1268, %v1493, 0
        %1497 = vmatpush.msra.mxu0 0.0
        %1498 = vmatpush.msra.mxu0 0.0
        %1499 = vmatpush.msra.mxu0 0.0
        %1500 = vmatpush.msra.mxu0 0.0
        %1501 = vmatpush.msra.mxu0 0.0
        %1502 = vmatpush.msra.mxu0 0.0
        %1503 = vmatpush.msra.mxu0 0.0
        %1504 = vmatpush.msra.mxu0 0.0
        %1505 = vmatpush.msra.mxu0 0.0
        %1506 = vmatpush.msra.mxu0 0.0
        %1507 = vmatpush.msra.mxu0 0.0
        %1508 = vmatpush.msra.mxu0 0.0
        %1509 = vmatpush.msra.mxu0 0.0
        %1510 = vmatpush.msra.mxu0 0.0
        %1511 = vmatpush.msra.mxu0 0.0
        %1512 = vmatpush.msra.mxu0 %v1238
        %1513 = vmatmul.f32.gmra.mxu0 %v1495
        %v1514 = vpop.f32.mrf.mxu0
        %v1515 = vadd.f32 0.0, %v1514
        %1516 = vdwg.mxu0
        %v1518 = vsel %vm1241, %v1515, 0
        %1520 = vmatpush.msra.mxu0 0.0
        %1521 = vmatpush.msra.mxu0 0.0
        %1522 = vmatpush.msra.mxu0 0.0
        %1523 = vmatpush.msra.mxu0 0.0
        %1524 = vmatpush.msra.mxu0 0.0
        %1525 = vmatpush.msra.mxu0 0.0
        %1526 = vmatpush.msra.mxu0 0.0
        %1527 = vmatpush.msra.mxu0 0.0
        %1528 = vmatpush.msra.mxu0 0.0
        %1529 = vmatpush.msra.mxu0 0.0
        %1530 = vmatpush.msra.mxu0 0.0
        %1531 = vmatpush.msra.mxu0 0.0
        %1532 = vmatpush.msra.mxu0 0.0
        %1533 = vmatpush.msra.mxu0 0.0
        %1534 = vmatpush.msra.mxu0 %v1157
        %1535 = vmatpush.msra.mxu0 %v1156
        %1536 = vmatmul.f32.gmra.mxu0 %v1518
        %v1537 = vpop.f32.mrf.mxu0
        %v1538 = vadd.f32 0.0, %v1537
        %1539 = vdwg.mxu0
        %v1540 = vadd.f32 %v1163, %v1538
        %1541 = vrot.lane.b32.xlu0 %v1192, 112
        %v1542 = vpop.permute.xlu0 %1541
        %1543 = vrot.lane.b32.xlu0 %v1215, 112
        %v1544 = vpop.permute.xlu0 %1543
        %v1545 = vsel %vm1241, %v1542, 0
        %v1547 = vsel %vm1241, %v1544, 0
        %1549 = vmatpush.xpose.msra.mxu0 0.0
        %1550 = vmatpush.xpose.msra.mxu0 0.0
        %1551 = vmatpush.xpose.msra.mxu0 0.0
        %1552 = vmatpush.xpose.msra.mxu0 0.0
        %1553 = vmatpush.xpose.msra.mxu0 0.0
        %1554 = vmatpush.xpose.msra.mxu0 0.0
        %1555 = vmatpush.xpose.msra.mxu0 0.0
        %1556 = vmatpush.xpose.msra.mxu0 0.0
        %1557 = vmatpush.xpose.msra.mxu0 0.0
        %1558 = vmatpush.xpose.msra.mxu0 0.0
        %1559 = vmatpush.xpose.msra.mxu0 0.0
        %1560 = vmatpush.xpose.msra.mxu0 0.0
        %1561 = vmatpush.xpose.msra.mxu0 0.0
        %1562 = vmatpush.xpose.msra.mxu0 0.0
        %1563 = vmatpush.xpose.msra.mxu0 0.0
        %1564 = vmatpush.xpose.msra.mxu0 %v1547
        %1565 = vmatmul.f32.gmra.mxu0 %v1545
        %v1566 = vpop.f32.mrf.mxu0
        %v1567 = vadd.f32 %v1456, %v1566
        %1568 = vdwg.mxu0
        %v1569 = vsel %vm1268, %v1567, -inf
        %1570 = vmax.xlane.f32.xlu0 %v1569
        %v1571 = vpop.xlane.xlu0 %1570
        %v1572 = vsub.f32 %v1567, %v1571
        %v1573 = vmul.f32 %v1572, 1.442695
        %v1574 = vpow.pop %v1573
        %v1575 = vsel %vm1268, %v1574, 0.0
        %1576 = vadd.xlane.f32.xlu0 %v1575
        %v1577 = vpop.xlane.xlu0 %1576
        %v1578 = vrcp.pop %v1577
        %v1579 = vmul.f32 %v1574, %v1578
        %1581 = vrot.lane.b32.xlu0 %v1238, 112
        %v1582 = vpop.permute.xlu0 %1581
        %v1585 = vsel %vm1268, %v1579, 0
        %1587 = vmatpush.msra.mxu0 0.0
        %1588 = vmatpush.msra.mxu0 0.0
        %1589 = vmatpush.msra.mxu0 0.0
        %1590 = vmatpush.msra.mxu0 0.0
        %1591 = vmatpush.msra.mxu0 0.0
        %1592 = vmatpush.msra.mxu0 0.0
        %1593 = vmatpush.msra.mxu0 0.0
        %1594 = vmatpush.msra.mxu0 0.0
        %1595 = vmatpush.msra.mxu0 0.0
        %1596 = vmatpush.msra.mxu0 0.0
        %1597 = vmatpush.msra.mxu0 0.0
        %1598 = vmatpush.msra.mxu0 0.0
        %1599 = vmatpush.msra.mxu0 0.0
        %1600 = vmatpush.msra.mxu0 0.0
        %1601 = vmatpush.msra.mxu0 0.0
        %1602 = vmatpush.msra.mxu0 %v1582
        %1603 = vmatmul.f32.gmra.mxu0 %v1585
        %v1604 = vpop.f32.mrf.mxu0
        %v1605 = vadd.f32 0.0, %v1604
        %1606 = vdwg.mxu0
        %v1608 = vsel %vm1241, %v1605, 0
        %1610 = vmatpush.msra.mxu0 0.0
        %1611 = vmatpush.msra.mxu0 0.0
        %1612 = vmatpush.msra.mxu0 0.0
        %1613 = vmatpush.msra.mxu0 0.0
        %1614 = vmatpush.msra.mxu0 0.0
        %1615 = vmatpush.msra.mxu0 0.0
        %1616 = vmatpush.msra.mxu0 0.0
        %1617 = vmatpush.msra.mxu0 0.0
        %1618 = vmatpush.msra.mxu0 0.0
        %1619 = vmatpush.msra.mxu0 0.0
        %1620 = vmatpush.msra.mxu0 0.0
        %1621 = vmatpush.msra.mxu0 0.0
        %1622 = vmatpush.msra.mxu0 0.0
        %1623 = vmatpush.msra.mxu0 0.0
        %1624 = vmatpush.msra.mxu0 %v1159
        %1625 = vmatpush.msra.mxu0 %v1158
        %1626 = vmatmul.f32.gmra.mxu0 %v1608
        %v1627 = vpop.f32.mrf.mxu0
        %v1628 = vadd.f32 0.0, %v1627
        %1629 = vdwg.mxu0
        %v1630 = vadd.f32 %v1540, %v1628
        %v1631 = vsel %vm1164, %v1630, 0.0
        %1632 = vadd.xlane.f32.xlu0 %v1631
        %v1633 = vpop.xlane.xlu0 %1632
        %v1634 = vmul.f32 %v1633, %v1426
        %v1635 = vsub.f32 %v1630, %v1634
        %v1636 = vmul.f32 %v1635, %v1635
        %v1637 = vsel %vm1164, %v1636, 0.0
        %1638 = vadd.xlane.f32.xlu0 %v1637
        %v1639 = vpop.xlane.xlu0 %1638
        %v1640 = vmul.f32 %v1639, %v1426
        %v1641 = vadd.f32 %v1640, 1e-06
        %v1642 = vrsqrt.pop %v1641
        %v1643 = vmul.f32 %v1642, %v1641
        %v1644 = vmul.f32 %v1643, %v1642
        %v1645 = vmul.f32 0.5, %v1644
        %v1646 = vsub.f32 1.5, %v1645
        %v1647 = vmul.f32 %v1642, %v1646
        %vm1648 = vweird.f32 %v1641
        %vm1649 = vweird.f32 %v1642
        %vm1650 = vmor %vm1648, %vm1649
        %v1651 = vsel %vm1650, %v1642, %v1647
        %v1652 = vmul.f32 %v1635, %v1651
        %v1653 = vmul.f32 %v1652, %v1447
        %v1654 = vadd.f32 %v1653, %v1451
        %1655 = vst.msk [vmem:[#allocation17 + $0x8] sm:$0xff] %vm1164, %v1654
        %v1656 = vld [vmem:[#allocation5] sm:$0xff]
        %v1657 = vld [vmem:[#allocation5 + $0x8] sm:$0xff]
        %v1658 = vld [vmem:[#allocation5 + $0x10] sm:$0xff]
        %v1659 = vld [vmem:[#allocation5 + $0x18] sm:$0xff]
        %v1660 = vld [vmem:[%s925] sm:$0xff]
        %v1661 = vld [vmem:[%s925 + $0x8] sm:$0xff]
        %v1662 = vld [vmem:[%s925 + $0x10] sm:$0xff]
        %v1663 = vld [vmem:[%s925 + $0x18] sm:$0xff]
        %v1664 = vld [vmem:[%s935] sm:$0xff]
        %v1665 = vld [vmem:[%s935 + $0x8] sm:$0xff]
        %v1666 = vld [vmem:[%s935 + $0x10] sm:$0xff]
        %v1667 = vld [vmem:[%s935 + $0x18] sm:$0xff]
        %v1668 = vld [vmem:[%s945] sm:$0xff]
        %v1669 = vld [vmem:[%s945 + $0x8] sm:$0xff]
        %v1670 = vld [vmem:[%s945 + $0x10] sm:$0xff]
        %v1671 = vld [vmem:[%s945 + $0x18] sm:$0xff]
        %v1672 = vld [vmem:[%s955] sm:$0xff]
        %v1673 = vld [vmem:[%s955 + $0x8] sm:$0xff]
        %v1674 = vld [vmem:[%s955 + $0x10] sm:$0xff]
        %v1675 = vld [vmem:[%s955 + $0x18] sm:$0xff]
        %v1676 = vld [vmem:[%s1114] sm:$0x1]
        %v1677 = vld [vmem:[%s1117] sm:$0x1]
        %v1678 = vld [vmem:[#allocation17] sm:$0xff]
        %v1679 = vld [vmem:[#allocation17 + $0x8] sm:$0xff]
        %v1681 = vsel %vm1164, %v1678, 0
        %v1684 = vsel %vm1164, %v1679, 0
        %1686 = vmatpush.msra.mxu0 0.0
        %1687 = vmatpush.msra.mxu0 0.0
        %1688 = vmatpush.msra.mxu0 0.0
        %1689 = vmatpush.msra.mxu0 0.0
        %1690 = vmatpush.msra.mxu0 0.0
        %1691 = vmatpush.msra.mxu0 0.0
        %1692 = vmatpush.msra.mxu0 0.0
        %1693 = vmatpush.msra.mxu0 0.0
        %1694 = vmatpush.msra.mxu0 0.0
        %1695 = vmatpush.msra.mxu0 0.0
        %1696 = vmatpush.msra.mxu0 0.0
        %1697 = vmatpush.msra.mxu0 0.0
        %1698 = vmatpush.msra.mxu0 %v1663
        %1699 = vmatpush.msra.mxu0 %v1662
        %1700 = vmatpush.msra.mxu0 %v1661
        %1701 = vmatpush.msra.mxu0 %v1660
        %1702 = vmatmul.f32.gmra.mxu0 %v1681
        %v1703 = vpop.f32.mrf.mxu0
        %v1704 = vadd.f32 0.0, %v1703
        %1705 = vmatmul.f32.gmra.mxu0 %v1684
        %v1706 = vpop.f32.mrf.mxu0
        %v1707 = vadd.f32 0.0, %v1706
        %1708 = vdwg.mxu0
        %v1710 = vsel %vm1164, %v1656, 0
        %v1713 = vsel %vm1164, %v1657, 0
        %v1716 = vsel %vm1164, %v1658, 0
        %v1719 = vsel %vm1164, %v1659, 0
        %1721 = vmatpush.msra.mxu0 0.0
        %1722 = vmatpush.msra.mxu0 0.0
        %1723 = vmatpush.msra.mxu0 0.0
        %1724 = vmatpush.msra.mxu0 0.0
        %1725 = vmatpush.msra.mxu0 0.0
        %1726 = vmatpush.msra.mxu0 0.0
        %1727 = vmatpush.msra.mxu0 0.0
        %1728 = vmatpush.msra.mxu0 0.0
        %1729 = vmatpush.msra.mxu0 0.0
        %1730 = vmatpush.msra.mxu0 0.0
        %1731 = vmatpush.msra.mxu0 0.0
        %1732 = vmatpush.msra.mxu0 0.0
        %1733 = vmatpush.msra.mxu0 %v1667
        %1734 = vmatpush.msra.mxu0 %v1666
        %1735 = vmatpush.msra.mxu0 %v1665
        %1736 = vmatpush.msra.mxu0 %v1664
        %1737 = vmatmul.f32.gmra.mxu0 %v1710
        %v1738 = vpop.f32.mrf.mxu0
        %v1739 = vadd.f32 0.0, %v1738
        %1740 = vmatmul.f32.gmra.mxu0 %v1713
        %v1741 = vpop.f32.mrf.mxu0
        %v1742 = vadd.f32 0.0, %v1741
        %1743 = vmatmul.f32.gmra.mxu0 %v1716
        %v1744 = vpop.f32.mrf.mxu0
        %v1745 = vadd.f32 0.0, %v1744
        %1746 = vmatmul.f32.gmra.mxu0 %v1719
        %v1747 = vpop.f32.mrf.mxu0
        %v1748 = vadd.f32 0.0, %v1747
        %1749 = vdwg.mxu0
        %1750 = vmatpush.msra.mxu0 0.0
        %1751 = vmatpush.msra.mxu0 0.0
        %1752 = vmatpush.msra.mxu0 0.0
        %1753 = vmatpush.msra.mxu0 0.0
        %1754 = vmatpush.msra.mxu0 0.0
        %1755 = vmatpush.msra.mxu0 0.0
        %1756 = vmatpush.msra.mxu0 0.0
        %1757 = vmatpush.msra.mxu0 0.0
        %1758 = vmatpush.msra.mxu0 0.0
        %1759 = vmatpush.msra.mxu0 0.0
        %1760 = vmatpush.msra.mxu0 0.0
        %1761 = vmatpush.msra.mxu0 0.0
        %1762 = vmatpush.msra.mxu0 %v1671
        %1763 = vmatpush.msra.mxu0 %v1670
        %1764 = vmatpush.msra.mxu0 %v1669
        %1765 = vmatpush.msra.mxu0 %v1668
        %1766 = vmatmul.f32.gmra.mxu0 %v1710
        %v1767 = vpop.f32.mrf.mxu0
        %v1768 = vadd.f32 0.0, %v1767
        %1769 = vmatmul.f32.gmra.mxu0 %v1713
        %v1770 = vpop.f32.mrf.mxu0
        %v1771 = vadd.f32 0.0, %v1770
        %1772 = vmatmul.f32.gmra.mxu0 %v1716
        %v1773 = vpop.f32.mrf.mxu0
        %v1774 = vadd.f32 0.0, %v1773
        %1775 = vmatmul.f32.gmra.mxu0 %v1719
        %v1776 = vpop.f32.mrf.mxu0
        %v1777 = vadd.f32 0.0, %v1776
        %1778 = vdwg.mxu0
        %v1779 = vld [vmem:[%s3] sm:$0x1]
        %v1781 = vperm.slane %v1779, 0
        %v1784 = vsel %vm1241, %v1704, 0
        %v1787 = vsel %vm1241, %v1739, 0
        %v1790 = vsel %vm1241, %v1742, 0
        %1792 = vmatpush.xpose.msra.mxu0 0.0
        %1793 = vmatpush.xpose.msra.mxu0 0.0
        %1794 = vmatpush.xpose.msra.mxu0 0.0
        %1795 = vmatpush.xpose.msra.mxu0 0.0
        %1796 = vmatpush.xpose.msra.mxu0 0.0
        %1797 = vmatpush.xpose.msra.mxu0 0.0
        %1798 = vmatpush.xpose.msra.mxu0 0.0
        %1799 = vmatpush.xpose.msra.mxu0 0.0
        %1800 = vmatpush.xpose.msra.mxu0 0.0
        %1801 = vmatpush.xpose.msra.mxu0 0.0
        %1802 = vmatpush.xpose.msra.mxu0 0.0
        %1803 = vmatpush.xpose.msra.mxu0 0.0
        %1804 = vmatpush.xpose.msra.mxu0 0.0
        %1805 = vmatpush.xpose.msra.mxu0 0.0
        %1806 = vmatpush.xpose.msra.mxu0 %v1790
        %1807 = vmatpush.xpose.msra.mxu0 %v1787
        %1808 = vmatmul.f32.gmra.mxu0 %v1784
        %v1809 = vpop.f32.mrf.mxu0
        %v1810 = vadd.f32 %v1781, %v1809
        %1811 = vdwg.mxu0
        %v1812 = vsel %vm1241, %v1810, -inf
        %1813 = vmax.xlane.f32.xlu0 %v1812
        %v1814 = vpop.xlane.xlu0 %1813
        %v1815 = vsub.f32 %v1810, %v1814
        %v1816 = vmul.f32 %v1815, 1.442695
        %v1817 = vpow.pop %v1816
        %v1818 = vsel %vm1241, %v1817, 0.0
        %1819 = vadd.xlane.f32.xlu0 %v1818
        %v1820 = vpop.xlane.xlu0 %1819
        %v1821 = vrcp.pop %v1820
        %v1822 = vmul.f32 %v1817, %v1821
        %v1824 = vsel %vm1241, %v1822, 0
        %1826 = vmatpush.msra.mxu0 0.0
        %1827 = vmatpush.msra.mxu0 0.0
        %1828 = vmatpush.msra.mxu0 0.0
        %1829 = vmatpush.msra.mxu0 0.0
        %1830 = vmatpush.msra.mxu0 0.0
        %1831 = vmatpush.msra.mxu0 0.0
        %1832 = vmatpush.msra.mxu0 0.0
        %1833 = vmatpush.msra.mxu0 0.0
        %1834 = vmatpush.msra.mxu0 0.0
        %1835 = vmatpush.msra.mxu0 0.0
        %1836 = vmatpush.msra.mxu0 0.0
        %1837 = vmatpush.msra.mxu0 0.0
        %1838 = vmatpush.msra.mxu0 0.0
        %1839 = vmatpush.msra.mxu0 0.0
        %1840 = vmatpush.msra.mxu0 %v1771
        %1841 = vmatpush.msra.mxu0 %v1768
        %1842 = vmatmul.f32.gmra.mxu0 %v1824
        %v1843 = vpop.f32.mrf.mxu0
        %v1844 = vadd.f32 0.0, %v1843
        %1845 = vdwg.mxu0
        %v1847 = vsel %vm1241, %v1844, 0
        %1849 = vmatpush.msra.mxu0 0.0
        %1850 = vmatpush.msra.mxu0 0.0
        %1851 = vmatpush.msra.mxu0 0.0
        %1852 = vmatpush.msra.mxu0 0.0
        %1853 = vmatpush.msra.mxu0 0.0
        %1854 = vmatpush.msra.mxu0 0.0
        %1855 = vmatpush.msra.mxu0 0.0
        %1856 = vmatpush.msra.mxu0 0.0
        %1857 = vmatpush.msra.mxu0 0.0
        %1858 = vmatpush.msra.mxu0 0.0
        %1859 = vmatpush.msra.mxu0 0.0
        %1860 = vmatpush.msra.mxu0 0.0
        %1861 = vmatpush.msra.mxu0 0.0
        %1862 = vmatpush.msra.mxu0 0.0
        %1863 = vmatpush.msra.mxu0 %v1673
        %1864 = vmatpush.msra.mxu0 %v1672
        %1865 = vmatmul.f32.gmra.mxu0 %v1847
        %v1866 = vpop.f32.mrf.mxu0
        %v1867 = vadd.f32 0.0, %v1866
        %1868 = vdwg.mxu0
        %v1869 = vadd.f32 %v1678, %v1867
        %1870 = vrot.lane.b32.xlu0 %v1704, 112
        %v1871 = vpop.permute.xlu0 %1870
        %1872 = vrot.lane.b32.xlu0 %v1739, 112
        %v1873 = vpop.permute.xlu0 %1872
        %1874 = vrot.lane.b32.xlu0 %v1742, 112
        %v1875 = vpop.permute.xlu0 %1874
        %v1876 = vsel %vm1241, %v1871, 0
        %v1878 = vsel %vm1241, %v1873, 0
        %v1880 = vsel %vm1241, %v1875, 0
        %1882 = vmatpush.xpose.msra.mxu0 0.0
        %1883 = vmatpush.xpose.msra.mxu0 0.0
        %1884 = vmatpush.xpose.msra.mxu0 0.0
        %1885 = vmatpush.xpose.msra.mxu0 0.0
        %1886 = vmatpush.xpose.msra.mxu0 0.0
        %1887 = vmatpush.xpose.msra.mxu0 0.0
        %1888 = vmatpush.xpose.msra.mxu0 0.0
        %1889 = vmatpush.xpose.msra.mxu0 0.0
        %1890 = vmatpush.xpose.msra.mxu0 0.0
        %1891 = vmatpush.xpose.msra.mxu0 0.0
        %1892 = vmatpush.xpose.msra.mxu0 0.0
        %1893 = vmatpush.xpose.msra.mxu0 0.0
        %1894 = vmatpush.xpose.msra.mxu0 0.0
        %1895 = vmatpush.xpose.msra.mxu0 0.0
        %1896 = vmatpush.xpose.msra.mxu0 %v1880
        %1897 = vmatpush.xpose.msra.mxu0 %v1878
        %1898 = vmatmul.f32.gmra.mxu0 %v1876
        %v1899 = vpop.f32.mrf.mxu0
        %v1900 = vadd.f32 %v1781, %v1899
        %1901 = vdwg.mxu0
        %v1902 = vsel %vm1241, %v1900, -inf
        %1903 = vmax.xlane.f32.xlu0 %v1902
        %v1904 = vpop.xlane.xlu0 %1903
        %v1905 = vsub.f32 %v1900, %v1904
        %v1906 = vmul.f32 %v1905, 1.442695
        %v1907 = vpow.pop %v1906
        %v1908 = vsel %vm1241, %v1907, 0.0
        %1909 = vadd.xlane.f32.xlu0 %v1908
        %v1910 = vpop.xlane.xlu0 %1909
        %v1911 = vrcp.pop %v1910
        %v1912 = vmul.f32 %v1907, %v1911
        %1915 = vrot.lane.b32.xlu0 %v1768, 112
        %v1916 = vpop.permute.xlu0 %1915
        %1917 = vrot.lane.b32.xlu0 %v1771, 112
        %v1918 = vpop.permute.xlu0 %1917
        %v1922 = vsel %vm1241, %v1912, 0
        %1924 = vmatpush.msra.mxu0 0.0
        %1925 = vmatpush.msra.mxu0 0.0
        %1926 = vmatpush.msra.mxu0 0.0
        %1927 = vmatpush.msra.mxu0 0.0
        %1928 = vmatpush.msra.mxu0 0.0
        %1929 = vmatpush.msra.mxu0 0.0
        %1930 = vmatpush.msra.mxu0 0.0
        %1931 = vmatpush.msra.mxu0 0.0
        %1932 = vmatpush.msra.mxu0 0.0
        %1933 = vmatpush.msra.mxu0 0.0
        %1934 = vmatpush.msra.mxu0 0.0
        %1935 = vmatpush.msra.mxu0 0.0
        %1936 = vmatpush.msra.mxu0 0.0
        %1937 = vmatpush.msra.mxu0 0.0
        %1938 = vmatpush.msra.mxu0 %v1918
        %1939 = vmatpush.msra.mxu0 %v1916
        %1940 = vmatmul.f32.gmra.mxu0 %v1922
        %v1941 = vpop.f32.mrf.mxu0
        %v1942 = vadd.f32 0.0, %v1941
        %1943 = vdwg.mxu0
        %v1945 = vsel %vm1241, %v1942, 0
        %1947 = vmatpush.msra.mxu0 0.0
        %1948 = vmatpush.msra.mxu0 0.0
        %1949 = vmatpush.msra.mxu0 0.0
        %1950 = vmatpush.msra.mxu0 0.0
        %1951 = vmatpush.msra.mxu0 0.0
        %1952 = vmatpush.msra.mxu0 0.0
        %1953 = vmatpush.msra.mxu0 0.0
        %1954 = vmatpush.msra.mxu0 0.0
        %1955 = vmatpush.msra.mxu0 0.0
        %1956 = vmatpush.msra.mxu0 0.0
        %1957 = vmatpush.msra.mxu0 0.0
        %1958 = vmatpush.msra.mxu0 0.0
        %1959 = vmatpush.msra.mxu0 0.0
        %1960 = vmatpush.msra.mxu0 0.0
        %1961 = vmatpush.msra.mxu0 %v1675
        %1962 = vmatpush.msra.mxu0 %v1674
        %1963 = vmatmul.f32.gmra.mxu0 %v1945
        %v1964 = vpop.f32.mrf.mxu0
        %v1965 = vadd.f32 0.0, %v1964
        %1966 = vdwg.mxu0
        %v1967 = vadd.f32 %v1869, %v1965
        %v1968 = vsel %vm1164, %v1967, 0.0
        %1969 = vadd.xlane.f32.xlu0 %v1968
        %v1970 = vpop.xlane.xlu0 %1969
        %v1971 = vmul.f32 %v1970, %v1426
        %v1972 = vsub.f32 %v1967, %v1971
        %v1973 = vmul.f32 %v1972, %v1972
        %v1974 = vsel %vm1164, %v1973, 0.0
        %1975 = vadd.xlane.f32.xlu0 %v1974
        %v1976 = vpop.xlane.xlu0 %1975
        %v1977 = vmul.f32 %v1976, %v1426
        %v1978 = vadd.f32 %v1977, 1e-06
        %v1979 = vrsqrt.pop %v1978
        %v1980 = vmul.f32 %v1979, %v1978
        %v1981 = vmul.f32 %v1980, %v1979
        %v1982 = vmul.f32 0.5, %v1981
        %v1983 = vsub.f32 1.5, %v1982
        %v1984 = vmul.f32 %v1979, %v1983
        %vm1985 = vweird.f32 %v1978
        %vm1986 = vweird.f32 %v1979
        %vm1987 = vmor %vm1985, %vm1986
        %v1988 = vsel %vm1987, %v1979, %v1984
        %v1989 = vmul.f32 %v1972, %v1988
        %v1991 = vperm.slane %v1676, 0
        %v1993 = vmul.f32 %v1989, %v1991
        %v1995 = vperm.slane %v1677, 0
        %v1997 = vadd.f32 %v1993, %v1995
        %1998 = vst.msk [vmem:[#allocation17] sm:$0xff] %vm1164, %v1997
        %s1999 = scalar_lea.vmem %s3, 1
        %v2000 = vld [vmem:[%s1999] sm:$0x1]
        %v2002 = vperm.slane %v2000, 0
        %v2005 = vsel %vm1241, %v1707, 0
        %v2008 = vsel %vm1241, %v1745, 0
        %v2011 = vsel %vm1241, %v1748, 0
        %2013 = vmatpush.xpose.msra.mxu0 0.0
        %2014 = vmatpush.xpose.msra.mxu0 0.0
        %2015 = vmatpush.xpose.msra.mxu0 0.0
        %2016 = vmatpush.xpose.msra.mxu0 0.0
        %2017 = vmatpush.xpose.msra.mxu0 0.0
        %2018 = vmatpush.xpose.msra.mxu0 0.0
        %2019 = vmatpush.xpose.msra.mxu0 0.0
        %2020 = vmatpush.xpose.msra.mxu0 0.0
        %2021 = vmatpush.xpose.msra.mxu0 0.0
        %2022 = vmatpush.xpose.msra.mxu0 0.0
        %2023 = vmatpush.xpose.msra.mxu0 0.0
        %2024 = vmatpush.xpose.msra.mxu0 0.0
        %2025 = vmatpush.xpose.msra.mxu0 0.0
        %2026 = vmatpush.xpose.msra.mxu0 0.0
        %2027 = vmatpush.xpose.msra.mxu0 %v2011
        %2028 = vmatpush.xpose.msra.mxu0 %v2008
        %2029 = vmatmul.f32.gmra.mxu0 %v2005
        %v2030 = vpop.f32.mrf.mxu0
        %v2031 = vadd.f32 %v2002, %v2030
        %2032 = vdwg.mxu0
        %v2033 = vsel %vm1241, %v2031, -inf
        %2034 = vmax.xlane.f32.xlu0 %v2033
        %v2035 = vpop.xlane.xlu0 %2034
        %v2036 = vsub.f32 %v2031, %v2035
        %v2037 = vmul.f32 %v2036, 1.442695
        %v2038 = vpow.pop %v2037
        %v2039 = vsel %vm1241, %v2038, 0.0
        %2040 = vadd.xlane.f32.xlu0 %v2039
        %v2041 = vpop.xlane.xlu0 %2040
        %v2042 = vrcp.pop %v2041
        %v2043 = vmul.f32 %v2038, %v2042
        %v2045 = vsel %vm1241, %v2043, 0
        %2047 = vmatpush.msra.mxu0 0.0
        %2048 = vmatpush.msra.mxu0 0.0
        %2049 = vmatpush.msra.mxu0 0.0
        %2050 = vmatpush.msra.mxu0 0.0
        %2051 = vmatpush.msra.mxu0 0.0
        %2052 = vmatpush.msra.mxu0 0.0
        %2053 = vmatpush.msra.mxu0 0.0
        %2054 = vmatpush.msra.mxu0 0.0
        %2055 = vmatpush.msra.mxu0 0.0
        %2056 = vmatpush.msra.mxu0 0.0
        %2057 = vmatpush.msra.mxu0 0.0
        %2058 = vmatpush.msra.mxu0 0.0
        %2059 = vmatpush.msra.mxu0 0.0
        %2060 = vmatpush.msra.mxu0 0.0
        %2061 = vmatpush.msra.mxu0 %v1777
        %2062 = vmatpush.msra.mxu0 %v1774
        %2063 = vmatmul.f32.gmra.mxu0 %v2045
        %v2064 = vpop.f32.mrf.mxu0
        %v2065 = vadd.f32 0.0, %v2064
        %2066 = vdwg.mxu0
        %v2068 = vsel %vm1241, %v2065, 0
        %2070 = vmatpush.msra.mxu0 0.0
        %2071 = vmatpush.msra.mxu0 0.0
        %2072 = vmatpush.msra.mxu0 0.0
        %2073 = vmatpush.msra.mxu0 0.0
        %2074 = vmatpush.msra.mxu0 0.0
        %2075 = vmatpush.msra.mxu0 0.0
        %2076 = vmatpush.msra.mxu0 0.0
        %2077 = vmatpush.msra.mxu0 0.0
        %2078 = vmatpush.msra.mxu0 0.0
        %2079 = vmatpush.msra.mxu0 0.0
        %2080 = vmatpush.msra.mxu0 0.0
        %2081 = vmatpush.msra.mxu0 0.0
        %2082 = vmatpush.msra.mxu0 0.0
        %2083 = vmatpush.msra.mxu0 0.0
        %2084 = vmatpush.msra.mxu0 %v1673
        %2085 = vmatpush.msra.mxu0 %v1672
        %2086 = vmatmul.f32.gmra.mxu0 %v2068
        %v2087 = vpop.f32.mrf.mxu0
        %v2088 = vadd.f32 0.0, %v2087
        %2089 = vdwg.mxu0
        %v2090 = vadd.f32 %v1679, %v2088
        %2091 = vrot.lane.b32.xlu0 %v1707, 112
        %v2092 = vpop.permute.xlu0 %2091
        %2093 = vrot.lane.b32.xlu0 %v1745, 112
        %v2094 = vpop.permute.xlu0 %2093
        %2095 = vrot.lane.b32.xlu0 %v1748, 112
        %v2096 = vpop.permute.xlu0 %2095
        %v2097 = vsel %vm1241, %v2092, 0
        %v2099 = vsel %vm1241, %v2094, 0
        %v2101 = vsel %vm1241, %v2096, 0
        %2103 = vmatpush.xpose.msra.mxu0 0.0
        %2104 = vmatpush.xpose.msra.mxu0 0.0
        %2105 = vmatpush.xpose.msra.mxu0 0.0
        %2106 = vmatpush.xpose.msra.mxu0 0.0
        %2107 = vmatpush.xpose.msra.mxu0 0.0
        %2108 = vmatpush.xpose.msra.mxu0 0.0
        %2109 = vmatpush.xpose.msra.mxu0 0.0
        %2110 = vmatpush.xpose.msra.mxu0 0.0
        %2111 = vmatpush.xpose.msra.mxu0 0.0
        %2112 = vmatpush.xpose.msra.mxu0 0.0
        %2113 = vmatpush.xpose.msra.mxu0 0.0
        %2114 = vmatpush.xpose.msra.mxu0 0.0
        %2115 = vmatpush.xpose.msra.mxu0 0.0
        %2116 = vmatpush.xpose.msra.mxu0 0.0
        %2117 = vmatpush.xpose.msra.mxu0 %v2101
        %2118 = vmatpush.xpose.msra.mxu0 %v2099
        %2119 = vmatmul.f32.gmra.mxu0 %v2097
        %v2120 = vpop.f32.mrf.mxu0
        %v2121 = vadd.f32 %v2002, %v2120
        %2122 = vdwg.mxu0
        %v2123 = vsel %vm1241, %v2121, -inf
        %2124 = vmax.xlane.f32.xlu0 %v2123
        %v2125 = vpop.xlane.xlu0 %2124
        %v2126 = vsub.f32 %v2121, %v2125
        %v2127 = vmul.f32 %v2126, 1.442695
        %v2128 = vpow.pop %v2127
        %v2129 = vsel %vm1241, %v2128, 0.0
        %2130 = vadd.xlane.f32.xlu0 %v2129
        %v2131 = vpop.xlane.xlu0 %2130
        %v2132 = vrcp.pop %v2131
        %v2133 = vmul.f32 %v2128, %v2132
        %2136 = vrot.lane.b32.xlu0 %v1774, 112
        %v2137 = vpop.permute.xlu0 %2136
        %2138 = vrot.lane.b32.xlu0 %v1777, 112
        %v2139 = vpop.permute.xlu0 %2138
        %v2143 = vsel %vm1241, %v2133, 0
        %2145 = vmatpush.msra.mxu0 0.0
        %2146 = vmatpush.msra.mxu0 0.0
        %2147 = vmatpush.msra.mxu0 0.0
        %2148 = vmatpush.msra.mxu0 0.0
        %2149 = vmatpush.msra.mxu0 0.0
        %2150 = vmatpush.msra.mxu0 0.0
        %2151 = vmatpush.msra.mxu0 0.0
        %2152 = vmatpush.msra.mxu0 0.0
        %2153 = vmatpush.msra.mxu0 0.0
        %2154 = vmatpush.msra.mxu0 0.0
        %2155 = vmatpush.msra.mxu0 0.0
        %2156 = vmatpush.msra.mxu0 0.0
        %2157 = vmatpush.msra.mxu0 0.0
        %2158 = vmatpush.msra.mxu0 0.0
        %2159 = vmatpush.msra.mxu0 %v2139
        %2160 = vmatpush.msra.mxu0 %v2137
        %2161 = vmatmul.f32.gmra.mxu0 %v2143
        %v2162 = vpop.f32.mrf.mxu0
        %v2163 = vadd.f32 0.0, %v2162
        %2164 = vdwg.mxu0
        %v2166 = vsel %vm1241, %v2163, 0
        %2168 = vmatpush.msra.mxu0 0.0
        %2169 = vmatpush.msra.mxu0 0.0
        %2170 = vmatpush.msra.mxu0 0.0
        %2171 = vmatpush.msra.mxu0 0.0
        %2172 = vmatpush.msra.mxu0 0.0
        %2173 = vmatpush.msra.mxu0 0.0
        %2174 = vmatpush.msra.mxu0 0.0
        %2175 = vmatpush.msra.mxu0 0.0
        %2176 = vmatpush.msra.mxu0 0.0
        %2177 = vmatpush.msra.mxu0 0.0
        %2178 = vmatpush.msra.mxu0 0.0
        %2179 = vmatpush.msra.mxu0 0.0
        %2180 = vmatpush.msra.mxu0 0.0
        %2181 = vmatpush.msra.mxu0 0.0
        %2182 = vmatpush.msra.mxu0 %v1675
        %2183 = vmatpush.msra.mxu0 %v1674
        %2184 = vmatmul.f32.gmra.mxu0 %v2166
        %v2185 = vpop.f32.mrf.mxu0
        %v2186 = vadd.f32 0.0, %v2185
        %2187 = vdwg.mxu0
        %v2188 = vadd.f32 %v2090, %v2186
        %v2189 = vsel %vm1164, %v2188, 0.0
        %2190 = vadd.xlane.f32.xlu0 %v2189
        %v2191 = vpop.xlane.xlu0 %2190
        %v2192 = vmul.f32 %v2191, %v1426
        %v2193 = vsub.f32 %v2188, %v2192
        %v2194 = vmul.f32 %v2193, %v2193
        %v2195 = vsel %vm1164, %v2194, 0.0
        %2196 = vadd.xlane.f32.xlu0 %v2195
        %v2197 = vpop.xlane.xlu0 %2196
        %v2198 = vmul.f32 %v2197, %v1426
        %v2199 = vadd.f32 %v2198, 1e-06
        %v2200 = vrsqrt.pop %v2199
        %v2201 = vmul.f32 %v2200, %v2199
        %v2202 = vmul.f32 %v2201, %v2200
        %v2203 = vmul.f32 0.5, %v2202
        %v2204 = vsub.f32 1.5, %v2203
        %v2205 = vmul.f32 %v2200, %v2204
        %vm2206 = vweird.f32 %v2199
        %vm2207 = vweird.f32 %v2200
        %vm2208 = vmor %vm2206, %vm2207
        %v2209 = vsel %vm2208, %v2200, %v2205
        %v2210 = vmul.f32 %v2193, %v2209
        %v2211 = vmul.f32 %v2210, %v1991
        %v2212 = vadd.f32 %v2211, %v1995
        %2213 = vst.msk [vmem:[#allocation17 + $0x8] sm:$0xff] %vm1164, %v2212
        %v2214 = vld [vmem:[#allocation17] sm:$0xff]
        %v2215 = vld [vmem:[#allocation17 + $0x8] sm:$0xff]
        %v2216 = vld [vmem:[%s965] sm:$0xff]
        %v2217 = vld [vmem:[%s965 + $0x8] sm:$0xff]
        %v2218 = vld [vmem:[%s965 + $0x10] sm:$0xff]
        %v2219 = vld [vmem:[%s965 + $0x18] sm:$0xff]
        %v2220 = vld [vmem:[%s1120] sm:$0x1]
        %v2222 = vperm.slane %v2220, 0
        %v2225 = vsel %vm1164, %v2214, 0
        %v2228 = vsel %vm1164, %v2215, 0
        %2230 = vmatpush.msra.mxu0 0.0
        %2231 = vmatpush.msra.mxu0 0.0
        %2232 = vmatpush.msra.mxu0 0.0
        %2233 = vmatpush.msra.mxu0 0.0
        %2234 = vmatpush.msra.mxu0 0.0
        %2235 = vmatpush.msra.mxu0 0.0
        %2236 = vmatpush.msra.mxu0 0.0
        %2237 = vmatpush.msra.mxu0 0.0
        %2238 = vmatpush.msra.mxu0 0.0
        %2239 = vmatpush.msra.mxu0 0.0
        %2240 = vmatpush.msra.mxu0 0.0
        %2241 = vmatpush.msra.mxu0 0.0
        %2242 = vmatpush.msra.mxu0 %v2219
        %2243 = vmatpush.msra.mxu0 %v2218
        %2244 = vmatpush.msra.mxu0 %v2217
        %2245 = vmatpush.msra.mxu0 %v2216
        %2246 = vmatmul.f32.gmra.mxu0 %v2225
        %v2247 = vpop.f32.mrf.mxu0
        %v2248 = vadd.f32 %v2222, %v2247
        %2249 = vmatmul.f32.gmra.mxu0 %v2228
        %v2250 = vpop.f32.mrf.mxu0
        %v2251 = vadd.f32 %v2222, %v2250
        %2252 = vdwg.mxu0
        %v2253 = vmax.f32 %v2248, 0.0
        %v2254 = vmax.f32 %v2251, 0.0
        %v2255 = vld [vmem:[%s1125] sm:$0xff]
        %v2256 = vld [vmem:[%s1125 + $0x8] sm:$0xff]
        %v2257 = vld [vmem:[%s1125 + $0x10] sm:$0xff]
        %v2258 = vld [vmem:[%s1125 + $0x18] sm:$0xff]
        %v2259 = vld [vmem:[%s1125 + $0x20] sm:$0xff]
        %v2260 = vld [vmem:[%s1125 + $0x28] sm:$0xff]
        %v2261 = vld [vmem:[%s1125 + $0x30] sm:$0xff]
        %v2262 = vld [vmem:[%s1125 + $0x38] sm:$0xff]
        %v2263 = vld [vmem:[%s1128] sm:$0x1]
        %v2265 = vperm.slane %v2263, 0
        %vm2267 = vcmask 523264
        %v2269 = vsel %vm2267, %v2253, 0
        %v2272 = vsel %vm2267, %v2254, 0
        %2274 = vmatpush.msra.mxu0 0.0
        %2275 = vmatpush.msra.mxu0 0.0
        %2276 = vmatpush.msra.mxu0 0.0
        %2277 = vmatpush.msra.mxu0 0.0
        %2278 = vmatpush.msra.mxu0 0.0
        %2279 = vmatpush.msra.mxu0 0.0
        %2280 = vmatpush.msra.mxu0 0.0
        %2281 = vmatpush.msra.mxu0 0.0
        %2282 = vmatpush.msra.mxu0 %v2262
        %2283 = vmatpush.msra.mxu0 %v2261
        %2284 = vmatpush.msra.mxu0 %v2260
        %2285 = vmatpush.msra.mxu0 %v2259
        %2286 = vmatpush.msra.mxu0 %v2258
        %2287 = vmatpush.msra.mxu0 %v2257
        %2288 = vmatpush.msra.mxu0 %v2256
        %2289 = vmatpush.msra.mxu0 %v2255
        %2290 = vmatmul.f32.gmra.mxu0 %v2269
        %v2291 = vpop.f32.mrf.mxu0
        %v2292 = vadd.f32 %v2265, %v2291
        %2293 = vmatmul.f32.gmra.mxu0 %v2272
        %v2294 = vpop.f32.mrf.mxu0
        %v2295 = vadd.f32 %v2265, %v2294
        %2296 = vdwg.mxu0
        %v2297 = vadd.f32 %v2292, %v2214
        %v2298 = vadd.f32 %v2295, %v2215
        %v2299 = vld [vmem:[%s1131] sm:$0x1]
        %v2300 = vld [vmem:[%s1134] sm:$0x1]
        %v2301 = vsel %vm1164, %v2297, 0.0
        %2302 = vadd.xlane.f32.xlu0 %v2301
        %v2303 = vpop.xlane.xlu0 %2302
        %v2304 = vsel %vm1164, %v2298, 0.0
        %2305 = vadd.xlane.f32.xlu0 %v2304
        %v2306 = vpop.xlane.xlu0 %2305
        %v2307 = vmul.f32 %v2303, %v1426
        %v2308 = vmul.f32 %v2306, %v1426
        %v2309 = vsub.f32 %v2297, %v2307
        %v2310 = vsub.f32 %v2298, %v2308
        %v2311 = vmul.f32 %v2309, %v2309
        %v2312 = vmul.f32 %v2310, %v2310
        %v2313 = vsel %vm1164, %v2311, 0.0
        %2314 = vadd.xlane.f32.xlu0 %v2313
        %v2315 = vpop.xlane.xlu0 %2314
        %v2316 = vsel %vm1164, %v2312, 0.0
        %2317 = vadd.xlane.f32.xlu0 %v2316
        %v2318 = vpop.xlane.xlu0 %2317
        %v2319 = vmul.f32 %v2315, %v1426
        %v2320 = vmul.f32 %v2318, %v1426
        %v2321 = vadd.f32 %v2319, 1e-06
        %v2322 = vadd.f32 %v2320, 1e-06
        %v2323 = vrsqrt.pop %v2321
        %v2324 = vmul.f32 %v2323, %v2321
        %v2325 = vmul.f32 %v2324, %v2323
        %v2326 = vmul.f32 0.5, %v2325
        %v2327 = vsub.f32 1.5, %v2326
        %v2328 = vmul.f32 %v2323, %v2327
        %vm2329 = vweird.f32 %v2321
        %vm2330 = vweird.f32 %v2323
        %vm2331 = vmor %vm2329, %vm2330
        %v2332 = vsel %vm2331, %v2323, %v2328
        %v2333 = vrsqrt.pop %v2322
        %v2334 = vmul.f32 %v2333, %v2322
        %v2335 = vmul.f32 %v2334, %v2333
        %v2336 = vmul.f32 0.5, %v2335
        %v2337 = vsub.f32 1.5, %v2336
        %v2338 = vmul.f32 %v2333, %v2337
        %vm2339 = vweird.f32 %v2322
        %vm2340 = vweird.f32 %v2333
        %vm2341 = vmor %vm2339, %vm2340
        %v2342 = vsel %vm2341, %v2333, %v2338
        %v2343 = vmul.f32 %v2309, %v2332
        %v2344 = vmul.f32 %v2310, %v2342
        %v2346 = vperm.slane %v2299, 0
        %v2348 = vmul.f32 %v2343, %v2346
        %v2349 = vmul.f32 %v2344, %v2346
        %v2351 = vperm.slane %v2300, 0
        %v2353 = vadd.f32 %v2348, %v2351
        %v2354 = vadd.f32 %v2349, %v2351
        %2355 = vst.msk [vmem:[#allocation17] sm:$0xff] %vm1164, %v2353
        %2356 = vst.msk [vmem:[#allocation17 + $0x8] sm:$0xff] %vm1164, %v2354
        // Predicated region
        $region149: #{tpu_custom_call.1} parent=107 // pred_check
          %p2357 = pneg %p610
        $region150: #{tpu_custom_call.1} parent=107 // pred_check_branch
          %2359 = sbr.rel (%p2357) target = $region152
        $region151: #{tpu_custom_call.1} parent=107 // pred_region
          %2361 = vsyncadd [#allocation4], 0
          %s2362 = sshll.u32 [#allocation17], 4
          %s2363 = int_to_ptr.vmem [resolvable:$true] %s2362
          %s2364 = sshll.u32 %s22, 4
          %s2365 = int_to_ptr.hbm [resolvable:$true] %s2364
          %2370 = dma.vmem_to_hbm [thread:$0]  %s2363, 256, %s2365, [#allocation4], 128, 128, 8
        $region152: #{tpu_custom_call.1} parent=107 // pred_fallthru
          _
        // Predicated region
        $region153: #{tpu_custom_call.1} parent=107 // pred_check
          %p2371 = pneg %p610
        $region154: #{tpu_custom_call.1} parent=107 // pred_check_branch
          %2373 = sbr.rel (%p2371) target = $region156
        $region155: #{tpu_custom_call.1} parent=107 // pred_region
          %2375 = dma.done [#allocation4], 256
        $region156: #{tpu_custom_call.1} parent=107 // pred_fallthru
          _
      $region108: #{tpu_custom_call.1} parent=5 // pred_fallthru
        _
      %p2376 = scmp.le.s32.totalorder 2, %s40
      // Predicated region
      $region157: #{tpu_custom_call.1} parent=5 // pred_check
        %p2377 = pneg %p2376
      $region158: #{tpu_custom_call.1} parent=5 // pred_check_branch
        %2379 = sbr.rel (%p2377) target = $region160
      $region159: #{tpu_custom_call.1} parent=5 // pred_region
        %s2380 = ssub.s32 %s40, 2
      $region160: #{tpu_custom_call.1} parent=5 // pred_fallthru
        _
    $region6: #{tpu_custom_call.1} parent=1 // loop_footer
      %s44 = sadd.s32 1, %s40
    $region7: #{tpu_custom_call.1} parent=1 // loop_footer_branch
      %39 = sbr.rel target = $region3
    $region8: #{tpu_custom_call.1} parent=1 // loop_exit
      _
    %2381 = vsyncpa [#allocation3], 1
    %s2382 = scalar_lea.sflag [#allocation3], 1
    %2383 = vsyncpa %s2382, 1
    %2384 = vsyncpa [#allocation6], 1
    %2385 = vsyncpa [#allocation9], 1
    %s2386 = scalar_lea.sflag [#allocation9], 1
    %2387 = vsyncpa %s2386, 1
    %2388 = vsyncpa [#allocation12], 1
    %s2389 = scalar_lea.sflag [#allocation12], 1
    %2390 = vsyncpa %s2389, 1
    %2391 = vsyncpa [#allocation15], 1
    %s2392 = scalar_lea.sflag [#allocation15], 1
    %2393 = vsyncpa %s2392, 1
    %2394 = vsyncpa [#allocation4], 1
    %s2395 = scalar_lea.sflag [#allocation4], 1
    %2396 = vsyncpa %s2395, 1

</llo_original>
